<compile_context>
chip_gen: v5e
topology: v5e:2x2
jax: 0.10.0
libtpu: 0.0.40
codegen_flags: <defaults>
</compile_context>

<pallas_src>
import jax
import jax.numpy as jnp
from jax import lax
from jax.experimental import pallas as pl
from jax.experimental.pallas import tpu as pltpu

BLOCK_B = 8  # batch rows per grid step (multiple of 8 keeps row slices aligned)


# ---------------------------------------------------------------------------
# Fused forward kernel: one batch block, everything VMEM-resident.
# Row layouts (channels on lanes, lane dims padded to 128-multiples):
#   a1  : (20*nb, 256) conv1 im2col rows ordered (tap i', oh, b); lane ki*28+w
#   y1  : (20*nb, 256) conv1 out; lane ow*20+oc (valid 240)
#   sq  : ( 5*nb, 256) conv2(+pool1 folded) out squared; lane ow*50+oc (valid 250)
#   fc3 : (   nb, 512) fc3(+pool2 folded) out (valid 500)
#   out : (   nb, 128) fc4 out (valid 10)
# ---------------------------------------------------------------------------
def plainnet_kernel(a1_ref, w1_ref, b1_ref, w2_ref, b2_ref,
                    w3_ref, b3_ref, w4_ref, b4_ref, o_ref):
    nb = a1_ref.shape[0] // 20          # batch rows in this block (multiple of 8)
    r2 = 5 * nb                         # rows per conv2 height-tap block

    # ---- conv1 (1->20, k5, s2): ONE structured matmul ----------------------
    y1 = jnp.dot(a1_ref[...], w1_ref[...],
                 preferred_element_type=jnp.float32) + b1_ref[...]

    # ---- conv2 (20->50, k3, s2) with pool1 pre-folded (effective 4x4) ------
    # 4 height taps; each tap is a contiguous, 8-aligned row block of y1.
    acc2 = jnp.zeros((r2, 256), jnp.float32)
    for i in range(4):
        acc2 = acc2 + jnp.dot(y1[i * r2:(i + 1) * r2, :], w2_ref[i],
                              preferred_element_type=jnp.float32)
    sq = acc2 + b2_ref[...]
    sq = sq * sq                                            # Square activation

    # ---- fc3 (800->500) with pool2 pre-folded: 5 height taps ---------------
    acc3 = jnp.zeros((nb, 512), jnp.float32)
    for oh in range(5):
        acc3 = acc3 + jnp.dot(sq[oh * nb:(oh + 1) * nb, :], w3_ref[oh],
                              preferred_element_type=jnp.float32)
    fc3 = acc3 + b3_ref[...]

    # ---- fc4 (500->10), lane-padded to 128 (unmasked store) ----------------
    o_ref[...] = jnp.dot(fc3, w4_ref[...],
                         preferred_element_type=jnp.float32) + b4_ref[...]


# ---------------------------------------------------------------------------
# One-time weight preparation (outside jit): structured conv weights, pool
# folding, lane padding to 128-multiples.
# ---------------------------------------------------------------------------
def prepare_params(params):
    f32 = jnp.float32
    w1, b1 = params["w1"].astype(f32), params["b1"].astype(f32)   # (20,1,5,5),(20,)
    w2, b2 = params["w2"].astype(f32), params["b2"].astype(f32)   # (50,20,3,3),(50,)
    w3, b3 = params["w3"].astype(f32), params["b3"].astype(f32)   # (500,800),(500,)
    w4, b4 = params["w4"].astype(f32), params["b4"].astype(f32)   # (10,500),(10,)

    # conv1 structured weight: W1[ki*28+w, ow*20+oc] = w1[oc,0,ki,w-2*ow] (0 OOB)
    W1 = jnp.zeros((5, 28, 12, 20), f32)
    for ki in range(5):
        wk = w1[:, 0, ki, :].T                                    # (kj, oc)
        for ow in range(12):
            W1 = W1.at[ki, 2 * ow:2 * ow + 5, ow, :].set(wk)
    w1s = jnp.zeros((256, 256), f32).at[:140, :240].set(W1.reshape(140, 240))
    b1t = jnp.zeros((1, 256), f32).at[0, :240].set(jnp.tile(b1, 12))

    # pool1 folded into conv2 -> effective 4x4 kernel:
    # w2e[oc,c,i',j'] = 0.25 * sum_{dh,dw in {0,1}} w2[oc,c,i'-dh,j'-dw] (valid taps)
    w2e = jnp.zeros((50, 20, 4, 4), f32)
    for dh in (0, 1):
        for dw in (0, 1):
            w2e = w2e.at[:, :, dh:dh + 3, dw:dw + 3].add(0.25 * w2)
    # structured per-height-tap weight: W2[i', w*20+c, ow*50+oc] = w2e[oc,c,i',w-2*ow]
    W2 = jnp.zeros((4, 12, 20, 5, 50), f32)
    for i in range(4):
        wi = w2e[:, :, i, :].transpose(2, 1, 0)                   # (j', c, oc)
        for ow in range(5):
            W2 = W2.at[i, 2 * ow:2 * ow + 4, :, ow, :].set(wi)
    w2s = jnp.zeros((4, 256, 256), f32).at[:, :240, :250].set(W2.reshape(4, 240, 250))
    b2t = jnp.zeros((1, 256), f32).at[0, :250].set(jnp.tile(b2, 5))

    # pool2 folded into fc3 (PyTorch NCHW flatten: index = oc*16 + h*4 + w):
    # w3e[n,oc,oh,ow] = 0.25 * sum_{dh,dw in {0,1}} w3r[n,oc,oh-dh,ow-dw] (valid taps)
    w3r = w3.reshape(500, 50, 4, 4)
    w3e = jnp.zeros((500, 50, 5, 5), f32)
    for dh in (0, 1):
        for dw in (0, 1):
            w3e = w3e.at[:, :, dh:dh + 4, dw:dw + 4].add(0.25 * w3r)
    w3p = w3e.transpose(2, 3, 1, 0).reshape(5, 250, 500)          # (oh, ow*50+oc, n)
    w3s = jnp.zeros((5, 256, 512), f32).at[:, :250, :500].set(w3p)
    b3t = jnp.zeros((1, 512), f32).at[0, :500].set(b3)

    w4s = jnp.zeros((512, 128), f32).at[:500, :10].set(w4.T)
    b4t = jnp.zeros((1, 128), f32).at[0, :10].set(b4)

    return dict(w1=w1s, b1=b1t, w2=w2s, b2=b2t, w3=w3s, b3=b3t, w4=w4s, b4=b4t)


# ---------------------------------------------------------------------------
# Forward: conv1 im2col is built in the wrapper (XLA); one pallas_call with a
# parallel batch-block grid axis; weights stay VMEM-resident across steps.
# ---------------------------------------------------------------------------
def plainnet_forward(prepped, x, block_b=BLOCK_B):
    B = x.shape[0]
    G = pl.cdiv(B, block_b)
    Bp = G * block_b

    # a1 row (g, tap i', oh, b_local); lane ki*28+w holds x[b, 0, 4*oh+2*i'+ki, w].
    x2 = jnp.zeros((Bp, 28, 28), jnp.float32).at[:B].set(x[:, 0].astype(jnp.float32))
    src_rows = (2 * jnp.arange(4)[:, None, None]
                + 4 * jnp.arange(5)[None, :, None]
                + jnp.arange(5)[None, None, :])                    # (i', oh, ki)
    xg = x2[:, src_rows, :].reshape(Bp, 4, 5, 140)                 # (b, i', oh, lane)
    a1v = xg.reshape(G, block_b, 4, 5, 140).transpose(0, 2, 3, 1, 4)
    a1 = jnp.zeros((G * 20 * block_b, 256), jnp.float32)
    a1 = a1.at[:, :140].set(a1v.reshape(G * 20 * block_b, 140))

    out = pl.pallas_call(
        plainnet_kernel,
        out_shape=jax.ShapeDtypeStruct((G * block_b, 128), jnp.float32),
        grid_spec=pltpu.PrefetchScalarGridSpec(
            num_scalar_prefetch=0,
            grid=(G,),
            in_specs=[
                pl.BlockSpec((20 * block_b, 256), lambda g: (g, 0)),   # a1 (per block)
                pl.BlockSpec((256, 256), lambda g: (0, 0)),            # conv1 weight
                pl.BlockSpec((1, 256), lambda g: (0, 0)),              # conv1 bias
                pl.BlockSpec((4, 256, 256), lambda g: (0, 0, 0)),      # conv2 (+pool1)
                pl.BlockSpec((1, 256), lambda g: (0, 0)),              # conv2 bias
                pl.BlockSpec((5, 256, 512), lambda g: (0, 0, 0)),      # fc3 (+pool2)
                pl.BlockSpec((1, 512), lambda g: (0, 0)),              # fc3 bias
                pl.BlockSpec((512, 128), lambda g: (0, 0)),            # fc4 weight
                pl.BlockSpec((1, 128), lambda g: (0, 0)),              # fc4 bias
            ],
            out_specs=pl.BlockSpec((block_b, 128), lambda g: (g, 0)),
        ),
        compiler_params=pltpu.CompilerParams(dimension_semantics=("parallel",)),
    )(a1, prepped["w1"], prepped["b1"], prepped["w2"], prepped["b2"],
      prepped["w3"], prepped["b3"], prepped["w4"], prepped["b4"])
    return out[:B, :10]


# ---------------------------------------------------------------------------
# Reference (plain JAX, HIGHEST precision) for a numerical cross-check.
# ---------------------------------------------------------------------------
def reference_forward(params, x):
    hp = lax.Precision.HIGHEST
    dn = ("NCHW", "OIHW", "NCHW")
    y = lax.conv_general_dilated(x, params["w1"], (2, 2), "VALID",
                                 dimension_numbers=dn, precision=hp)
    y = y + params["b1"].reshape(1, -1, 1, 1)
    y = 0.25 * (y[:, :, :-1, :-1] + y[:, :, 1:, :-1] + y[:, :, :-1, 1:] + y[:, :, 1:, 1:])
    y = lax.conv_general_dilated(y, params["w2"], (2, 2), "VALID",
                                 dimension_numbers=dn, precision=hp)
    y = y + params["b2"].reshape(1, -1, 1, 1)
    y = y * y
    y = 0.25 * (y[:, :, :-1, :-1] + y[:, :, 1:, :-1] + y[:, :, :-1, 1:] + y[:, :, 1:, 1:])
    y = y.reshape(x.shape[0], 4 * 4 * 50)
    y = jnp.dot(y, params["w3"].T, precision=hp) + params["b3"]
    y = jnp.dot(y, params["w4"].T, precision=hp) + params["b4"]
    return y


def init_params(key):
    ks = jax.random.split(key, 8)

    def u(k, shape, fan_in):
        bound = 1.0 / jnp.sqrt(fan_in)
        return jax.random.uniform(k, shape, jnp.float32, -bound, bound)

    return {
        "w1": u(ks[0], (20, 1, 5, 5), 1 * 5 * 5),
        "b1": u(ks[1], (20,), 1 * 5 * 5),
        "w2": u(ks[2], (50, 20, 3, 3), 20 * 3 * 3),
        "b2": u(ks[3], (50,), 20 * 3 * 3),
        "w3": u(ks[4], (500, 800), 800),
        "b3": u(ks[5], (500,), 800),
        "w4": u(ks[6], (10, 500), 500),
        "b4": u(ks[7], (10,), 500),
    }


if __name__ == "__main__":
    key = jax.random.PRNGKey(0)
    k_x, k_p = jax.random.split(key)
    x = jax.random.normal(k_x, (2, 1, 28, 28), jnp.float32)   # 28x28 implied by fc3
    params = init_params(k_p)
    prepped = prepare_params(params)        # one-time weight prep, outside jit

    fwd = jax.jit(plainnet_forward)
    out = jax.block_until_ready(fwd(prepped, x))
    assert out.shape == (2, 10) and out.dtype == jnp.float32

    ref = jax.block_until_ready(jax.jit(reference_forward)(params, x))
    err = float(jnp.max(jnp.abs(out - ref)))
    assert err < 2e-2, f"max abs err {err}"
    print("KERNEL_OK")
</pallas_src>

<mosaic_0001>
module attributes {stable_mosaic.version = 11 : i64} {
  func.func @plainnet_kernel(%arg0: i32, %arg1: memref<160x256xf32, #tpu.memory_space<vmem>>, %arg2: memref<256x256xf32, #tpu.memory_space<vmem>>, %arg3: memref<1x256xf32, #tpu.memory_space<vmem>>, %arg4: memref<4x256x256xf32, #tpu.memory_space<vmem>>, %arg5: memref<1x256xf32, #tpu.memory_space<vmem>>, %arg6: memref<5x256x512xf32, #tpu.memory_space<vmem>>, %arg7: memref<1x512xf32, #tpu.memory_space<vmem>>, %arg8: memref<512x128xf32, #tpu.memory_space<vmem>>, %arg9: memref<1x128xf32, #tpu.memory_space<vmem>>, %arg10: memref<8x128xf32, #tpu.memory_space<vmem>>) attributes {dimension_semantics = [#tpu.dimension_semantics<parallel>], iteration_bounds = array<i64: 1>, scalar_prefetch = 0 : i64, scratch_operands = 0 : i64, tpu.core_type = #tpu.core_type<tc>, window_params = [{transform_indices = @transform_0, window_bounds = array<i64: 160, 256>}, {pipeline_mode = #tpu.pipeline_mode<synchronous>, transform_indices = @transform_1, window_bounds = array<i64: 256, 256>}, {pipeline_mode = #tpu.pipeline_mode<synchronous>, transform_indices = @transform_2, window_bounds = array<i64: 1, 256>}, {pipeline_mode = #tpu.pipeline_mode<synchronous>, transform_indices = @transform_3, window_bounds = array<i64: 4, 256, 256>}, {pipeline_mode = #tpu.pipeline_mode<synchronous>, transform_indices = @transform_4, window_bounds = array<i64: 1, 256>}, {pipeline_mode = #tpu.pipeline_mode<synchronous>, transform_indices = @transform_5, window_bounds = array<i64: 5, 256, 512>}, {pipeline_mode = #tpu.pipeline_mode<synchronous>, transform_indices = @transform_6, window_bounds = array<i64: 1, 512>}, {pipeline_mode = #tpu.pipeline_mode<synchronous>, transform_indices = @transform_7, window_bounds = array<i64: 512, 128>}, {pipeline_mode = #tpu.pipeline_mode<synchronous>, transform_indices = @transform_8, window_bounds = array<i64: 1, 128>}, {transform_indices = @transform_9, window_bounds = array<i64: 8, 128>}]} {
    %c0 = arith.constant 0 : index
    %c0_0 = arith.constant 0 : index
    %0 = vector.load %arg1[%c0, %c0_0] : memref<160x256xf32, #tpu.memory_space<vmem>>, vector<160x256xf32>
    %c0_1 = arith.constant 0 : index
    %c0_2 = arith.constant 0 : index
    %1 = vector.load %arg2[%c0_1, %c0_2] : memref<256x256xf32, #tpu.memory_space<vmem>>, vector<256x256xf32>
    %cst = arith.constant dense<0.000000e+00> : vector<160x256xf32>
    %2 = tpu.matmul %0, %1, %cst {dimension_numbers = #tpu.dot_dimension_numbers<[1], [0], [0], [1], [0, 0, 1, 1], [], []>} : vector<160x256xf32>, vector<256x256xf32>, vector<160x256xf32> -> vector<160x256xf32>
    %c0_3 = arith.constant 0 : index
    %c0_4 = arith.constant 0 : index
    %3 = vector.load %arg3[%c0_3, %c0_4] : memref<1x256xf32, #tpu.memory_space<vmem>>, vector<1x256xf32>
    %4 = vector.broadcast %3 : vector<1x256xf32> to vector<160x256xf32>
    %5 = arith.addf %2, %4 : vector<160x256xf32>
    %cst_5 = arith.constant 0.000000e+00 : f32
    %6 = vector.broadcast %cst_5 : f32 to vector<40x256xf32>
    %7 = vector.extract_strided_slice %5 {offsets = [0, 0], sizes = [40, 256], strides = [1, 1]} : vector<160x256xf32> to vector<40x256xf32>
    %c0_6 = arith.constant 0 : index
    %c0_7 = arith.constant 0 : index
    %c0_8 = arith.constant 0 : index
    %8 = vector.load %arg4[%c0_6, %c0_7, %c0_8] : memref<4x256x256xf32, #tpu.memory_space<vmem>>, vector<1x256x256xf32>
    %9 = vector.shape_cast %8 : vector<1x256x256xf32> to vector<256x256xf32>
    %cst_9 = arith.constant dense<0.000000e+00> : vector<40x256xf32>
    %10 = tpu.matmul %7, %9, %cst_9 {dimension_numbers = #tpu.dot_dimension_numbers<[1], [0], [0], [1], [0, 0, 1, 1], [], []>} : vector<40x256xf32>, vector<256x256xf32>, vector<40x256xf32> -> vector<40x256xf32>
    %11 = arith.addf %6, %10 : vector<40x256xf32>
    %12 = vector.extract_strided_slice %5 {offsets = [40, 0], sizes = [40, 256], strides = [1, 1]} : vector<160x256xf32> to vector<40x256xf32>
    %c1 = arith.constant 1 : index
    %c0_10 = arith.constant 0 : index
    %c0_11 = arith.constant 0 : index
    %13 = vector.load %arg4[%c1, %c0_10, %c0_11] : memref<4x256x256xf32, #tpu.memory_space<vmem>>, vector<1x256x256xf32>
    %14 = vector.shape_cast %13 : vector<1x256x256xf32> to vector<256x256xf32>
    %cst_12 = arith.constant dense<0.000000e+00> : vector<40x256xf32>
    %15 = tpu.matmul %12, %14, %cst_12 {dimension_numbers = #tpu.dot_dimension_numbers<[1], [0], [0], [1], [0, 0, 1, 1], [], []>} : vector<40x256xf32>, vector<256x256xf32>, vector<40x256xf32> -> vector<40x256xf32>
    %16 = arith.addf %11, %15 : vector<40x256xf32>
    %17 = vector.extract_strided_slice %5 {offsets = [80, 0], sizes = [40, 256], strides = [1, 1]} : vector<160x256xf32> to vector<40x256xf32>
    %c2 = arith.constant 2 : index
    %c0_13 = arith.constant 0 : index
    %c0_14 = arith.constant 0 : index
    %18 = vector.load %arg4[%c2, %c0_13, %c0_14] : memref<4x256x256xf32, #tpu.memory_space<vmem>>, vector<1x256x256xf32>
    %19 = vector.shape_cast %18 : vector<1x256x256xf32> to vector<256x256xf32>
    %cst_15 = arith.constant dense<0.000000e+00> : vector<40x256xf32>
    %20 = tpu.matmul %17, %19, %cst_15 {dimension_numbers = #tpu.dot_dimension_numbers<[1], [0], [0], [1], [0, 0, 1, 1], [], []>} : vector<40x256xf32>, vector<256x256xf32>, vector<40x256xf32> -> vector<40x256xf32>
    %21 = arith.addf %16, %20 : vector<40x256xf32>
    %22 = vector.extract_strided_slice %5 {offsets = [120, 0], sizes = [40, 256], strides = [1, 1]} : vector<160x256xf32> to vector<40x256xf32>
    %c3 = arith.constant 3 : index
    %c0_16 = arith.constant 0 : index
    %c0_17 = arith.constant 0 : index
    %23 = vector.load %arg4[%c3, %c0_16, %c0_17] : memref<4x256x256xf32, #tpu.memory_space<vmem>>, vector<1x256x256xf32>
    %24 = vector.shape_cast %23 : vector<1x256x256xf32> to vector<256x256xf32>
    %cst_18 = arith.constant dense<0.000000e+00> : vector<40x256xf32>
    %25 = tpu.matmul %22, %24, %cst_18 {dimension_numbers = #tpu.dot_dimension_numbers<[1], [0], [0], [1], [0, 0, 1, 1], [], []>} : vector<40x256xf32>, vector<256x256xf32>, vector<40x256xf32> -> vector<40x256xf32>
    %26 = arith.addf %21, %25 : vector<40x256xf32>
    %c0_19 = arith.constant 0 : index
    %c0_20 = arith.constant 0 : index
    %27 = vector.load %arg5[%c0_19, %c0_20] : memref<1x256xf32, #tpu.memory_space<vmem>>, vector<1x256xf32>
    %28 = vector.broadcast %27 : vector<1x256xf32> to vector<40x256xf32>
    %29 = arith.addf %26, %28 : vector<40x256xf32>
    %30 = arith.mulf %29, %29 : vector<40x256xf32>
    %cst_21 = arith.constant 0.000000e+00 : f32
    %31 = vector.broadcast %cst_21 : f32 to vector<8x512xf32>
    %32 = vector.extract_strided_slice %30 {offsets = [0, 0], sizes = [8, 256], strides = [1, 1]} : vector<40x256xf32> to vector<8x256xf32>
    %c0_22 = arith.constant 0 : index
    %c0_23 = arith.constant 0 : index
    %c0_24 = arith.constant 0 : index
    %33 = vector.load %arg6[%c0_22, %c0_23, %c0_24] : memref<5x256x512xf32, #tpu.memory_space<vmem>>, vector<1x256x512xf32>
    %34 = vector.shape_cast %33 : vector<1x256x512xf32> to vector<256x512xf32>
    %cst_25 = arith.constant dense<0.000000e+00> : vector<8x512xf32>
    %35 = tpu.matmul %32, %34, %cst_25 {dimension_numbers = #tpu.dot_dimension_numbers<[1], [0], [0], [1], [0, 0, 1, 1], [], []>} : vector<8x256xf32>, vector<256x512xf32>, vector<8x512xf32> -> vector<8x512xf32>
    %36 = arith.addf %31, %35 : vector<8x512xf32>
    %37 = vector.extract_strided_slice %30 {offsets = [8, 0], sizes = [8, 256], strides = [1, 1]} : vector<40x256xf32> to vector<8x256xf32>
    %c1_26 = arith.constant 1 : index
    %c0_27 = arith.constant 0 : index
    %c0_28 = arith.constant 0 : index
    %38 = vector.load %arg6[%c1_26, %c0_27, %c0_28] : memref<5x256x512xf32, #tpu.memory_space<vmem>>, vector<1x256x512xf32>
    %39 = vector.shape_cast %38 : vector<1x256x512xf32> to vector<256x512xf32>
    %cst_29 = arith.constant dense<0.000000e+00> : vector<8x512xf32>
    %40 = tpu.matmul %37, %39, %cst_29 {dimension_numbers = #tpu.dot_dimension_numbers<[1], [0], [0], [1], [0, 0, 1, 1], [], []>} : vector<8x256xf32>, vector<256x512xf32>, vector<8x512xf32> -> vector<8x512xf32>
    %41 = arith.addf %36, %40 : vector<8x512xf32>
    %42 = vector.extract_strided_slice %30 {offsets = [16, 0], sizes = [8, 256], strides = [1, 1]} : vector<40x256xf32> to vector<8x256xf32>
    %c2_30 = arith.constant 2 : index
    %c0_31 = arith.constant 0 : index
    %c0_32 = arith.constant 0 : index
    %43 = vector.load %arg6[%c2_30, %c0_31, %c0_32] : memref<5x256x512xf32, #tpu.memory_space<vmem>>, vector<1x256x512xf32>
    %44 = vector.shape_cast %43 : vector<1x256x512xf32> to vector<256x512xf32>
    %cst_33 = arith.constant dense<0.000000e+00> : vector<8x512xf32>
    %45 = tpu.matmul %42, %44, %cst_33 {dimension_numbers = #tpu.dot_dimension_numbers<[1], [0], [0], [1], [0, 0, 1, 1], [], []>} : vector<8x256xf32>, vector<256x512xf32>, vector<8x512xf32> -> vector<8x512xf32>
    %46 = arith.addf %41, %45 : vector<8x512xf32>
    %47 = vector.extract_strided_slice %30 {offsets = [24, 0], sizes = [8, 256], strides = [1, 1]} : vector<40x256xf32> to vector<8x256xf32>
    %c3_34 = arith.constant 3 : index
    %c0_35 = arith.constant 0 : index
    %c0_36 = arith.constant 0 : index
    %48 = vector.load %arg6[%c3_34, %c0_35, %c0_36] : memref<5x256x512xf32, #tpu.memory_space<vmem>>, vector<1x256x512xf32>
    %49 = vector.shape_cast %48 : vector<1x256x512xf32> to vector<256x512xf32>
    %cst_37 = arith.constant dense<0.000000e+00> : vector<8x512xf32>
    %50 = tpu.matmul %47, %49, %cst_37 {dimension_numbers = #tpu.dot_dimension_numbers<[1], [0], [0], [1], [0, 0, 1, 1], [], []>} : vector<8x256xf32>, vector<256x512xf32>, vector<8x512xf32> -> vector<8x512xf32>
    %51 = arith.addf %46, %50 : vector<8x512xf32>
    %52 = vector.extract_strided_slice %30 {offsets = [32, 0], sizes = [8, 256], strides = [1, 1]} : vector<40x256xf32> to vector<8x256xf32>
    %c4 = arith.constant 4 : index
    %c0_38 = arith.constant 0 : index
    %c0_39 = arith.constant 0 : index
    %53 = vector.load %arg6[%c4, %c0_38, %c0_39] : memref<5x256x512xf32, #tpu.memory_space<vmem>>, vector<1x256x512xf32>
    %54 = vector.shape_cast %53 : vector<1x256x512xf32> to vector<256x512xf32>
    %cst_40 = arith.constant dense<0.000000e+00> : vector<8x512xf32>
    %55 = tpu.matmul %52, %54, %cst_40 {dimension_numbers = #tpu.dot_dimension_numbers<[1], [0], [0], [1], [0, 0, 1, 1], [], []>} : vector<8x256xf32>, vector<256x512xf32>, vector<8x512xf32> -> vector<8x512xf32>
    %56 = arith.addf %51, %55 : vector<8x512xf32>
    %c0_41 = arith.constant 0 : index
    %c0_42 = arith.constant 0 : index
    %57 = vector.load %arg7[%c0_41, %c0_42] : memref<1x512xf32, #tpu.memory_space<vmem>>, vector<1x512xf32>
    %58 = vector.broadcast %57 : vector<1x512xf32> to vector<8x512xf32>
    %59 = arith.addf %56, %58 : vector<8x512xf32>
    %c0_43 = arith.constant 0 : index
    %c0_44 = arith.constant 0 : index
    %60 = vector.load %arg8[%c0_43, %c0_44] : memref<512x128xf32, #tpu.memory_space<vmem>>, vector<512x128xf32>
    %cst_45 = arith.constant dense<0.000000e+00> : vector<8x128xf32>
    %61 = tpu.matmul %59, %60, %cst_45 {dimension_numbers = #tpu.dot_dimension_numbers<[1], [0], [0], [1], [0, 0, 1, 1], [], []>} : vector<8x512xf32>, vector<512x128xf32>, vector<8x128xf32> -> vector<8x128xf32>
    %c0_46 = arith.constant 0 : index
    %c0_47 = arith.constant 0 : index
    %62 = vector.load %arg9[%c0_46, %c0_47] : memref<1x128xf32, #tpu.memory_space<vmem>>, vector<1x128xf32>
    %63 = vector.broadcast %62 : vector<1x128xf32> to vector<8x128xf32>
    %64 = arith.addf %61, %63 : vector<8x128xf32>
    %c0_48 = arith.constant 0 : index
    %c0_49 = arith.constant 0 : index
    %65 = vector.load %arg10[%c0_48, %c0_49] : memref<8x128xf32, #tpu.memory_space<vmem>>, vector<8x128xf32>
    tpu.vector_store %arg10[%c0_48, %c0_49], %64 {strides = array<i32>} : memref<8x128xf32, #tpu.memory_space<vmem>>, vector<8x128xf32>,
    return
  }
  func.func @transform_0(%arg0: i32) -> (i32, i32) {
    %c0_i32 = arith.constant 0 : i32
    %c0_i32_0 = arith.constant 0 : i32
    return %arg0, %c0_i32 : i32, i32
  }
  func.func @transform_1(%arg0: i32) -> (i32, i32) {
    %c0_i32 = arith.constant 0 : i32
    %c0_i32_0 = arith.constant 0 : i32
    %c0_i32_1 = arith.constant 0 : i32
    return %c0_i32, %c0_i32_0 : i32, i32
  }
  func.func @transform_2(%arg0: i32) -> (i32, i32) {
    %c0_i32 = arith.constant 0 : i32
    %c0_i32_0 = arith.constant 0 : i32
    %c0_i32_1 = arith.constant 0 : i32
    return %c0_i32, %c0_i32_0 : i32, i32
  }
  func.func @transform_3(%arg0: i32) -> (i32, i32, i32) {
    %c0_i32 = arith.constant 0 : i32
    %c0_i32_0 = arith.constant 0 : i32
    %c0_i32_1 = arith.constant 0 : i32
    %c0_i32_2 = arith.constant 0 : i32
    return %c0_i32, %c0_i32_0, %c0_i32_1 : i32, i32, i32
  }
  func.func @transform_4(%arg0: i32) -> (i32, i32) {
    %c0_i32 = arith.constant 0 : i32
    %c0_i32_0 = arith.constant 0 : i32
    %c0_i32_1 = arith.constant 0 : i32
    return %c0_i32, %c0_i32_0 : i32, i32
  }
  func.func @transform_5(%arg0: i32) -> (i32, i32, i32) {
    %c0_i32 = arith.constant 0 : i32
    %c0_i32_0 = arith.constant 0 : i32
    %c0_i32_1 = arith.constant 0 : i32
    %c0_i32_2 = arith.constant 0 : i32
    return %c0_i32, %c0_i32_0, %c0_i32_1 : i32, i32, i32
  }
  func.func @transform_6(%arg0: i32) -> (i32, i32) {
    %c0_i32 = arith.constant 0 : i32
    %c0_i32_0 = arith.constant 0 : i32
    %c0_i32_1 = arith.constant 0 : i32
    return %c0_i32, %c0_i32_0 : i32, i32
  }
  func.func @transform_7(%arg0: i32) -> (i32, i32) {
    %c0_i32 = arith.constant 0 : i32
    %c0_i32_0 = arith.constant 0 : i32
    %c0_i32_1 = arith.constant 0 : i32
    return %c0_i32, %c0_i32_0 : i32, i32
  }
  func.func @transform_8(%arg0: i32) -> (i32, i32) {
    %c0_i32 = arith.constant 0 : i32
    %c0_i32_0 = arith.constant 0 : i32
    %c0_i32_1 = arith.constant 0 : i32
    return %c0_i32, %c0_i32_0 : i32, i32
  }
  func.func @transform_9(%arg0: i32) -> (i32, i32) {
    %c0_i32 = arith.constant 0 : i32
    %c0_i32_0 = arith.constant 0 : i32
    return %arg0, %c0_i32 : i32, i32
  }
}

</mosaic_0001>

<llo_original>
// kernel: plainnet_forward.1
$region0: #{plainnet_forward.1}
  #allocation0 [shape = 'u32[]', space=smem, size = 0x4, offset = 0x4, fixed_abs, tag = 'smem constant byte address 0x4 - core index']
  #allocation1 [shape = 'u32[72,128]{1,0:T(1,128)}', space=vmem, size = 0x9000, scoped, tag = 'internal scratch']
  %s0 = inlined_call_operand.vmem [shape: f32[160,256], index: 0, kind: input, shape index: {}]
  %s1 = inlined_call_operand.vmem [shape: f32[256,256], index: 1, kind: input, shape index: {}]
  %s2 = inlined_call_operand.vmem [shape: f32[1,256], index: 2, kind: input, shape index: {}]
  %s3 = inlined_call_operand.hbm [shape: f32[4,256,256], index: 3, kind: input, shape index: {}]
  %s4 = inlined_call_operand.vmem [shape: f32[1,256], index: 4, kind: input, shape index: {}]
  %s5 = inlined_call_operand.vmem [shape: f32[5,256,512], index: 5, kind: input, shape index: {}]
  %s6 = inlined_call_operand.vmem [shape: f32[1,512], index: 6, kind: input, shape index: {}]
  %s7 = inlined_call_operand.vmem [shape: f32[512,128], index: 7, kind: input, shape index: {}]
  %s8 = inlined_call_operand.vmem [shape: f32[1,128], index: 8, kind: input, shape index: {}]
  %s9 = inlined_call_operand.vmem [shape: f32[8,128], index: 9, kind: output, shape index: {}]
  %s10 = sld [smem:[#allocation0]]
  $region50: #{plainnet_forward.1} parent=0
    _
  %s12 = ssub.s32 1, %s10
  %s13 = scalar_select 0, %s12, %s10
  $region1: #{plainnet_forward.1} parent=0
    #allocation2 [shape = 'u8[1048576]{0}', space=vmem, size = 0x100000, scoped, tag = 'input window, operand 3, single buffered']
    #allocation3 [shape = 's32[1]{0}', space=sflag, size = 0x4, scoped, tag = 'scoped memory for plainnet_forward.1']
    %14 = vsyncpa [#allocation3], 0
    // Predicated region
    $region2: #{plainnet_forward.1} parent=1 // pred_check
      _
    $region3: #{plainnet_forward.1} parent=1 // pred_check_branch
      %16 = sbr.rel (0) target = $region5
    $region4: #{plainnet_forward.1} parent=1 // pred_region
      _
    $region5: #{plainnet_forward.1} parent=1 // pred_fallthru
      _
    // Predicated region
    $region6: #{plainnet_forward.1} parent=1 // pred_check
      _
    $region7: #{plainnet_forward.1} parent=1 // pred_check_branch
      %18 = sbr.rel (0) target = $region9
    $region8: #{plainnet_forward.1} parent=1 // pred_region
      _
    $region9: #{plainnet_forward.1} parent=1 // pred_fallthru
      _
    // Predicated region
    $region10: #{plainnet_forward.1} parent=1 // pred_check
      _
    $region11: #{plainnet_forward.1} parent=1 // pred_check_branch
      %20 = sbr.rel (0) target = $region13
    $region12: #{plainnet_forward.1} parent=1 // pred_region
      _
    $region13: #{plainnet_forward.1} parent=1 // pred_fallthru
      _
    // Predicated region
    $region14: #{plainnet_forward.1} parent=1 // pred_check
      _
    $region15: #{plainnet_forward.1} parent=1 // pred_check_branch
      %22 = sbr.rel (0) target = $region17
    $region16: #{plainnet_forward.1} parent=1 // pred_region
      %24 = vsyncadd [#allocation3], 0
      %s25 = sshll.u32 %s3, 4
      %s26 = int_to_ptr.hbm [resolvable:$true] %s25
      %s27 = sshll.u32 [#allocation2], 4
      %s28 = int_to_ptr.vmem [resolvable:$true] %s27
      %33 = dma.hbm_to_vmem [thread:$0]  %s26, 32768, %s28, [#allocation3], 256, 256, 16
    $region17: #{plainnet_forward.1} parent=1 // pred_fallthru
      _
    // Predicated region
    $region18: #{plainnet_forward.1} parent=1 // pred_check
      _
    $region19: #{plainnet_forward.1} parent=1 // pred_check_branch
      %35 = sbr.rel (0) target = $region21
    $region20: #{plainnet_forward.1} parent=1 // pred_region
      _
    $region21: #{plainnet_forward.1} parent=1 // pred_fallthru
      _
    // Predicated region
    $region22: #{plainnet_forward.1} parent=1 // pred_check
      _
    $region23: #{plainnet_forward.1} parent=1 // pred_check_branch
      %37 = sbr.rel (0) target = $region25
    $region24: #{plainnet_forward.1} parent=1 // pred_region
      _
    $region25: #{plainnet_forward.1} parent=1 // pred_fallthru
      _
    // Predicated region
    $region26: #{plainnet_forward.1} parent=1 // pred_check
      _
    $region27: #{plainnet_forward.1} parent=1 // pred_check_branch
      %39 = sbr.rel (0) target = $region29
    $region28: #{plainnet_forward.1} parent=1 // pred_region
      _
    $region29: #{plainnet_forward.1} parent=1 // pred_fallthru
      _
    // Predicated region
    $region30: #{plainnet_forward.1} parent=1 // pred_check
      _
    $region31: #{plainnet_forward.1} parent=1 // pred_check_branch
      %41 = sbr.rel (0) target = $region33
    $region32: #{plainnet_forward.1} parent=1 // pred_region
      _
    $region33: #{plainnet_forward.1} parent=1 // pred_fallthru
      _
    // Predicated region
    $region34: #{plainnet_forward.1} parent=1 // pred_check
      _
    $region35: #{plainnet_forward.1} parent=1 // pred_check_branch
      %43 = sbr.rel (0) target = $region37
    $region36: #{plainnet_forward.1} parent=1 // pred_region
      _
    $region37: #{plainnet_forward.1} parent=1 // pred_fallthru
      _
    // Predicated region
    $region38: #{plainnet_forward.1} parent=1 // pred_check
      _
    $region39: #{plainnet_forward.1} parent=1 // pred_check_branch
      %45 = sbr.rel (0) target = $region41
    $region40: #{plainnet_forward.1} parent=1 // pred_region
      %47 = dma.done [#allocation3], 32768
    $region41: #{plainnet_forward.1} parent=1 // pred_fallthru
      _
    %v48 = vld [vmem:[%s0] sm:$0xff]
    %v49 = vld [vmem:[%s0 + $0x8] sm:$0xff]
    %v50 = vld [vmem:[%s0 + $0x10] sm:$0xff]
    %v51 = vld [vmem:[%s0 + $0x18] sm:$0xff]
    %v52 = vld [vmem:[%s0 + $0x20] sm:$0xff]
    %v53 = vld [vmem:[%s0 + $0x28] sm:$0xff]
    %v54 = vld [vmem:[%s0 + $0x30] sm:$0xff]
    %v55 = vld [vmem:[%s0 + $0x38] sm:$0xff]
    %v56 = vld [vmem:[%s0 + $0x40] sm:$0xff]
    %v57 = vld [vmem:[%s0 + $0x48] sm:$0xff]
    %v58 = vld [vmem:[%s0 + $0x50] sm:$0xff]
    %v59 = vld [vmem:[%s0 + $0x58] sm:$0xff]
    %v60 = vld [vmem:[%s0 + $0x60] sm:$0xff]
    %v61 = vld [vmem:[%s0 + $0x68] sm:$0xff]
    %v62 = vld [vmem:[%s0 + $0x70] sm:$0xff]
    %v63 = vld [vmem:[%s0 + $0x78] sm:$0xff]
    %v64 = vld [vmem:[%s0 + $0x80] sm:$0xff]
    %v65 = vld [vmem:[%s0 + $0x88] sm:$0xff]
    %v66 = vld [vmem:[%s0 + $0x90] sm:$0xff]
    %v67 = vld [vmem:[%s0 + $0x98] sm:$0xff]
    %v68 = vld [vmem:[%s0 + $0xa0] sm:$0xff]
    %v69 = vld [vmem:[%s0 + $0xa8] sm:$0xff]
    %v70 = vld [vmem:[%s0 + $0xb0] sm:$0xff]
    %v71 = vld [vmem:[%s0 + $0xb8] sm:$0xff]
    %v72 = vld [vmem:[%s0 + $0xc0] sm:$0xff]
    %v73 = vld [vmem:[%s0 + $0xc8] sm:$0xff]
    %v74 = vld [vmem:[%s0 + $0xd0] sm:$0xff]
    %v75 = vld [vmem:[%s0 + $0xd8] sm:$0xff]
    %v76 = vld [vmem:[%s0 + $0xe0] sm:$0xff]
    %v77 = vld [vmem:[%s0 + $0xe8] sm:$0xff]
    %v78 = vld [vmem:[%s0 + $0xf0] sm:$0xff]
    %v79 = vld [vmem:[%s0 + $0xf8] sm:$0xff]
    %v80 = vld [vmem:[%s0 + $0x100] sm:$0xff]
    %v81 = vld [vmem:[%s0 + $0x108] sm:$0xff]
    %v82 = vld [vmem:[%s0 + $0x110] sm:$0xff]
    %v83 = vld [vmem:[%s0 + $0x118] sm:$0xff]
    %v84 = vld [vmem:[%s0 + $0x120] sm:$0xff]
    %v85 = vld [vmem:[%s0 + $0x128] sm:$0xff]
    %v86 = vld [vmem:[%s0 + $0x130] sm:$0xff]
    %v87 = vld [vmem:[%s0 + $0x138] sm:$0xff]
    %v88 = vld [vmem:[%s1] sm:$0xff]
    %v89 = vld [vmem:[%s1 + $0x8] sm:$0xff]
    %v90 = vld [vmem:[%s1 + $0x10] sm:$0xff]
    %v91 = vld [vmem:[%s1 + $0x18] sm:$0xff]
    %v92 = vld [vmem:[%s1 + $0x20] sm:$0xff]
    %v93 = vld [vmem:[%s1 + $0x28] sm:$0xff]
    %v94 = vld [vmem:[%s1 + $0x30] sm:$0xff]
    %v95 = vld [vmem:[%s1 + $0x38] sm:$0xff]
    %v96 = vld [vmem:[%s1 + $0x40] sm:$0xff]
    %v97 = vld [vmem:[%s1 + $0x48] sm:$0xff]
    %v98 = vld [vmem:[%s1 + $0x50] sm:$0xff]
    %v99 = vld [vmem:[%s1 + $0x58] sm:$0xff]
    %v100 = vld [vmem:[%s1 + $0x60] sm:$0xff]
    %v101 = vld [vmem:[%s1 + $0x68] sm:$0xff]
    %v102 = vld [vmem:[%s1 + $0x70] sm:$0xff]
    %v103 = vld [vmem:[%s1 + $0x78] sm:$0xff]
    %v104 = vld [vmem:[%s1 + $0x80] sm:$0xff]
    %v105 = vld [vmem:[%s1 + $0x88] sm:$0xff]
    %v106 = vld [vmem:[%s1 + $0x90] sm:$0xff]
    %v107 = vld [vmem:[%s1 + $0x98] sm:$0xff]
    %v108 = vld [vmem:[%s1 + $0xa0] sm:$0xff]
    %v109 = vld [vmem:[%s1 + $0xa8] sm:$0xff]
    %v110 = vld [vmem:[%s1 + $0xb0] sm:$0xff]
    %v111 = vld [vmem:[%s1 + $0xb8] sm:$0xff]
    %v112 = vld [vmem:[%s1 + $0xc0] sm:$0xff]
    %v113 = vld [vmem:[%s1 + $0xc8] sm:$0xff]
    %v114 = vld [vmem:[%s1 + $0xd0] sm:$0xff]
    %v115 = vld [vmem:[%s1 + $0xd8] sm:$0xff]
    %v116 = vld [vmem:[%s1 + $0xe0] sm:$0xff]
    %v117 = vld [vmem:[%s1 + $0xe8] sm:$0xff]
    %v118 = vld [vmem:[%s1 + $0xf0] sm:$0xff]
    %v119 = vld [vmem:[%s1 + $0xf8] sm:$0xff]
    %v120 = vld [vmem:[%s1 + $0x100] sm:$0xff]
    %v121 = vld [vmem:[%s1 + $0x108] sm:$0xff]
    %v122 = vld [vmem:[%s1 + $0x110] sm:$0xff]
    %v123 = vld [vmem:[%s1 + $0x118] sm:$0xff]
    %v124 = vld [vmem:[%s1 + $0x120] sm:$0xff]
    %v125 = vld [vmem:[%s1 + $0x128] sm:$0xff]
    %v126 = vld [vmem:[%s1 + $0x130] sm:$0xff]
    %v127 = vld [vmem:[%s1 + $0x138] sm:$0xff]
    %v128 = vld [vmem:[%s1 + $0x140] sm:$0xff]
    %v129 = vld [vmem:[%s1 + $0x148] sm:$0xff]
    %v130 = vld [vmem:[%s1 + $0x150] sm:$0xff]
    %v131 = vld [vmem:[%s1 + $0x158] sm:$0xff]
    %v132 = vld [vmem:[%s1 + $0x160] sm:$0xff]
    %v133 = vld [vmem:[%s1 + $0x168] sm:$0xff]
    %v134 = vld [vmem:[%s1 + $0x170] sm:$0xff]
    %v135 = vld [vmem:[%s1 + $0x178] sm:$0xff]
    %v136 = vld [vmem:[%s1 + $0x180] sm:$0xff]
    %v137 = vld [vmem:[%s1 + $0x188] sm:$0xff]
    %v138 = vld [vmem:[%s1 + $0x190] sm:$0xff]
    %v139 = vld [vmem:[%s1 + $0x198] sm:$0xff]
    %v140 = vld [vmem:[%s1 + $0x1a0] sm:$0xff]
    %v141 = vld [vmem:[%s1 + $0x1a8] sm:$0xff]
    %v142 = vld [vmem:[%s1 + $0x1b0] sm:$0xff]
    %v143 = vld [vmem:[%s1 + $0x1b8] sm:$0xff]
    %v144 = vld [vmem:[%s1 + $0x1c0] sm:$0xff]
    %v145 = vld [vmem:[%s1 + $0x1c8] sm:$0xff]
    %v146 = vld [vmem:[%s1 + $0x1d0] sm:$0xff]
    %v147 = vld [vmem:[%s1 + $0x1d8] sm:$0xff]
    %v148 = vld [vmem:[%s1 + $0x1e0] sm:$0xff]
    %v149 = vld [vmem:[%s1 + $0x1e8] sm:$0xff]
    %v150 = vld [vmem:[%s1 + $0x1f0] sm:$0xff]
    %v151 = vld [vmem:[%s1 + $0x1f8] sm:$0xff]
    %v152 = vld [vmem:[%s2] sm:$0x3]
    %v154 = vperm.slane %v152, 0
    %v155 = vperm.slane %v152, 1
    %158 = vmatpush.msra.mxu0 %v118
    %159 = vmatpush.msra.mxu0 %v116
    %160 = vmatpush.msra.mxu0 %v114
    %161 = vmatpush.msra.mxu0 %v112
    %162 = vmatpush.msra.mxu0 %v110
    %163 = vmatpush.msra.mxu0 %v108
    %164 = vmatpush.msra.mxu0 %v106
    %165 = vmatpush.msra.mxu0 %v104
    %166 = vmatpush.msra.mxu0 %v102
    %167 = vmatpush.msra.mxu0 %v100
    %168 = vmatpush.msra.mxu0 %v98
    %169 = vmatpush.msra.mxu0 %v96
    %170 = vmatpush.msra.mxu0 %v94
    %171 = vmatpush.msra.mxu0 %v92
    %172 = vmatpush.msra.mxu0 %v90
    %173 = vmatpush.msra.mxu0 %v88
    %174 = vmatmul.f32.gmra.mxu0 %v48
    %v175 = vpop.f32.mrf.mxu0
    %v176 = vadd.f32 %v154, %v175
    %177 = vmatmul.f32.gmra.mxu0 %v50
    %v178 = vpop.f32.mrf.mxu0
    %v179 = vadd.f32 %v154, %v178
    %180 = vmatmul.f32.gmra.mxu0 %v52
    %v181 = vpop.f32.mrf.mxu0
    %v182 = vadd.f32 %v154, %v181
    %183 = vmatmul.f32.gmra.mxu0 %v54
    %v184 = vpop.f32.mrf.mxu0
    %v185 = vadd.f32 %v154, %v184
    %186 = vmatmul.f32.gmra.mxu0 %v56
    %v187 = vpop.f32.mrf.mxu0
    %v188 = vadd.f32 %v154, %v187
    %189 = vmatmul.f32.gmra.mxu0 %v58
    %v190 = vpop.f32.mrf.mxu0
    %v191 = vadd.f32 %v154, %v190
    %192 = vmatmul.f32.gmra.mxu0 %v60
    %v193 = vpop.f32.mrf.mxu0
    %v194 = vadd.f32 %v154, %v193
    %195 = vmatmul.f32.gmra.mxu0 %v62
    %v196 = vpop.f32.mrf.mxu0
    %v197 = vadd.f32 %v154, %v196
    %198 = vmatmul.f32.gmra.mxu0 %v64
    %v199 = vpop.f32.mrf.mxu0
    %v200 = vadd.f32 %v154, %v199
    %201 = vmatmul.f32.gmra.mxu0 %v66
    %v202 = vpop.f32.mrf.mxu0
    %v203 = vadd.f32 %v154, %v202
    %204 = vmatmul.f32.gmra.mxu0 %v68
    %v205 = vpop.f32.mrf.mxu0
    %v206 = vadd.f32 %v154, %v205
    %207 = vmatmul.f32.gmra.mxu0 %v70
    %v208 = vpop.f32.mrf.mxu0
    %v209 = vadd.f32 %v154, %v208
    %210 = vmatmul.f32.gmra.mxu0 %v72
    %v211 = vpop.f32.mrf.mxu0
    %v212 = vadd.f32 %v154, %v211
    %213 = vmatmul.f32.gmra.mxu0 %v74
    %v214 = vpop.f32.mrf.mxu0
    %v215 = vadd.f32 %v154, %v214
    %216 = vmatmul.f32.gmra.mxu0 %v76
    %v217 = vpop.f32.mrf.mxu0
    %v218 = vadd.f32 %v154, %v217
    %219 = vmatmul.f32.gmra.mxu0 %v78
    %v220 = vpop.f32.mrf.mxu0
    %v221 = vadd.f32 %v154, %v220
    %222 = vmatmul.f32.gmra.mxu0 %v80
    %v223 = vpop.f32.mrf.mxu0
    %v224 = vadd.f32 %v154, %v223
    %225 = vmatmul.f32.gmra.mxu0 %v82
    %v226 = vpop.f32.mrf.mxu0
    %v227 = vadd.f32 %v154, %v226
    %228 = vmatmul.f32.gmra.mxu0 %v84
    %v229 = vpop.f32.mrf.mxu0
    %v230 = vadd.f32 %v154, %v229
    %231 = vmatmul.f32.gmra.mxu0 %v86
    %v232 = vpop.f32.mrf.mxu0
    %v233 = vadd.f32 %v154, %v232
    %234 = vdwg.mxu0
    %235 = vmatpush.msra.mxu0 %v150
    %236 = vmatpush.msra.mxu0 %v148
    %237 = vmatpush.msra.mxu0 %v146
    %238 = vmatpush.msra.mxu0 %v144
    %239 = vmatpush.msra.mxu0 %v142
    %240 = vmatpush.msra.mxu0 %v140
    %241 = vmatpush.msra.mxu0 %v138
    %242 = vmatpush.msra.mxu0 %v136
    %243 = vmatpush.msra.mxu0 %v134
    %244 = vmatpush.msra.mxu0 %v132
    %245 = vmatpush.msra.mxu0 %v130
    %246 = vmatpush.msra.mxu0 %v128
    %247 = vmatpush.msra.mxu0 %v126
    %248 = vmatpush.msra.mxu0 %v124
    %249 = vmatpush.msra.mxu0 %v122
    %250 = vmatpush.msra.mxu0 %v120
    %251 = vmatmul.f32.gmra.mxu0 %v49
    %v252 = vpop.f32.mrf.mxu0
    %v253 = vadd.f32 %v176, %v252
    %254 = vmatmul.f32.gmra.mxu0 %v51
    %v255 = vpop.f32.mrf.mxu0
    %v256 = vadd.f32 %v179, %v255
    %257 = vmatmul.f32.gmra.mxu0 %v53
    %v258 = vpop.f32.mrf.mxu0
    %v259 = vadd.f32 %v182, %v258
    %260 = vmatmul.f32.gmra.mxu0 %v55
    %v261 = vpop.f32.mrf.mxu0
    %v262 = vadd.f32 %v185, %v261
    %263 = vmatmul.f32.gmra.mxu0 %v57
    %v264 = vpop.f32.mrf.mxu0
    %v265 = vadd.f32 %v188, %v264
    %266 = vmatmul.f32.gmra.mxu0 %v59
    %v267 = vpop.f32.mrf.mxu0
    %v268 = vadd.f32 %v191, %v267
    %269 = vmatmul.f32.gmra.mxu0 %v61
    %v270 = vpop.f32.mrf.mxu0
    %v271 = vadd.f32 %v194, %v270
    %272 = vmatmul.f32.gmra.mxu0 %v63
    %v273 = vpop.f32.mrf.mxu0
    %v274 = vadd.f32 %v197, %v273
    %275 = vmatmul.f32.gmra.mxu0 %v65
    %v276 = vpop.f32.mrf.mxu0
    %v277 = vadd.f32 %v200, %v276
    %278 = vmatmul.f32.gmra.mxu0 %v67
    %v279 = vpop.f32.mrf.mxu0
    %v280 = vadd.f32 %v203, %v279
    %281 = vmatmul.f32.gmra.mxu0 %v69
    %v282 = vpop.f32.mrf.mxu0
    %v283 = vadd.f32 %v206, %v282
    %284 = vmatmul.f32.gmra.mxu0 %v71
    %v285 = vpop.f32.mrf.mxu0
    %v286 = vadd.f32 %v209, %v285
    %287 = vmatmul.f32.gmra.mxu0 %v73
    %v288 = vpop.f32.mrf.mxu0
    %v289 = vadd.f32 %v212, %v288
    %290 = vmatmul.f32.gmra.mxu0 %v75
    %v291 = vpop.f32.mrf.mxu0
    %v292 = vadd.f32 %v215, %v291
    %293 = vmatmul.f32.gmra.mxu0 %v77
    %v294 = vpop.f32.mrf.mxu0
    %v295 = vadd.f32 %v218, %v294
    %296 = vmatmul.f32.gmra.mxu0 %v79
    %v297 = vpop.f32.mrf.mxu0
    %v298 = vadd.f32 %v221, %v297
    %299 = vmatmul.f32.gmra.mxu0 %v81
    %v300 = vpop.f32.mrf.mxu0
    %v301 = vadd.f32 %v224, %v300
    %302 = vmatmul.f32.gmra.mxu0 %v83
    %v303 = vpop.f32.mrf.mxu0
    %v304 = vadd.f32 %v227, %v303
    %305 = vmatmul.f32.gmra.mxu0 %v85
    %v306 = vpop.f32.mrf.mxu0
    %v307 = vadd.f32 %v230, %v306
    %308 = vmatmul.f32.gmra.mxu0 %v87
    %v309 = vpop.f32.mrf.mxu0
    %v310 = vadd.f32 %v233, %v309
    %311 = vdwg.mxu0
    %312 = vmatpush.msra.mxu0 %v119
    %313 = vmatpush.msra.mxu0 %v117
    %314 = vmatpush.msra.mxu0 %v115
    %315 = vmatpush.msra.mxu0 %v113
    %316 = vmatpush.msra.mxu0 %v111
    %317 = vmatpush.msra.mxu0 %v109
    %318 = vmatpush.msra.mxu0 %v107
    %319 = vmatpush.msra.mxu0 %v105
    %320 = vmatpush.msra.mxu0 %v103
    %321 = vmatpush.msra.mxu0 %v101
    %322 = vmatpush.msra.mxu0 %v99
    %323 = vmatpush.msra.mxu0 %v97
    %324 = vmatpush.msra.mxu0 %v95
    %325 = vmatpush.msra.mxu0 %v93
    %326 = vmatpush.msra.mxu0 %v91
    %327 = vmatpush.msra.mxu0 %v89
    %328 = vmatmul.f32.gmra.mxu0 %v48
    %v329 = vpop.f32.mrf.mxu0
    %v330 = vadd.f32 %v155, %v329
    %331 = vmatmul.f32.gmra.mxu0 %v50
    %v332 = vpop.f32.mrf.mxu0
    %v333 = vadd.f32 %v155, %v332
    %334 = vmatmul.f32.gmra.mxu0 %v52
    %v335 = vpop.f32.mrf.mxu0
    %v336 = vadd.f32 %v155, %v335
    %337 = vmatmul.f32.gmra.mxu0 %v54
    %v338 = vpop.f32.mrf.mxu0
    %v339 = vadd.f32 %v155, %v338
    %340 = vmatmul.f32.gmra.mxu0 %v56
    %v341 = vpop.f32.mrf.mxu0
    %v342 = vadd.f32 %v155, %v341
    %343 = vmatmul.f32.gmra.mxu0 %v58
    %v344 = vpop.f32.mrf.mxu0
    %v345 = vadd.f32 %v155, %v344
    %346 = vmatmul.f32.gmra.mxu0 %v60
    %v347 = vpop.f32.mrf.mxu0
    %v348 = vadd.f32 %v155, %v347
    %349 = vmatmul.f32.gmra.mxu0 %v62
    %v350 = vpop.f32.mrf.mxu0
    %v351 = vadd.f32 %v155, %v350
    %352 = vmatmul.f32.gmra.mxu0 %v64
    %v353 = vpop.f32.mrf.mxu0
    %v354 = vadd.f32 %v155, %v353
    %355 = vmatmul.f32.gmra.mxu0 %v66
    %v356 = vpop.f32.mrf.mxu0
    %v357 = vadd.f32 %v155, %v356
    %358 = vmatmul.f32.gmra.mxu0 %v68
    %v359 = vpop.f32.mrf.mxu0
    %v360 = vadd.f32 %v155, %v359
    %361 = vmatmul.f32.gmra.mxu0 %v70
    %v362 = vpop.f32.mrf.mxu0
    %v363 = vadd.f32 %v155, %v362
    %364 = vmatmul.f32.gmra.mxu0 %v72
    %v365 = vpop.f32.mrf.mxu0
    %v366 = vadd.f32 %v155, %v365
    %367 = vmatmul.f32.gmra.mxu0 %v74
    %v368 = vpop.f32.mrf.mxu0
    %v369 = vadd.f32 %v155, %v368
    %370 = vmatmul.f32.gmra.mxu0 %v76
    %v371 = vpop.f32.mrf.mxu0
    %v372 = vadd.f32 %v155, %v371
    %373 = vmatmul.f32.gmra.mxu0 %v78
    %v374 = vpop.f32.mrf.mxu0
    %v375 = vadd.f32 %v155, %v374
    %376 = vmatmul.f32.gmra.mxu0 %v80
    %v377 = vpop.f32.mrf.mxu0
    %v378 = vadd.f32 %v155, %v377
    %379 = vmatmul.f32.gmra.mxu0 %v82
    %v380 = vpop.f32.mrf.mxu0
    %v381 = vadd.f32 %v155, %v380
    %382 = vmatmul.f32.gmra.mxu0 %v84
    %v383 = vpop.f32.mrf.mxu0
    %v384 = vadd.f32 %v155, %v383
    %385 = vmatmul.f32.gmra.mxu0 %v86
    %v386 = vpop.f32.mrf.mxu0
    %v387 = vadd.f32 %v155, %v386
    %388 = vdwg.mxu0
    %389 = vmatpush.msra.mxu0 %v151
    %390 = vmatpush.msra.mxu0 %v149
    %391 = vmatpush.msra.mxu0 %v147
    %392 = vmatpush.msra.mxu0 %v145
    %393 = vmatpush.msra.mxu0 %v143
    %394 = vmatpush.msra.mxu0 %v141
    %395 = vmatpush.msra.mxu0 %v139
    %396 = vmatpush.msra.mxu0 %v137
    %397 = vmatpush.msra.mxu0 %v135
    %398 = vmatpush.msra.mxu0 %v133
    %399 = vmatpush.msra.mxu0 %v131
    %400 = vmatpush.msra.mxu0 %v129
    %401 = vmatpush.msra.mxu0 %v127
    %402 = vmatpush.msra.mxu0 %v125
    %403 = vmatpush.msra.mxu0 %v123
    %404 = vmatpush.msra.mxu0 %v121
    %405 = vmatmul.f32.gmra.mxu0 %v49
    %v406 = vpop.f32.mrf.mxu0
    %v407 = vadd.f32 %v330, %v406
    %408 = vmatmul.f32.gmra.mxu0 %v51
    %v409 = vpop.f32.mrf.mxu0
    %v410 = vadd.f32 %v333, %v409
    %411 = vmatmul.f32.gmra.mxu0 %v53
    %v412 = vpop.f32.mrf.mxu0
    %v413 = vadd.f32 %v336, %v412
    %414 = vmatmul.f32.gmra.mxu0 %v55
    %v415 = vpop.f32.mrf.mxu0
    %v416 = vadd.f32 %v339, %v415
    %417 = vmatmul.f32.gmra.mxu0 %v57
    %v418 = vpop.f32.mrf.mxu0
    %v419 = vadd.f32 %v342, %v418
    %420 = vmatmul.f32.gmra.mxu0 %v59
    %v421 = vpop.f32.mrf.mxu0
    %v422 = vadd.f32 %v345, %v421
    %423 = vmatmul.f32.gmra.mxu0 %v61
    %v424 = vpop.f32.mrf.mxu0
    %v425 = vadd.f32 %v348, %v424
    %426 = vmatmul.f32.gmra.mxu0 %v63
    %v427 = vpop.f32.mrf.mxu0
    %v428 = vadd.f32 %v351, %v427
    %429 = vmatmul.f32.gmra.mxu0 %v65
    %v430 = vpop.f32.mrf.mxu0
    %v431 = vadd.f32 %v354, %v430
    %432 = vmatmul.f32.gmra.mxu0 %v67
    %v433 = vpop.f32.mrf.mxu0
    %v434 = vadd.f32 %v357, %v433
    %435 = vmatmul.f32.gmra.mxu0 %v69
    %v436 = vpop.f32.mrf.mxu0
    %v437 = vadd.f32 %v360, %v436
    %438 = vmatmul.f32.gmra.mxu0 %v71
    %v439 = vpop.f32.mrf.mxu0
    %v440 = vadd.f32 %v363, %v439
    %441 = vmatmul.f32.gmra.mxu0 %v73
    %v442 = vpop.f32.mrf.mxu0
    %v443 = vadd.f32 %v366, %v442
    %444 = vmatmul.f32.gmra.mxu0 %v75
    %v445 = vpop.f32.mrf.mxu0
    %v446 = vadd.f32 %v369, %v445
    %447 = vmatmul.f32.gmra.mxu0 %v77
    %v448 = vpop.f32.mrf.mxu0
    %v449 = vadd.f32 %v372, %v448
    %450 = vmatmul.f32.gmra.mxu0 %v79
    %v451 = vpop.f32.mrf.mxu0
    %v452 = vadd.f32 %v375, %v451
    %453 = vmatmul.f32.gmra.mxu0 %v81
    %v454 = vpop.f32.mrf.mxu0
    %v455 = vadd.f32 %v378, %v454
    %456 = vmatmul.f32.gmra.mxu0 %v83
    %v457 = vpop.f32.mrf.mxu0
    %v458 = vadd.f32 %v381, %v457
    %459 = vmatmul.f32.gmra.mxu0 %v85
    %v460 = vpop.f32.mrf.mxu0
    %v461 = vadd.f32 %v384, %v460
    %462 = vmatmul.f32.gmra.mxu0 %v87
    %v463 = vpop.f32.mrf.mxu0
    %v464 = vadd.f32 %v387, %v463
    %465 = vdwg.mxu0
    %v466 = vld [vmem:[#allocation2] sm:$0xff]
    %v467 = vld [vmem:[#allocation2 + $0x8] sm:$0xff]
    %v468 = vld [vmem:[#allocation2 + $0x10] sm:$0xff]
    %v469 = vld [vmem:[#allocation2 + $0x18] sm:$0xff]
    %v470 = vld [vmem:[#allocation2 + $0x20] sm:$0xff]
    %v471 = vld [vmem:[#allocation2 + $0x28] sm:$0xff]
    %v472 = vld [vmem:[#allocation2 + $0x30] sm:$0xff]
    %v473 = vld [vmem:[#allocation2 + $0x38] sm:$0xff]
    %v474 = vld [vmem:[#allocation2 + $0x40] sm:$0xff]
    %v475 = vld [vmem:[#allocation2 + $0x48] sm:$0xff]
    %v476 = vld [vmem:[#allocation2 + $0x50] sm:$0xff]
    %v477 = vld [vmem:[#allocation2 + $0x58] sm:$0xff]
    %v478 = vld [vmem:[#allocation2 + $0x60] sm:$0xff]
    %v479 = vld [vmem:[#allocation2 + $0x68] sm:$0xff]
    %v480 = vld [vmem:[#allocation2 + $0x70] sm:$0xff]
    %v481 = vld [vmem:[#allocation2 + $0x78] sm:$0xff]
    %v482 = vld [vmem:[#allocation2 + $0x80] sm:$0xff]
    %v483 = vld [vmem:[#allocation2 + $0x88] sm:$0xff]
    %v484 = vld [vmem:[#allocation2 + $0x90] sm:$0xff]
    %v485 = vld [vmem:[#allocation2 + $0x98] sm:$0xff]
    %v486 = vld [vmem:[#allocation2 + $0xa0] sm:$0xff]
    %v487 = vld [vmem:[#allocation2 + $0xa8] sm:$0xff]
    %v488 = vld [vmem:[#allocation2 + $0xb0] sm:$0xff]
    %v489 = vld [vmem:[#allocation2 + $0xb8] sm:$0xff]
    %v490 = vld [vmem:[#allocation2 + $0xc0] sm:$0xff]
    %v491 = vld [vmem:[#allocation2 + $0xc8] sm:$0xff]
    %v492 = vld [vmem:[#allocation2 + $0xd0] sm:$0xff]
    %v493 = vld [vmem:[#allocation2 + $0xd8] sm:$0xff]
    %v494 = vld [vmem:[#allocation2 + $0xe0] sm:$0xff]
    %v495 = vld [vmem:[#allocation2 + $0xe8] sm:$0xff]
    %v496 = vld [vmem:[#allocation2 + $0xf0] sm:$0xff]
    %v497 = vld [vmem:[#allocation2 + $0xf8] sm:$0xff]
    %v498 = vld [vmem:[#allocation2 + $0x100] sm:$0xff]
    %v499 = vld [vmem:[#allocation2 + $0x108] sm:$0xff]
    %v500 = vld [vmem:[#allocation2 + $0x110] sm:$0xff]
    %v501 = vld [vmem:[#allocation2 + $0x118] sm:$0xff]
    %v502 = vld [vmem:[#allocation2 + $0x120] sm:$0xff]
    %v503 = vld [vmem:[#allocation2 + $0x128] sm:$0xff]
    %v504 = vld [vmem:[#allocation2 + $0x130] sm:$0xff]
    %v505 = vld [vmem:[#allocation2 + $0x138] sm:$0xff]
    %v506 = vld [vmem:[#allocation2 + $0x140] sm:$0xff]
    %v507 = vld [vmem:[#allocation2 + $0x148] sm:$0xff]
    %v508 = vld [vmem:[#allocation2 + $0x150] sm:$0xff]
    %v509 = vld [vmem:[#allocation2 + $0x158] sm:$0xff]
    %v510 = vld [vmem:[#allocation2 + $0x160] sm:$0xff]
    %v511 = vld [vmem:[#allocation2 + $0x168] sm:$0xff]
    %v512 = vld [vmem:[#allocation2 + $0x170] sm:$0xff]
    %v513 = vld [vmem:[#allocation2 + $0x178] sm:$0xff]
    %v514 = vld [vmem:[#allocation2 + $0x180] sm:$0xff]
    %v515 = vld [vmem:[#allocation2 + $0x188] sm:$0xff]
    %v516 = vld [vmem:[#allocation2 + $0x190] sm:$0xff]
    %v517 = vld [vmem:[#allocation2 + $0x198] sm:$0xff]
    %v518 = vld [vmem:[#allocation2 + $0x1a0] sm:$0xff]
    %v519 = vld [vmem:[#allocation2 + $0x1a8] sm:$0xff]
    %v520 = vld [vmem:[#allocation2 + $0x1b0] sm:$0xff]
    %v521 = vld [vmem:[#allocation2 + $0x1b8] sm:$0xff]
    %v522 = vld [vmem:[#allocation2 + $0x1c0] sm:$0xff]
    %v523 = vld [vmem:[#allocation2 + $0x1c8] sm:$0xff]
    %v524 = vld [vmem:[#allocation2 + $0x1d0] sm:$0xff]
    %v525 = vld [vmem:[#allocation2 + $0x1d8] sm:$0xff]
    %v526 = vld [vmem:[#allocation2 + $0x1e0] sm:$0xff]
    %v527 = vld [vmem:[#allocation2 + $0x1e8] sm:$0xff]
    %v528 = vld [vmem:[#allocation2 + $0x1f0] sm:$0xff]
    %v529 = vld [vmem:[#allocation2 + $0x1f8] sm:$0xff]
    %s530 = scalar_lea.vmem [#allocation2], 512
    %v531 = vld [vmem:[%s530] sm:$0xff]
    %v532 = vld [vmem:[%s530 + $0x8] sm:$0xff]
    %v533 = vld [vmem:[%s530 + $0x10] sm:$0xff]
    %v534 = vld [vmem:[%s530 + $0x18] sm:$0xff]
    %v535 = vld [vmem:[%s530 + $0x20] sm:$0xff]
    %v536 = vld [vmem:[%s530 + $0x28] sm:$0xff]
    %v537 = vld [vmem:[%s530 + $0x30] sm:$0xff]
    %v538 = vld [vmem:[%s530 + $0x38] sm:$0xff]
    %v539 = vld [vmem:[%s530 + $0x40] sm:$0xff]
    %v540 = vld [vmem:[%s530 + $0x48] sm:$0xff]
    %v541 = vld [vmem:[%s530 + $0x50] sm:$0xff]
    %v542 = vld [vmem:[%s530 + $0x58] sm:$0xff]
    %v543 = vld [vmem:[%s530 + $0x60] sm:$0xff]
    %v544 = vld [vmem:[%s530 + $0x68] sm:$0xff]
    %v545 = vld [vmem:[%s530 + $0x70] sm:$0xff]
    %v546 = vld [vmem:[%s530 + $0x78] sm:$0xff]
    %v547 = vld [vmem:[%s530 + $0x80] sm:$0xff]
    %v548 = vld [vmem:[%s530 + $0x88] sm:$0xff]
    %v549 = vld [vmem:[%s530 + $0x90] sm:$0xff]
    %v550 = vld [vmem:[%s530 + $0x98] sm:$0xff]
    %v551 = vld [vmem:[%s530 + $0xa0] sm:$0xff]
    %v552 = vld [vmem:[%s530 + $0xa8] sm:$0xff]
    %v553 = vld [vmem:[%s530 + $0xb0] sm:$0xff]
    %v554 = vld [vmem:[%s530 + $0xb8] sm:$0xff]
    %v555 = vld [vmem:[%s530 + $0xc0] sm:$0xff]
    %v556 = vld [vmem:[%s530 + $0xc8] sm:$0xff]
    %v557 = vld [vmem:[%s530 + $0xd0] sm:$0xff]
    %v558 = vld [vmem:[%s530 + $0xd8] sm:$0xff]
    %v559 = vld [vmem:[%s530 + $0xe0] sm:$0xff]
    %v560 = vld [vmem:[%s530 + $0xe8] sm:$0xff]
    %v561 = vld [vmem:[%s530 + $0xf0] sm:$0xff]
    %v562 = vld [vmem:[%s530 + $0xf8] sm:$0xff]
    %v563 = vld [vmem:[%s530 + $0x100] sm:$0xff]
    %v564 = vld [vmem:[%s530 + $0x108] sm:$0xff]
    %v565 = vld [vmem:[%s530 + $0x110] sm:$0xff]
    %v566 = vld [vmem:[%s530 + $0x118] sm:$0xff]
    %v567 = vld [vmem:[%s530 + $0x120] sm:$0xff]
    %v568 = vld [vmem:[%s530 + $0x128] sm:$0xff]
    %v569 = vld [vmem:[%s530 + $0x130] sm:$0xff]
    %v570 = vld [vmem:[%s530 + $0x138] sm:$0xff]
    %v571 = vld [vmem:[%s530 + $0x140] sm:$0xff]
    %v572 = vld [vmem:[%s530 + $0x148] sm:$0xff]
    %v573 = vld [vmem:[%s530 + $0x150] sm:$0xff]
    %v574 = vld [vmem:[%s530 + $0x158] sm:$0xff]
    %v575 = vld [vmem:[%s530 + $0x160] sm:$0xff]
    %v576 = vld [vmem:[%s530 + $0x168] sm:$0xff]
    %v577 = vld [vmem:[%s530 + $0x170] sm:$0xff]
    %v578 = vld [vmem:[%s530 + $0x178] sm:$0xff]
    %v579 = vld [vmem:[%s530 + $0x180] sm:$0xff]
    %v580 = vld [vmem:[%s530 + $0x188] sm:$0xff]
    %v581 = vld [vmem:[%s530 + $0x190] sm:$0xff]
    %v582 = vld [vmem:[%s530 + $0x198] sm:$0xff]
    %v583 = vld [vmem:[%s530 + $0x1a0] sm:$0xff]
    %v584 = vld [vmem:[%s530 + $0x1a8] sm:$0xff]
    %v585 = vld [vmem:[%s530 + $0x1b0] sm:$0xff]
    %v586 = vld [vmem:[%s530 + $0x1b8] sm:$0xff]
    %v587 = vld [vmem:[%s530 + $0x1c0] sm:$0xff]
    %v588 = vld [vmem:[%s530 + $0x1c8] sm:$0xff]
    %v589 = vld [vmem:[%s530 + $0x1d0] sm:$0xff]
    %v590 = vld [vmem:[%s530 + $0x1d8] sm:$0xff]
    %v591 = vld [vmem:[%s530 + $0x1e0] sm:$0xff]
    %v592 = vld [vmem:[%s530 + $0x1e8] sm:$0xff]
    %v593 = vld [vmem:[%s530 + $0x1f0] sm:$0xff]
    %v594 = vld [vmem:[%s530 + $0x1f8] sm:$0xff]
    %595 = vmatpush.msra.mxu0 %v561
    %596 = vmatpush.msra.mxu0 %v559
    %597 = vmatpush.msra.mxu0 %v557
    %598 = vmatpush.msra.mxu0 %v555
    %599 = vmatpush.msra.mxu0 %v553
    %600 = vmatpush.msra.mxu0 %v551
    %601 = vmatpush.msra.mxu0 %v549
    %602 = vmatpush.msra.mxu0 %v547
    %603 = vmatpush.msra.mxu0 %v545
    %604 = vmatpush.msra.mxu0 %v543
    %605 = vmatpush.msra.mxu0 %v541
    %606 = vmatpush.msra.mxu0 %v539
    %607 = vmatpush.msra.mxu0 %v537
    %608 = vmatpush.msra.mxu0 %v535
    %609 = vmatpush.msra.mxu0 %v533
    %610 = vmatpush.msra.mxu0 %v531
    %611 = vmatmul.f32.gmra.mxu0 %v268
    %v612 = vpop.f32.mrf.mxu0
    %v613 = vadd.f32 0.0, %v612
    %614 = vmatmul.f32.gmra.mxu0 %v271
    %v615 = vpop.f32.mrf.mxu0
    %v616 = vadd.f32 0.0, %v615
    %617 = vmatmul.f32.gmra.mxu0 %v274
    %v618 = vpop.f32.mrf.mxu0
    %v619 = vadd.f32 0.0, %v618
    %620 = vmatmul.f32.gmra.mxu0 %v277
    %v621 = vpop.f32.mrf.mxu0
    %v622 = vadd.f32 0.0, %v621
    %623 = vmatmul.f32.gmra.mxu0 %v280
    %v624 = vpop.f32.mrf.mxu0
    %v625 = vadd.f32 0.0, %v624
    %626 = vdwg.mxu0
    %627 = vmatpush.msra.mxu0 %v593
    %628 = vmatpush.msra.mxu0 %v591
    %629 = vmatpush.msra.mxu0 %v589
    %630 = vmatpush.msra.mxu0 %v587
    %631 = vmatpush.msra.mxu0 %v585
    %632 = vmatpush.msra.mxu0 %v583
    %633 = vmatpush.msra.mxu0 %v581
    %634 = vmatpush.msra.mxu0 %v579
    %635 = vmatpush.msra.mxu0 %v577
    %636 = vmatpush.msra.mxu0 %v575
    %637 = vmatpush.msra.mxu0 %v573
    %638 = vmatpush.msra.mxu0 %v571
    %639 = vmatpush.msra.mxu0 %v569
    %640 = vmatpush.msra.mxu0 %v567
    %641 = vmatpush.msra.mxu0 %v565
    %642 = vmatpush.msra.mxu0 %v563
    %643 = vmatmul.f32.gmra.mxu0 %v422
    %v644 = vpop.f32.mrf.mxu0
    %v645 = vadd.f32 %v613, %v644
    %646 = vmatmul.f32.gmra.mxu0 %v425
    %v647 = vpop.f32.mrf.mxu0
    %v648 = vadd.f32 %v616, %v647
    %649 = vmatmul.f32.gmra.mxu0 %v428
    %v650 = vpop.f32.mrf.mxu0
    %v651 = vadd.f32 %v619, %v650
    %652 = vmatmul.f32.gmra.mxu0 %v431
    %v653 = vpop.f32.mrf.mxu0
    %v654 = vadd.f32 %v622, %v653
    %655 = vmatmul.f32.gmra.mxu0 %v434
    %v656 = vpop.f32.mrf.mxu0
    %v657 = vadd.f32 %v625, %v656
    %658 = vdwg.mxu0
    %659 = vmatpush.msra.mxu0 %v562
    %660 = vmatpush.msra.mxu0 %v560
    %661 = vmatpush.msra.mxu0 %v558
    %662 = vmatpush.msra.mxu0 %v556
    %663 = vmatpush.msra.mxu0 %v554
    %664 = vmatpush.msra.mxu0 %v552
    %665 = vmatpush.msra.mxu0 %v550
    %666 = vmatpush.msra.mxu0 %v548
    %667 = vmatpush.msra.mxu0 %v546
    %668 = vmatpush.msra.mxu0 %v544
    %669 = vmatpush.msra.mxu0 %v542
    %670 = vmatpush.msra.mxu0 %v540
    %671 = vmatpush.msra.mxu0 %v538
    %672 = vmatpush.msra.mxu0 %v536
    %673 = vmatpush.msra.mxu0 %v534
    %674 = vmatpush.msra.mxu0 %v532
    %675 = vmatmul.f32.gmra.mxu0 %v268
    %v676 = vpop.f32.mrf.mxu0
    %v677 = vadd.f32 0.0, %v676
    %678 = vmatmul.f32.gmra.mxu0 %v271
    %v679 = vpop.f32.mrf.mxu0
    %v680 = vadd.f32 0.0, %v679
    %681 = vmatmul.f32.gmra.mxu0 %v274
    %v682 = vpop.f32.mrf.mxu0
    %v683 = vadd.f32 0.0, %v682
    %684 = vmatmul.f32.gmra.mxu0 %v277
    %v685 = vpop.f32.mrf.mxu0
    %v686 = vadd.f32 0.0, %v685
    %687 = vmatmul.f32.gmra.mxu0 %v280
    %v688 = vpop.f32.mrf.mxu0
    %v689 = vadd.f32 0.0, %v688
    %690 = vdwg.mxu0
    %691 = vmatpush.msra.mxu0 %v594
    %692 = vmatpush.msra.mxu0 %v592
    %693 = vmatpush.msra.mxu0 %v590
    %694 = vmatpush.msra.mxu0 %v588
    %695 = vmatpush.msra.mxu0 %v586
    %696 = vmatpush.msra.mxu0 %v584
    %697 = vmatpush.msra.mxu0 %v582
    %698 = vmatpush.msra.mxu0 %v580
    %699 = vmatpush.msra.mxu0 %v578
    %700 = vmatpush.msra.mxu0 %v576
    %701 = vmatpush.msra.mxu0 %v574
    %702 = vmatpush.msra.mxu0 %v572
    %703 = vmatpush.msra.mxu0 %v570
    %704 = vmatpush.msra.mxu0 %v568
    %705 = vmatpush.msra.mxu0 %v566
    %706 = vmatpush.msra.mxu0 %v564
    %707 = vmatmul.f32.gmra.mxu0 %v422
    %v708 = vpop.f32.mrf.mxu0
    %v709 = vadd.f32 %v677, %v708
    %710 = vmatmul.f32.gmra.mxu0 %v425
    %v711 = vpop.f32.mrf.mxu0
    %v712 = vadd.f32 %v680, %v711
    %713 = vmatmul.f32.gmra.mxu0 %v428
    %v714 = vpop.f32.mrf.mxu0
    %v715 = vadd.f32 %v683, %v714
    %716 = vmatmul.f32.gmra.mxu0 %v431
    %v717 = vpop.f32.mrf.mxu0
    %v718 = vadd.f32 %v686, %v717
    %719 = vmatmul.f32.gmra.mxu0 %v434
    %v720 = vpop.f32.mrf.mxu0
    %v721 = vadd.f32 %v689, %v720
    %722 = vdwg.mxu0
    %723 = vmatpush.msra.mxu0 %v496
    %724 = vmatpush.msra.mxu0 %v494
    %725 = vmatpush.msra.mxu0 %v492
    %726 = vmatpush.msra.mxu0 %v490
    %727 = vmatpush.msra.mxu0 %v488
    %728 = vmatpush.msra.mxu0 %v486
    %729 = vmatpush.msra.mxu0 %v484
    %730 = vmatpush.msra.mxu0 %v482
    %731 = vmatpush.msra.mxu0 %v480
    %732 = vmatpush.msra.mxu0 %v478
    %733 = vmatpush.msra.mxu0 %v476
    %734 = vmatpush.msra.mxu0 %v474
    %735 = vmatpush.msra.mxu0 %v472
    %736 = vmatpush.msra.mxu0 %v470
    %737 = vmatpush.msra.mxu0 %v468
    %738 = vmatpush.msra.mxu0 %v466
    %739 = vmatmul.f32.gmra.mxu0 %v253
    %v740 = vpop.f32.mrf.mxu0
    %v741 = vadd.f32 %v645, %v740
    %742 = vmatmul.f32.gmra.mxu0 %v256
    %v743 = vpop.f32.mrf.mxu0
    %v744 = vadd.f32 %v648, %v743
    %745 = vmatmul.f32.gmra.mxu0 %v259
    %v746 = vpop.f32.mrf.mxu0
    %v747 = vadd.f32 %v651, %v746
    %748 = vmatmul.f32.gmra.mxu0 %v262
    %v749 = vpop.f32.mrf.mxu0
    %v750 = vadd.f32 %v654, %v749
    %751 = vmatmul.f32.gmra.mxu0 %v265
    %v752 = vpop.f32.mrf.mxu0
    %v753 = vadd.f32 %v657, %v752
    %754 = vdwg.mxu0
    %755 = vmatpush.msra.mxu0 %v528
    %756 = vmatpush.msra.mxu0 %v526
    %757 = vmatpush.msra.mxu0 %v524
    %758 = vmatpush.msra.mxu0 %v522
    %759 = vmatpush.msra.mxu0 %v520
    %760 = vmatpush.msra.mxu0 %v518
    %761 = vmatpush.msra.mxu0 %v516
    %762 = vmatpush.msra.mxu0 %v514
    %763 = vmatpush.msra.mxu0 %v512
    %764 = vmatpush.msra.mxu0 %v510
    %765 = vmatpush.msra.mxu0 %v508
    %766 = vmatpush.msra.mxu0 %v506
    %767 = vmatpush.msra.mxu0 %v504
    %768 = vmatpush.msra.mxu0 %v502
    %769 = vmatpush.msra.mxu0 %v500
    %770 = vmatpush.msra.mxu0 %v498
    %771 = vmatmul.f32.gmra.mxu0 %v407
    %v772 = vpop.f32.mrf.mxu0
    %v773 = vadd.f32 %v741, %v772
    %774 = vmatmul.f32.gmra.mxu0 %v410
    %v775 = vpop.f32.mrf.mxu0
    %v776 = vadd.f32 %v744, %v775
    %777 = vmatmul.f32.gmra.mxu0 %v413
    %v778 = vpop.f32.mrf.mxu0
    %v779 = vadd.f32 %v747, %v778
    %780 = vmatmul.f32.gmra.mxu0 %v416
    %v781 = vpop.f32.mrf.mxu0
    %v782 = vadd.f32 %v750, %v781
    %783 = vmatmul.f32.gmra.mxu0 %v419
    %v784 = vpop.f32.mrf.mxu0
    %v785 = vadd.f32 %v753, %v784
    %786 = vdwg.mxu0
    %787 = vmatpush.msra.mxu0 %v497
    %788 = vmatpush.msra.mxu0 %v495
    %789 = vmatpush.msra.mxu0 %v493
    %790 = vmatpush.msra.mxu0 %v491
    %791 = vmatpush.msra.mxu0 %v489
    %792 = vmatpush.msra.mxu0 %v487
    %793 = vmatpush.msra.mxu0 %v485
    %794 = vmatpush.msra.mxu0 %v483
    %795 = vmatpush.msra.mxu0 %v481
    %796 = vmatpush.msra.mxu0 %v479
    %797 = vmatpush.msra.mxu0 %v477
    %798 = vmatpush.msra.mxu0 %v475
    %799 = vmatpush.msra.mxu0 %v473
    %800 = vmatpush.msra.mxu0 %v471
    %801 = vmatpush.msra.mxu0 %v469
    %802 = vmatpush.msra.mxu0 %v467
    %803 = vmatmul.f32.gmra.mxu0 %v253
    %v804 = vpop.f32.mrf.mxu0
    %v805 = vadd.f32 %v709, %v804
    %806 = vmatmul.f32.gmra.mxu0 %v256
    %v807 = vpop.f32.mrf.mxu0
    %v808 = vadd.f32 %v712, %v807
    %809 = vmatmul.f32.gmra.mxu0 %v259
    %v810 = vpop.f32.mrf.mxu0
    %v811 = vadd.f32 %v715, %v810
    %812 = vmatmul.f32.gmra.mxu0 %v262
    %v813 = vpop.f32.mrf.mxu0
    %v814 = vadd.f32 %v718, %v813
    %815 = vmatmul.f32.gmra.mxu0 %v265
    %v816 = vpop.f32.mrf.mxu0
    %v817 = vadd.f32 %v721, %v816
    %818 = vdwg.mxu0
    %819 = vmatpush.msra.mxu0 %v529
    %820 = vmatpush.msra.mxu0 %v527
    %821 = vmatpush.msra.mxu0 %v525
    %822 = vmatpush.msra.mxu0 %v523
    %823 = vmatpush.msra.mxu0 %v521
    %824 = vmatpush.msra.mxu0 %v519
    %825 = vmatpush.msra.mxu0 %v517
    %826 = vmatpush.msra.mxu0 %v515
    %827 = vmatpush.msra.mxu0 %v513
    %828 = vmatpush.msra.mxu0 %v511
    %829 = vmatpush.msra.mxu0 %v509
    %830 = vmatpush.msra.mxu0 %v507
    %831 = vmatpush.msra.mxu0 %v505
    %832 = vmatpush.msra.mxu0 %v503
    %833 = vmatpush.msra.mxu0 %v501
    %834 = vmatpush.msra.mxu0 %v499
    %835 = vmatmul.f32.gmra.mxu0 %v407
    %v836 = vpop.f32.mrf.mxu0
    %v837 = vadd.f32 %v805, %v836
    %838 = vmatmul.f32.gmra.mxu0 %v410
    %v839 = vpop.f32.mrf.mxu0
    %v840 = vadd.f32 %v808, %v839
    %841 = vmatmul.f32.gmra.mxu0 %v413
    %v842 = vpop.f32.mrf.mxu0
    %v843 = vadd.f32 %v811, %v842
    %844 = vmatmul.f32.gmra.mxu0 %v416
    %v845 = vpop.f32.mrf.mxu0
    %v846 = vadd.f32 %v814, %v845
    %847 = vmatmul.f32.gmra.mxu0 %v419
    %v848 = vpop.f32.mrf.mxu0
    %v849 = vadd.f32 %v817, %v848
    %850 = vdwg.mxu0
    %s851 = scalar_lea.vmem [#allocation2], 1024
    %v852 = vld [vmem:[%s851] sm:$0xff]
    %v853 = vld [vmem:[%s851 + $0x8] sm:$0xff]
    %v854 = vld [vmem:[%s851 + $0x10] sm:$0xff]
    %v855 = vld [vmem:[%s851 + $0x18] sm:$0xff]
    %v856 = vld [vmem:[%s851 + $0x20] sm:$0xff]
    %v857 = vld [vmem:[%s851 + $0x28] sm:$0xff]
    %v858 = vld [vmem:[%s851 + $0x30] sm:$0xff]
    %v859 = vld [vmem:[%s851 + $0x38] sm:$0xff]
    %v860 = vld [vmem:[%s851 + $0x40] sm:$0xff]
    %v861 = vld [vmem:[%s851 + $0x48] sm:$0xff]
    %v862 = vld [vmem:[%s851 + $0x50] sm:$0xff]
    %v863 = vld [vmem:[%s851 + $0x58] sm:$0xff]
    %v864 = vld [vmem:[%s851 + $0x60] sm:$0xff]
    %v865 = vld [vmem:[%s851 + $0x68] sm:$0xff]
    %v866 = vld [vmem:[%s851 + $0x70] sm:$0xff]
    %v867 = vld [vmem:[%s851 + $0x78] sm:$0xff]
    %v868 = vld [vmem:[%s851 + $0x80] sm:$0xff]
    %v869 = vld [vmem:[%s851 + $0x88] sm:$0xff]
    %v870 = vld [vmem:[%s851 + $0x90] sm:$0xff]
    %v871 = vld [vmem:[%s851 + $0x98] sm:$0xff]
    %v872 = vld [vmem:[%s851 + $0xa0] sm:$0xff]
    %v873 = vld [vmem:[%s851 + $0xa8] sm:$0xff]
    %v874 = vld [vmem:[%s851 + $0xb0] sm:$0xff]
    %v875 = vld [vmem:[%s851 + $0xb8] sm:$0xff]
    %v876 = vld [vmem:[%s851 + $0xc0] sm:$0xff]
    %v877 = vld [vmem:[%s851 + $0xc8] sm:$0xff]
    %v878 = vld [vmem:[%s851 + $0xd0] sm:$0xff]
    %v879 = vld [vmem:[%s851 + $0xd8] sm:$0xff]
    %v880 = vld [vmem:[%s851 + $0xe0] sm:$0xff]
    %v881 = vld [vmem:[%s851 + $0xe8] sm:$0xff]
    %v882 = vld [vmem:[%s851 + $0xf0] sm:$0xff]
    %v883 = vld [vmem:[%s851 + $0xf8] sm:$0xff]
    %v884 = vld [vmem:[%s851 + $0x100] sm:$0xff]
    %v885 = vld [vmem:[%s851 + $0x108] sm:$0xff]
    %v886 = vld [vmem:[%s851 + $0x110] sm:$0xff]
    %v887 = vld [vmem:[%s851 + $0x118] sm:$0xff]
    %v888 = vld [vmem:[%s851 + $0x120] sm:$0xff]
    %v889 = vld [vmem:[%s851 + $0x128] sm:$0xff]
    %v890 = vld [vmem:[%s851 + $0x130] sm:$0xff]
    %v891 = vld [vmem:[%s851 + $0x138] sm:$0xff]
    %v892 = vld [vmem:[%s851 + $0x140] sm:$0xff]
    %v893 = vld [vmem:[%s851 + $0x148] sm:$0xff]
    %v894 = vld [vmem:[%s851 + $0x150] sm:$0xff]
    %v895 = vld [vmem:[%s851 + $0x158] sm:$0xff]
    %v896 = vld [vmem:[%s851 + $0x160] sm:$0xff]
    %v897 = vld [vmem:[%s851 + $0x168] sm:$0xff]
    %v898 = vld [vmem:[%s851 + $0x170] sm:$0xff]
    %v899 = vld [vmem:[%s851 + $0x178] sm:$0xff]
    %v900 = vld [vmem:[%s851 + $0x180] sm:$0xff]
    %v901 = vld [vmem:[%s851 + $0x188] sm:$0xff]
    %v902 = vld [vmem:[%s851 + $0x190] sm:$0xff]
    %v903 = vld [vmem:[%s851 + $0x198] sm:$0xff]
    %v904 = vld [vmem:[%s851 + $0x1a0] sm:$0xff]
    %v905 = vld [vmem:[%s851 + $0x1a8] sm:$0xff]
    %v906 = vld [vmem:[%s851 + $0x1b0] sm:$0xff]
    %v907 = vld [vmem:[%s851 + $0x1b8] sm:$0xff]
    %v908 = vld [vmem:[%s851 + $0x1c0] sm:$0xff]
    %v909 = vld [vmem:[%s851 + $0x1c8] sm:$0xff]
    %v910 = vld [vmem:[%s851 + $0x1d0] sm:$0xff]
    %v911 = vld [vmem:[%s851 + $0x1d8] sm:$0xff]
    %v912 = vld [vmem:[%s851 + $0x1e0] sm:$0xff]
    %v913 = vld [vmem:[%s851 + $0x1e8] sm:$0xff]
    %v914 = vld [vmem:[%s851 + $0x1f0] sm:$0xff]
    %v915 = vld [vmem:[%s851 + $0x1f8] sm:$0xff]
    %916 = vmatpush.msra.mxu0 %v882
    %917 = vmatpush.msra.mxu0 %v880
    %918 = vmatpush.msra.mxu0 %v878
    %919 = vmatpush.msra.mxu0 %v876
    %920 = vmatpush.msra.mxu0 %v874
    %921 = vmatpush.msra.mxu0 %v872
    %922 = vmatpush.msra.mxu0 %v870
    %923 = vmatpush.msra.mxu0 %v868
    %924 = vmatpush.msra.mxu0 %v866
    %925 = vmatpush.msra.mxu0 %v864
    %926 = vmatpush.msra.mxu0 %v862
    %927 = vmatpush.msra.mxu0 %v860
    %928 = vmatpush.msra.mxu0 %v858
    %929 = vmatpush.msra.mxu0 %v856
    %930 = vmatpush.msra.mxu0 %v854
    %931 = vmatpush.msra.mxu0 %v852
    %932 = vmatmul.f32.gmra.mxu0 %v283
    %v933 = vpop.f32.mrf.mxu0
    %v934 = vadd.f32 0.0, %v933
    %935 = vmatmul.f32.gmra.mxu0 %v286
    %v936 = vpop.f32.mrf.mxu0
    %v937 = vadd.f32 0.0, %v936
    %938 = vmatmul.f32.gmra.mxu0 %v289
    %v939 = vpop.f32.mrf.mxu0
    %v940 = vadd.f32 0.0, %v939
    %941 = vmatmul.f32.gmra.mxu0 %v292
    %v942 = vpop.f32.mrf.mxu0
    %v943 = vadd.f32 0.0, %v942
    %944 = vmatmul.f32.gmra.mxu0 %v295
    %v945 = vpop.f32.mrf.mxu0
    %v946 = vadd.f32 0.0, %v945
    %947 = vdwg.mxu0
    %948 = vmatpush.msra.mxu0 %v914
    %949 = vmatpush.msra.mxu0 %v912
    %950 = vmatpush.msra.mxu0 %v910
    %951 = vmatpush.msra.mxu0 %v908
    %952 = vmatpush.msra.mxu0 %v906
    %953 = vmatpush.msra.mxu0 %v904
    %954 = vmatpush.msra.mxu0 %v902
    %955 = vmatpush.msra.mxu0 %v900
    %956 = vmatpush.msra.mxu0 %v898
    %957 = vmatpush.msra.mxu0 %v896
    %958 = vmatpush.msra.mxu0 %v894
    %959 = vmatpush.msra.mxu0 %v892
    %960 = vmatpush.msra.mxu0 %v890
    %961 = vmatpush.msra.mxu0 %v888
    %962 = vmatpush.msra.mxu0 %v886
    %963 = vmatpush.msra.mxu0 %v884
    %964 = vmatmul.f32.gmra.mxu0 %v437
    %v965 = vpop.f32.mrf.mxu0
    %v966 = vadd.f32 %v934, %v965
    %967 = vmatmul.f32.gmra.mxu0 %v440
    %v968 = vpop.f32.mrf.mxu0
    %v969 = vadd.f32 %v937, %v968
    %970 = vmatmul.f32.gmra.mxu0 %v443
    %v971 = vpop.f32.mrf.mxu0
    %v972 = vadd.f32 %v940, %v971
    %973 = vmatmul.f32.gmra.mxu0 %v446
    %v974 = vpop.f32.mrf.mxu0
    %v975 = vadd.f32 %v943, %v974
    %976 = vmatmul.f32.gmra.mxu0 %v449
    %v977 = vpop.f32.mrf.mxu0
    %v978 = vadd.f32 %v946, %v977
    %979 = vdwg.mxu0
    %980 = vmatpush.msra.mxu0 %v883
    %981 = vmatpush.msra.mxu0 %v881
    %982 = vmatpush.msra.mxu0 %v879
    %983 = vmatpush.msra.mxu0 %v877
    %984 = vmatpush.msra.mxu0 %v875
    %985 = vmatpush.msra.mxu0 %v873
    %986 = vmatpush.msra.mxu0 %v871
    %987 = vmatpush.msra.mxu0 %v869
    %988 = vmatpush.msra.mxu0 %v867
    %989 = vmatpush.msra.mxu0 %v865
    %990 = vmatpush.msra.mxu0 %v863
    %991 = vmatpush.msra.mxu0 %v861
    %992 = vmatpush.msra.mxu0 %v859
    %993 = vmatpush.msra.mxu0 %v857
    %994 = vmatpush.msra.mxu0 %v855
    %995 = vmatpush.msra.mxu0 %v853
    %996 = vmatmul.f32.gmra.mxu0 %v283
    %v997 = vpop.f32.mrf.mxu0
    %v998 = vadd.f32 0.0, %v997
    %999 = vmatmul.f32.gmra.mxu0 %v286
    %v1000 = vpop.f32.mrf.mxu0
    %v1001 = vadd.f32 0.0, %v1000
    %1002 = vmatmul.f32.gmra.mxu0 %v289
    %v1003 = vpop.f32.mrf.mxu0
    %v1004 = vadd.f32 0.0, %v1003
    %1005 = vmatmul.f32.gmra.mxu0 %v292
    %v1006 = vpop.f32.mrf.mxu0
    %v1007 = vadd.f32 0.0, %v1006
    %1008 = vmatmul.f32.gmra.mxu0 %v295
    %v1009 = vpop.f32.mrf.mxu0
    %v1010 = vadd.f32 0.0, %v1009
    %1011 = vdwg.mxu0
    %1012 = vmatpush.msra.mxu0 %v915
    %1013 = vmatpush.msra.mxu0 %v913
    %1014 = vmatpush.msra.mxu0 %v911
    %1015 = vmatpush.msra.mxu0 %v909
    %1016 = vmatpush.msra.mxu0 %v907
    %1017 = vmatpush.msra.mxu0 %v905
    %1018 = vmatpush.msra.mxu0 %v903
    %1019 = vmatpush.msra.mxu0 %v901
    %1020 = vmatpush.msra.mxu0 %v899
    %1021 = vmatpush.msra.mxu0 %v897
    %1022 = vmatpush.msra.mxu0 %v895
    %1023 = vmatpush.msra.mxu0 %v893
    %1024 = vmatpush.msra.mxu0 %v891
    %1025 = vmatpush.msra.mxu0 %v889
    %1026 = vmatpush.msra.mxu0 %v887
    %1027 = vmatpush.msra.mxu0 %v885
    %1028 = vmatmul.f32.gmra.mxu0 %v437
    %v1029 = vpop.f32.mrf.mxu0
    %v1030 = vadd.f32 %v998, %v1029
    %1031 = vmatmul.f32.gmra.mxu0 %v440
    %v1032 = vpop.f32.mrf.mxu0
    %v1033 = vadd.f32 %v1001, %v1032
    %1034 = vmatmul.f32.gmra.mxu0 %v443
    %v1035 = vpop.f32.mrf.mxu0
    %v1036 = vadd.f32 %v1004, %v1035
    %1037 = vmatmul.f32.gmra.mxu0 %v446
    %v1038 = vpop.f32.mrf.mxu0
    %v1039 = vadd.f32 %v1007, %v1038
    %1040 = vmatmul.f32.gmra.mxu0 %v449
    %v1041 = vpop.f32.mrf.mxu0
    %v1042 = vadd.f32 %v1010, %v1041
    %1043 = vdwg.mxu0
    %v1044 = vadd.f32 %v773, %v966
    %v1045 = vadd.f32 %v837, %v1030
    %v1046 = vadd.f32 %v776, %v969
    %v1047 = vadd.f32 %v840, %v1033
    %v1048 = vadd.f32 %v779, %v972
    %v1049 = vadd.f32 %v843, %v1036
    %v1050 = vadd.f32 %v782, %v975
    %v1051 = vadd.f32 %v846, %v1039
    %v1052 = vadd.f32 %v785, %v978
    %v1053 = vadd.f32 %v849, %v1042
    %s1054 = scalar_lea.vmem [#allocation2], 1536
    %v1055 = vld [vmem:[%s1054] sm:$0xff]
    %v1056 = vld [vmem:[%s1054 + $0x8] sm:$0xff]
    %v1057 = vld [vmem:[%s1054 + $0x10] sm:$0xff]
    %v1058 = vld [vmem:[%s1054 + $0x18] sm:$0xff]
    %v1059 = vld [vmem:[%s1054 + $0x20] sm:$0xff]
    %v1060 = vld [vmem:[%s1054 + $0x28] sm:$0xff]
    %v1061 = vld [vmem:[%s1054 + $0x30] sm:$0xff]
    %v1062 = vld [vmem:[%s1054 + $0x38] sm:$0xff]
    %v1063 = vld [vmem:[%s1054 + $0x40] sm:$0xff]
    %v1064 = vld [vmem:[%s1054 + $0x48] sm:$0xff]
    %v1065 = vld [vmem:[%s1054 + $0x50] sm:$0xff]
    %v1066 = vld [vmem:[%s1054 + $0x58] sm:$0xff]
    %v1067 = vld [vmem:[%s1054 + $0x60] sm:$0xff]
    %v1068 = vld [vmem:[%s1054 + $0x68] sm:$0xff]
    %v1069 = vld [vmem:[%s1054 + $0x70] sm:$0xff]
    %v1070 = vld [vmem:[%s1054 + $0x78] sm:$0xff]
    %v1071 = vld [vmem:[%s1054 + $0x80] sm:$0xff]
    %v1072 = vld [vmem:[%s1054 + $0x88] sm:$0xff]
    %v1073 = vld [vmem:[%s1054 + $0x90] sm:$0xff]
    %v1074 = vld [vmem:[%s1054 + $0x98] sm:$0xff]
    %v1075 = vld [vmem:[%s1054 + $0xa0] sm:$0xff]
    %v1076 = vld [vmem:[%s1054 + $0xa8] sm:$0xff]
    %v1077 = vld [vmem:[%s1054 + $0xb0] sm:$0xff]
    %v1078 = vld [vmem:[%s1054 + $0xb8] sm:$0xff]
    %v1079 = vld [vmem:[%s1054 + $0xc0] sm:$0xff]
    %v1080 = vld [vmem:[%s1054 + $0xc8] sm:$0xff]
    %v1081 = vld [vmem:[%s1054 + $0xd0] sm:$0xff]
    %v1082 = vld [vmem:[%s1054 + $0xd8] sm:$0xff]
    %v1083 = vld [vmem:[%s1054 + $0xe0] sm:$0xff]
    %v1084 = vld [vmem:[%s1054 + $0xe8] sm:$0xff]
    %v1085 = vld [vmem:[%s1054 + $0xf0] sm:$0xff]
    %v1086 = vld [vmem:[%s1054 + $0xf8] sm:$0xff]
    %v1087 = vld [vmem:[%s1054 + $0x100] sm:$0xff]
    %v1088 = vld [vmem:[%s1054 + $0x108] sm:$0xff]
    %v1089 = vld [vmem:[%s1054 + $0x110] sm:$0xff]
    %v1090 = vld [vmem:[%s1054 + $0x118] sm:$0xff]
    %v1091 = vld [vmem:[%s1054 + $0x120] sm:$0xff]
    %v1092 = vld [vmem:[%s1054 + $0x128] sm:$0xff]
    %v1093 = vld [vmem:[%s1054 + $0x130] sm:$0xff]
    %v1094 = vld [vmem:[%s1054 + $0x138] sm:$0xff]
    %v1095 = vld [vmem:[%s1054 + $0x140] sm:$0xff]
    %v1096 = vld [vmem:[%s1054 + $0x148] sm:$0xff]
    %v1097 = vld [vmem:[%s1054 + $0x150] sm:$0xff]
    %v1098 = vld [vmem:[%s1054 + $0x158] sm:$0xff]
    %v1099 = vld [vmem:[%s1054 + $0x160] sm:$0xff]
    %v1100 = vld [vmem:[%s1054 + $0x168] sm:$0xff]
    %v1101 = vld [vmem:[%s1054 + $0x170] sm:$0xff]
    %v1102 = vld [vmem:[%s1054 + $0x178] sm:$0xff]
    %v1103 = vld [vmem:[%s1054 + $0x180] sm:$0xff]
    %v1104 = vld [vmem:[%s1054 + $0x188] sm:$0xff]
    %v1105 = vld [vmem:[%s1054 + $0x190] sm:$0xff]
    %v1106 = vld [vmem:[%s1054 + $0x198] sm:$0xff]
    %v1107 = vld [vmem:[%s1054 + $0x1a0] sm:$0xff]
    %v1108 = vld [vmem:[%s1054 + $0x1a8] sm:$0xff]
    %v1109 = vld [vmem:[%s1054 + $0x1b0] sm:$0xff]
    %v1110 = vld [vmem:[%s1054 + $0x1b8] sm:$0xff]
    %v1111 = vld [vmem:[%s1054 + $0x1c0] sm:$0xff]
    %v1112 = vld [vmem:[%s1054 + $0x1c8] sm:$0xff]
    %v1113 = vld [vmem:[%s1054 + $0x1d0] sm:$0xff]
    %v1114 = vld [vmem:[%s1054 + $0x1d8] sm:$0xff]
    %v1115 = vld [vmem:[%s1054 + $0x1e0] sm:$0xff]
    %v1116 = vld [vmem:[%s1054 + $0x1e8] sm:$0xff]
    %v1117 = vld [vmem:[%s1054 + $0x1f0] sm:$0xff]
    %v1118 = vld [vmem:[%s1054 + $0x1f8] sm:$0xff]
    %1119 = vmatpush.msra.mxu0 %v1085
    %1120 = vmatpush.msra.mxu0 %v1083
    %1121 = vmatpush.msra.mxu0 %v1081
    %1122 = vmatpush.msra.mxu0 %v1079
    %1123 = vmatpush.msra.mxu0 %v1077
    %1124 = vmatpush.msra.mxu0 %v1075
    %1125 = vmatpush.msra.mxu0 %v1073
    %1126 = vmatpush.msra.mxu0 %v1071
    %1127 = vmatpush.msra.mxu0 %v1069
    %1128 = vmatpush.msra.mxu0 %v1067
    %1129 = vmatpush.msra.mxu0 %v1065
    %1130 = vmatpush.msra.mxu0 %v1063
    %1131 = vmatpush.msra.mxu0 %v1061
    %1132 = vmatpush.msra.mxu0 %v1059
    %1133 = vmatpush.msra.mxu0 %v1057
    %1134 = vmatpush.msra.mxu0 %v1055
    %1135 = vmatmul.f32.gmra.mxu0 %v298
    %v1136 = vpop.f32.mrf.mxu0
    %v1137 = vadd.f32 0.0, %v1136
    %1138 = vmatmul.f32.gmra.mxu0 %v301
    %v1139 = vpop.f32.mrf.mxu0
    %v1140 = vadd.f32 0.0, %v1139
    %1141 = vmatmul.f32.gmra.mxu0 %v304
    %v1142 = vpop.f32.mrf.mxu0
    %v1143 = vadd.f32 0.0, %v1142
    %1144 = vmatmul.f32.gmra.mxu0 %v307
    %v1145 = vpop.f32.mrf.mxu0
    %v1146 = vadd.f32 0.0, %v1145
    %1147 = vmatmul.f32.gmra.mxu0 %v310
    %v1148 = vpop.f32.mrf.mxu0
    %v1149 = vadd.f32 0.0, %v1148
    %1150 = vdwg.mxu0
    %1151 = vmatpush.msra.mxu0 %v1117
    %1152 = vmatpush.msra.mxu0 %v1115
    %1153 = vmatpush.msra.mxu0 %v1113
    %1154 = vmatpush.msra.mxu0 %v1111
    %1155 = vmatpush.msra.mxu0 %v1109
    %1156 = vmatpush.msra.mxu0 %v1107
    %1157 = vmatpush.msra.mxu0 %v1105
    %1158 = vmatpush.msra.mxu0 %v1103
    %1159 = vmatpush.msra.mxu0 %v1101
    %1160 = vmatpush.msra.mxu0 %v1099
    %1161 = vmatpush.msra.mxu0 %v1097
    %1162 = vmatpush.msra.mxu0 %v1095
    %1163 = vmatpush.msra.mxu0 %v1093
    %1164 = vmatpush.msra.mxu0 %v1091
    %1165 = vmatpush.msra.mxu0 %v1089
    %1166 = vmatpush.msra.mxu0 %v1087
    %1167 = vmatmul.f32.gmra.mxu0 %v452
    %v1168 = vpop.f32.mrf.mxu0
    %v1169 = vadd.f32 %v1137, %v1168
    %1170 = vmatmul.f32.gmra.mxu0 %v455
    %v1171 = vpop.f32.mrf.mxu0
    %v1172 = vadd.f32 %v1140, %v1171
    %1173 = vmatmul.f32.gmra.mxu0 %v458
    %v1174 = vpop.f32.mrf.mxu0
    %v1175 = vadd.f32 %v1143, %v1174
    %1176 = vmatmul.f32.gmra.mxu0 %v461
    %v1177 = vpop.f32.mrf.mxu0
    %v1178 = vadd.f32 %v1146, %v1177
    %1179 = vmatmul.f32.gmra.mxu0 %v464
    %v1180 = vpop.f32.mrf.mxu0
    %v1181 = vadd.f32 %v1149, %v1180
    %1182 = vdwg.mxu0
    %1183 = vmatpush.msra.mxu0 %v1086
    %1184 = vmatpush.msra.mxu0 %v1084
    %1185 = vmatpush.msra.mxu0 %v1082
    %1186 = vmatpush.msra.mxu0 %v1080
    %1187 = vmatpush.msra.mxu0 %v1078
    %1188 = vmatpush.msra.mxu0 %v1076
    %1189 = vmatpush.msra.mxu0 %v1074
    %1190 = vmatpush.msra.mxu0 %v1072
    %1191 = vmatpush.msra.mxu0 %v1070
    %1192 = vmatpush.msra.mxu0 %v1068
    %1193 = vmatpush.msra.mxu0 %v1066
    %1194 = vmatpush.msra.mxu0 %v1064
    %1195 = vmatpush.msra.mxu0 %v1062
    %1196 = vmatpush.msra.mxu0 %v1060
    %1197 = vmatpush.msra.mxu0 %v1058
    %1198 = vmatpush.msra.mxu0 %v1056
    %1199 = vmatmul.f32.gmra.mxu0 %v298
    %v1200 = vpop.f32.mrf.mxu0
    %v1201 = vadd.f32 0.0, %v1200
    %1202 = vmatmul.f32.gmra.mxu0 %v301
    %v1203 = vpop.f32.mrf.mxu0
    %v1204 = vadd.f32 0.0, %v1203
    %1205 = vmatmul.f32.gmra.mxu0 %v304
    %v1206 = vpop.f32.mrf.mxu0
    %v1207 = vadd.f32 0.0, %v1206
    %1208 = vmatmul.f32.gmra.mxu0 %v307
    %v1209 = vpop.f32.mrf.mxu0
    %v1210 = vadd.f32 0.0, %v1209
    %1211 = vmatmul.f32.gmra.mxu0 %v310
    %v1212 = vpop.f32.mrf.mxu0
    %v1213 = vadd.f32 0.0, %v1212
    %1214 = vdwg.mxu0
    %1215 = vmatpush.msra.mxu0 %v1118
    %1216 = vmatpush.msra.mxu0 %v1116
    %1217 = vmatpush.msra.mxu0 %v1114
    %1218 = vmatpush.msra.mxu0 %v1112
    %1219 = vmatpush.msra.mxu0 %v1110
    %1220 = vmatpush.msra.mxu0 %v1108
    %1221 = vmatpush.msra.mxu0 %v1106
    %1222 = vmatpush.msra.mxu0 %v1104
    %1223 = vmatpush.msra.mxu0 %v1102
    %1224 = vmatpush.msra.mxu0 %v1100
    %1225 = vmatpush.msra.mxu0 %v1098
    %1226 = vmatpush.msra.mxu0 %v1096
    %1227 = vmatpush.msra.mxu0 %v1094
    %1228 = vmatpush.msra.mxu0 %v1092
    %1229 = vmatpush.msra.mxu0 %v1090
    %1230 = vmatpush.msra.mxu0 %v1088
    %1231 = vmatmul.f32.gmra.mxu0 %v452
    %v1232 = vpop.f32.mrf.mxu0
    %v1233 = vadd.f32 %v1201, %v1232
    %1234 = vmatmul.f32.gmra.mxu0 %v455
    %v1235 = vpop.f32.mrf.mxu0
    %v1236 = vadd.f32 %v1204, %v1235
    %1237 = vmatmul.f32.gmra.mxu0 %v458
    %v1238 = vpop.f32.mrf.mxu0
    %v1239 = vadd.f32 %v1207, %v1238
    %1240 = vmatmul.f32.gmra.mxu0 %v461
    %v1241 = vpop.f32.mrf.mxu0
    %v1242 = vadd.f32 %v1210, %v1241
    %1243 = vmatmul.f32.gmra.mxu0 %v464
    %v1244 = vpop.f32.mrf.mxu0
    %v1245 = vadd.f32 %v1213, %v1244
    %1246 = vdwg.mxu0
    %v1247 = vadd.f32 %v1044, %v1169
    %v1248 = vadd.f32 %v1045, %v1233
    %v1249 = vadd.f32 %v1046, %v1172
    %v1250 = vadd.f32 %v1047, %v1236
    %v1251 = vadd.f32 %v1048, %v1175
    %v1252 = vadd.f32 %v1049, %v1239
    %v1253 = vadd.f32 %v1050, %v1178
    %v1254 = vadd.f32 %v1051, %v1242
    %v1255 = vadd.f32 %v1052, %v1181
    %v1256 = vadd.f32 %v1053, %v1245
    %v1257 = vld [vmem:[%s4] sm:$0x3]
    %v1259 = vperm.slane %v1257, 0
    %v1260 = vperm.slane %v1257, 1
    %v1263 = vadd.f32 %v1247, %v1259
    %v1264 = vadd.f32 %v1248, %v1260
    %v1265 = vadd.f32 %v1249, %v1259
    %v1266 = vadd.f32 %v1250, %v1260
    %v1267 = vadd.f32 %v1251, %v1259
    %v1268 = vadd.f32 %v1252, %v1260
    %v1269 = vadd.f32 %v1253, %v1259
    %v1270 = vadd.f32 %v1254, %v1260
    %v1271 = vadd.f32 %v1255, %v1259
    %v1272 = vadd.f32 %v1256, %v1260
    %v1273 = vmul.f32 %v1263, %v1263
    %v1274 = vmul.f32 %v1264, %v1264
    %v1275 = vmul.f32 %v1265, %v1265
    %v1276 = vmul.f32 %v1266, %v1266
    %v1277 = vmul.f32 %v1267, %v1267
    %v1278 = vmul.f32 %v1268, %v1268
    %v1279 = vmul.f32 %v1269, %v1269
    %v1280 = vmul.f32 %v1270, %v1270
    %v1281 = vmul.f32 %v1271, %v1271
    %v1282 = vmul.f32 %v1272, %v1272
    %v1283 = vld [vmem:[%s5] sm:$0xff]
    %v1284 = vld [vmem:[%s5 + $0x8] sm:$0xff]
    %v1285 = vld [vmem:[%s5 + $0x10] sm:$0xff]
    %v1286 = vld [vmem:[%s5 + $0x18] sm:$0xff]
    %v1287 = vld [vmem:[%s5 + $0x20] sm:$0xff]
    %v1288 = vld [vmem:[%s5 + $0x28] sm:$0xff]
    %v1289 = vld [vmem:[%s5 + $0x30] sm:$0xff]
    %v1290 = vld [vmem:[%s5 + $0x38] sm:$0xff]
    %v1291 = vld [vmem:[%s5 + $0x40] sm:$0xff]
    %v1292 = vld [vmem:[%s5 + $0x48] sm:$0xff]
    %v1293 = vld [vmem:[%s5 + $0x50] sm:$0xff]
    %v1294 = vld [vmem:[%s5 + $0x58] sm:$0xff]
    %v1295 = vld [vmem:[%s5 + $0x60] sm:$0xff]
    %v1296 = vld [vmem:[%s5 + $0x68] sm:$0xff]
    %v1297 = vld [vmem:[%s5 + $0x70] sm:$0xff]
    %v1298 = vld [vmem:[%s5 + $0x78] sm:$0xff]
    %v1299 = vld [vmem:[%s5 + $0x80] sm:$0xff]
    %v1300 = vld [vmem:[%s5 + $0x88] sm:$0xff]
    %v1301 = vld [vmem:[%s5 + $0x90] sm:$0xff]
    %v1302 = vld [vmem:[%s5 + $0x98] sm:$0xff]
    %v1303 = vld [vmem:[%s5 + $0xa0] sm:$0xff]
    %v1304 = vld [vmem:[%s5 + $0xa8] sm:$0xff]
    %v1305 = vld [vmem:[%s5 + $0xb0] sm:$0xff]
    %v1306 = vld [vmem:[%s5 + $0xb8] sm:$0xff]
    %v1307 = vld [vmem:[%s5 + $0xc0] sm:$0xff]
    %v1308 = vld [vmem:[%s5 + $0xc8] sm:$0xff]
    %v1309 = vld [vmem:[%s5 + $0xd0] sm:$0xff]
    %v1310 = vld [vmem:[%s5 + $0xd8] sm:$0xff]
    %v1311 = vld [vmem:[%s5 + $0xe0] sm:$0xff]
    %v1312 = vld [vmem:[%s5 + $0xe8] sm:$0xff]
    %v1313 = vld [vmem:[%s5 + $0xf0] sm:$0xff]
    %v1314 = vld [vmem:[%s5 + $0xf8] sm:$0xff]
    %v1315 = vld [vmem:[%s5 + $0x100] sm:$0xff]
    %v1316 = vld [vmem:[%s5 + $0x108] sm:$0xff]
    %v1317 = vld [vmem:[%s5 + $0x110] sm:$0xff]
    %v1318 = vld [vmem:[%s5 + $0x118] sm:$0xff]
    %v1319 = vld [vmem:[%s5 + $0x120] sm:$0xff]
    %v1320 = vld [vmem:[%s5 + $0x128] sm:$0xff]
    %v1321 = vld [vmem:[%s5 + $0x130] sm:$0xff]
    %v1322 = vld [vmem:[%s5 + $0x138] sm:$0xff]
    %v1323 = vld [vmem:[%s5 + $0x140] sm:$0xff]
    %v1324 = vld [vmem:[%s5 + $0x148] sm:$0xff]
    %v1325 = vld [vmem:[%s5 + $0x150] sm:$0xff]
    %v1326 = vld [vmem:[%s5 + $0x158] sm:$0xff]
    %v1327 = vld [vmem:[%s5 + $0x160] sm:$0xff]
    %v1328 = vld [vmem:[%s5 + $0x168] sm:$0xff]
    %v1329 = vld [vmem:[%s5 + $0x170] sm:$0xff]
    %v1330 = vld [vmem:[%s5 + $0x178] sm:$0xff]
    %v1331 = vld [vmem:[%s5 + $0x180] sm:$0xff]
    %v1332 = vld [vmem:[%s5 + $0x188] sm:$0xff]
    %v1333 = vld [vmem:[%s5 + $0x190] sm:$0xff]
    %v1334 = vld [vmem:[%s5 + $0x198] sm:$0xff]
    %v1335 = vld [vmem:[%s5 + $0x1a0] sm:$0xff]
    %v1336 = vld [vmem:[%s5 + $0x1a8] sm:$0xff]
    %v1337 = vld [vmem:[%s5 + $0x1b0] sm:$0xff]
    %v1338 = vld [vmem:[%s5 + $0x1b8] sm:$0xff]
    %v1339 = vld [vmem:[%s5 + $0x1c0] sm:$0xff]
    %v1340 = vld [vmem:[%s5 + $0x1c8] sm:$0xff]
    %v1341 = vld [vmem:[%s5 + $0x1d0] sm:$0xff]
    %v1342 = vld [vmem:[%s5 + $0x1d8] sm:$0xff]
    %v1343 = vld [vmem:[%s5 + $0x1e0] sm:$0xff]
    %v1344 = vld [vmem:[%s5 + $0x1e8] sm:$0xff]
    %v1345 = vld [vmem:[%s5 + $0x1f0] sm:$0xff]
    %v1346 = vld [vmem:[%s5 + $0x1f8] sm:$0xff]
    %v1347 = vld [vmem:[%s5 + $0x200] sm:$0xff]
    %v1348 = vld [vmem:[%s5 + $0x208] sm:$0xff]
    %v1349 = vld [vmem:[%s5 + $0x210] sm:$0xff]
    %v1350 = vld [vmem:[%s5 + $0x218] sm:$0xff]
    %v1351 = vld [vmem:[%s5 + $0x220] sm:$0xff]
    %v1352 = vld [vmem:[%s5 + $0x228] sm:$0xff]
    %v1353 = vld [vmem:[%s5 + $0x230] sm:$0xff]
    %v1354 = vld [vmem:[%s5 + $0x238] sm:$0xff]
    %v1355 = vld [vmem:[%s5 + $0x240] sm:$0xff]
    %v1356 = vld [vmem:[%s5 + $0x248] sm:$0xff]
    %v1357 = vld [vmem:[%s5 + $0x250] sm:$0xff]
    %v1358 = vld [vmem:[%s5 + $0x258] sm:$0xff]
    %v1359 = vld [vmem:[%s5 + $0x260] sm:$0xff]
    %v1360 = vld [vmem:[%s5 + $0x268] sm:$0xff]
    %v1361 = vld [vmem:[%s5 + $0x270] sm:$0xff]
    %v1362 = vld [vmem:[%s5 + $0x278] sm:$0xff]
    %v1363 = vld [vmem:[%s5 + $0x280] sm:$0xff]
    %v1364 = vld [vmem:[%s5 + $0x288] sm:$0xff]
    %v1365 = vld [vmem:[%s5 + $0x290] sm:$0xff]
    %v1366 = vld [vmem:[%s5 + $0x298] sm:$0xff]
    %v1367 = vld [vmem:[%s5 + $0x2a0] sm:$0xff]
    %v1368 = vld [vmem:[%s5 + $0x2a8] sm:$0xff]
    %v1369 = vld [vmem:[%s5 + $0x2b0] sm:$0xff]
    %v1370 = vld [vmem:[%s5 + $0x2b8] sm:$0xff]
    %v1371 = vld [vmem:[%s5 + $0x2c0] sm:$0xff]
    %v1372 = vld [vmem:[%s5 + $0x2c8] sm:$0xff]
    %v1373 = vld [vmem:[%s5 + $0x2d0] sm:$0xff]
    %v1374 = vld [vmem:[%s5 + $0x2d8] sm:$0xff]
    %v1375 = vld [vmem:[%s5 + $0x2e0] sm:$0xff]
    %v1376 = vld [vmem:[%s5 + $0x2e8] sm:$0xff]
    %v1377 = vld [vmem:[%s5 + $0x2f0] sm:$0xff]
    %v1378 = vld [vmem:[%s5 + $0x2f8] sm:$0xff]
    %v1379 = vld [vmem:[%s5 + $0x300] sm:$0xff]
    %v1380 = vld [vmem:[%s5 + $0x308] sm:$0xff]
    %v1381 = vld [vmem:[%s5 + $0x310] sm:$0xff]
    %v1382 = vld [vmem:[%s5 + $0x318] sm:$0xff]
    %v1383 = vld [vmem:[%s5 + $0x320] sm:$0xff]
    %v1384 = vld [vmem:[%s5 + $0x328] sm:$0xff]
    %v1385 = vld [vmem:[%s5 + $0x330] sm:$0xff]
    %v1386 = vld [vmem:[%s5 + $0x338] sm:$0xff]
    %v1387 = vld [vmem:[%s5 + $0x340] sm:$0xff]
    %v1388 = vld [vmem:[%s5 + $0x348] sm:$0xff]
    %v1389 = vld [vmem:[%s5 + $0x350] sm:$0xff]
    %v1390 = vld [vmem:[%s5 + $0x358] sm:$0xff]
    %v1391 = vld [vmem:[%s5 + $0x360] sm:$0xff]
    %v1392 = vld [vmem:[%s5 + $0x368] sm:$0xff]
    %v1393 = vld [vmem:[%s5 + $0x370] sm:$0xff]
    %v1394 = vld [vmem:[%s5 + $0x378] sm:$0xff]
    %v1395 = vld [vmem:[%s5 + $0x380] sm:$0xff]
    %v1396 = vld [vmem:[%s5 + $0x388] sm:$0xff]
    %v1397 = vld [vmem:[%s5 + $0x390] sm:$0xff]
    %v1398 = vld [vmem:[%s5 + $0x398] sm:$0xff]
    %v1399 = vld [vmem:[%s5 + $0x3a0] sm:$0xff]
    %v1400 = vld [vmem:[%s5 + $0x3a8] sm:$0xff]
    %v1401 = vld [vmem:[%s5 + $0x3b0] sm:$0xff]
    %v1402 = vld [vmem:[%s5 + $0x3b8] sm:$0xff]
    %v1403 = vld [vmem:[%s5 + $0x3c0] sm:$0xff]
    %v1404 = vld [vmem:[%s5 + $0x3c8] sm:$0xff]
    %v1405 = vld [vmem:[%s5 + $0x3d0] sm:$0xff]
    %v1406 = vld [vmem:[%s5 + $0x3d8] sm:$0xff]
    %v1407 = vld [vmem:[%s5 + $0x3e0] sm:$0xff]
    %v1408 = vld [vmem:[%s5 + $0x3e8] sm:$0xff]
    %v1409 = vld [vmem:[%s5 + $0x3f0] sm:$0xff]
    %v1410 = vld [vmem:[%s5 + $0x3f8] sm:$0xff]
    %s1411 = scalar_lea.vmem %s5, 1024
    %v1412 = vld [vmem:[%s1411] sm:$0xff]
    %v1413 = vld [vmem:[%s1411 + $0x8] sm:$0xff]
    %v1414 = vld [vmem:[%s1411 + $0x10] sm:$0xff]
    %v1415 = vld [vmem:[%s1411 + $0x18] sm:$0xff]
    %v1416 = vld [vmem:[%s1411 + $0x20] sm:$0xff]
    %v1417 = vld [vmem:[%s1411 + $0x28] sm:$0xff]
    %v1418 = vld [vmem:[%s1411 + $0x30] sm:$0xff]
    %v1419 = vld [vmem:[%s1411 + $0x38] sm:$0xff]
    %v1420 = vld [vmem:[%s1411 + $0x40] sm:$0xff]
    %v1421 = vld [vmem:[%s1411 + $0x48] sm:$0xff]
    %v1422 = vld [vmem:[%s1411 + $0x50] sm:$0xff]
    %v1423 = vld [vmem:[%s1411 + $0x58] sm:$0xff]
    %v1424 = vld [vmem:[%s1411 + $0x60] sm:$0xff]
    %v1425 = vld [vmem:[%s1411 + $0x68] sm:$0xff]
    %v1426 = vld [vmem:[%s1411 + $0x70] sm:$0xff]
    %v1427 = vld [vmem:[%s1411 + $0x78] sm:$0xff]
    %v1428 = vld [vmem:[%s1411 + $0x80] sm:$0xff]
    %v1429 = vld [vmem:[%s1411 + $0x88] sm:$0xff]
    %v1430 = vld [vmem:[%s1411 + $0x90] sm:$0xff]
    %v1431 = vld [vmem:[%s1411 + $0x98] sm:$0xff]
    %v1432 = vld [vmem:[%s1411 + $0xa0] sm:$0xff]
    %v1433 = vld [vmem:[%s1411 + $0xa8] sm:$0xff]
    %v1434 = vld [vmem:[%s1411 + $0xb0] sm:$0xff]
    %v1435 = vld [vmem:[%s1411 + $0xb8] sm:$0xff]
    %v1436 = vld [vmem:[%s1411 + $0xc0] sm:$0xff]
    %v1437 = vld [vmem:[%s1411 + $0xc8] sm:$0xff]
    %v1438 = vld [vmem:[%s1411 + $0xd0] sm:$0xff]
    %v1439 = vld [vmem:[%s1411 + $0xd8] sm:$0xff]
    %v1440 = vld [vmem:[%s1411 + $0xe0] sm:$0xff]
    %v1441 = vld [vmem:[%s1411 + $0xe8] sm:$0xff]
    %v1442 = vld [vmem:[%s1411 + $0xf0] sm:$0xff]
    %v1443 = vld [vmem:[%s1411 + $0xf8] sm:$0xff]
    %v1444 = vld [vmem:[%s1411 + $0x100] sm:$0xff]
    %v1445 = vld [vmem:[%s1411 + $0x108] sm:$0xff]
    %v1446 = vld [vmem:[%s1411 + $0x110] sm:$0xff]
    %v1447 = vld [vmem:[%s1411 + $0x118] sm:$0xff]
    %v1448 = vld [vmem:[%s1411 + $0x120] sm:$0xff]
    %v1449 = vld [vmem:[%s1411 + $0x128] sm:$0xff]
    %v1450 = vld [vmem:[%s1411 + $0x130] sm:$0xff]
    %v1451 = vld [vmem:[%s1411 + $0x138] sm:$0xff]
    %v1452 = vld [vmem:[%s1411 + $0x140] sm:$0xff]
    %v1453 = vld [vmem:[%s1411 + $0x148] sm:$0xff]
    %v1454 = vld [vmem:[%s1411 + $0x150] sm:$0xff]
    %v1455 = vld [vmem:[%s1411 + $0x158] sm:$0xff]
    %v1456 = vld [vmem:[%s1411 + $0x160] sm:$0xff]
    %v1457 = vld [vmem:[%s1411 + $0x168] sm:$0xff]
    %v1458 = vld [vmem:[%s1411 + $0x170] sm:$0xff]
    %v1459 = vld [vmem:[%s1411 + $0x178] sm:$0xff]
    %v1460 = vld [vmem:[%s1411 + $0x180] sm:$0xff]
    %v1461 = vld [vmem:[%s1411 + $0x188] sm:$0xff]
    %v1462 = vld [vmem:[%s1411 + $0x190] sm:$0xff]
    %v1463 = vld [vmem:[%s1411 + $0x198] sm:$0xff]
    %v1464 = vld [vmem:[%s1411 + $0x1a0] sm:$0xff]
    %v1465 = vld [vmem:[%s1411 + $0x1a8] sm:$0xff]
    %v1466 = vld [vmem:[%s1411 + $0x1b0] sm:$0xff]
    %v1467 = vld [vmem:[%s1411 + $0x1b8] sm:$0xff]
    %v1468 = vld [vmem:[%s1411 + $0x1c0] sm:$0xff]
    %v1469 = vld [vmem:[%s1411 + $0x1c8] sm:$0xff]
    %v1470 = vld [vmem:[%s1411 + $0x1d0] sm:$0xff]
    %v1471 = vld [vmem:[%s1411 + $0x1d8] sm:$0xff]
    %v1472 = vld [vmem:[%s1411 + $0x1e0] sm:$0xff]
    %v1473 = vld [vmem:[%s1411 + $0x1e8] sm:$0xff]
    %v1474 = vld [vmem:[%s1411 + $0x1f0] sm:$0xff]
    %v1475 = vld [vmem:[%s1411 + $0x1f8] sm:$0xff]
    %v1476 = vld [vmem:[%s1411 + $0x200] sm:$0xff]
    %v1477 = vld [vmem:[%s1411 + $0x208] sm:$0xff]
    %v1478 = vld [vmem:[%s1411 + $0x210] sm:$0xff]
    %v1479 = vld [vmem:[%s1411 + $0x218] sm:$0xff]
    %v1480 = vld [vmem:[%s1411 + $0x220] sm:$0xff]
    %v1481 = vld [vmem:[%s1411 + $0x228] sm:$0xff]
    %v1482 = vld [vmem:[%s1411 + $0x230] sm:$0xff]
    %v1483 = vld [vmem:[%s1411 + $0x238] sm:$0xff]
    %v1484 = vld [vmem:[%s1411 + $0x240] sm:$0xff]
    %v1485 = vld [vmem:[%s1411 + $0x248] sm:$0xff]
    %v1486 = vld [vmem:[%s1411 + $0x250] sm:$0xff]
    %v1487 = vld [vmem:[%s1411 + $0x258] sm:$0xff]
    %v1488 = vld [vmem:[%s1411 + $0x260] sm:$0xff]
    %v1489 = vld [vmem:[%s1411 + $0x268] sm:$0xff]
    %v1490 = vld [vmem:[%s1411 + $0x270] sm:$0xff]
    %v1491 = vld [vmem:[%s1411 + $0x278] sm:$0xff]
    %v1492 = vld [vmem:[%s1411 + $0x280] sm:$0xff]
    %v1493 = vld [vmem:[%s1411 + $0x288] sm:$0xff]
    %v1494 = vld [vmem:[%s1411 + $0x290] sm:$0xff]
    %v1495 = vld [vmem:[%s1411 + $0x298] sm:$0xff]
    %v1496 = vld [vmem:[%s1411 + $0x2a0] sm:$0xff]
    %v1497 = vld [vmem:[%s1411 + $0x2a8] sm:$0xff]
    %v1498 = vld [vmem:[%s1411 + $0x2b0] sm:$0xff]
    %v1499 = vld [vmem:[%s1411 + $0x2b8] sm:$0xff]
    %v1500 = vld [vmem:[%s1411 + $0x2c0] sm:$0xff]
    %v1501 = vld [vmem:[%s1411 + $0x2c8] sm:$0xff]
    %v1502 = vld [vmem:[%s1411 + $0x2d0] sm:$0xff]
    %v1503 = vld [vmem:[%s1411 + $0x2d8] sm:$0xff]
    %v1504 = vld [vmem:[%s1411 + $0x2e0] sm:$0xff]
    %v1505 = vld [vmem:[%s1411 + $0x2e8] sm:$0xff]
    %v1506 = vld [vmem:[%s1411 + $0x2f0] sm:$0xff]
    %v1507 = vld [vmem:[%s1411 + $0x2f8] sm:$0xff]
    %v1508 = vld [vmem:[%s1411 + $0x300] sm:$0xff]
    %v1509 = vld [vmem:[%s1411 + $0x308] sm:$0xff]
    %v1510 = vld [vmem:[%s1411 + $0x310] sm:$0xff]
    %v1511 = vld [vmem:[%s1411 + $0x318] sm:$0xff]
    %v1512 = vld [vmem:[%s1411 + $0x320] sm:$0xff]
    %v1513 = vld [vmem:[%s1411 + $0x328] sm:$0xff]
    %v1514 = vld [vmem:[%s1411 + $0x330] sm:$0xff]
    %v1515 = vld [vmem:[%s1411 + $0x338] sm:$0xff]
    %v1516 = vld [vmem:[%s1411 + $0x340] sm:$0xff]
    %v1517 = vld [vmem:[%s1411 + $0x348] sm:$0xff]
    %v1518 = vld [vmem:[%s1411 + $0x350] sm:$0xff]
    %v1519 = vld [vmem:[%s1411 + $0x358] sm:$0xff]
    %v1520 = vld [vmem:[%s1411 + $0x360] sm:$0xff]
    %v1521 = vld [vmem:[%s1411 + $0x368] sm:$0xff]
    %v1522 = vld [vmem:[%s1411 + $0x370] sm:$0xff]
    %v1523 = vld [vmem:[%s1411 + $0x378] sm:$0xff]
    %v1524 = vld [vmem:[%s1411 + $0x380] sm:$0xff]
    %v1525 = vld [vmem:[%s1411 + $0x388] sm:$0xff]
    %v1526 = vld [vmem:[%s1411 + $0x390] sm:$0xff]
    %v1527 = vld [vmem:[%s1411 + $0x398] sm:$0xff]
    %v1528 = vld [vmem:[%s1411 + $0x3a0] sm:$0xff]
    %v1529 = vld [vmem:[%s1411 + $0x3a8] sm:$0xff]
    %v1530 = vld [vmem:[%s1411 + $0x3b0] sm:$0xff]
    %v1531 = vld [vmem:[%s1411 + $0x3b8] sm:$0xff]
    %v1532 = vld [vmem:[%s1411 + $0x3c0] sm:$0xff]
    %v1533 = vld [vmem:[%s1411 + $0x3c8] sm:$0xff]
    %v1534 = vld [vmem:[%s1411 + $0x3d0] sm:$0xff]
    %v1535 = vld [vmem:[%s1411 + $0x3d8] sm:$0xff]
    %v1536 = vld [vmem:[%s1411 + $0x3e0] sm:$0xff]
    %v1537 = vld [vmem:[%s1411 + $0x3e8] sm:$0xff]
    %v1538 = vld [vmem:[%s1411 + $0x3f0] sm:$0xff]
    %v1539 = vld [vmem:[%s1411 + $0x3f8] sm:$0xff]
    %1540 = vmatpush.msra.mxu0 %v1472
    %1541 = vmatpush.msra.mxu0 %v1468
    %1542 = vmatpush.msra.mxu0 %v1464
    %1543 = vmatpush.msra.mxu0 %v1460
    %1544 = vmatpush.msra.mxu0 %v1456
    %1545 = vmatpush.msra.mxu0 %v1452
    %1546 = vmatpush.msra.mxu0 %v1448
    %1547 = vmatpush.msra.mxu0 %v1444
    %1548 = vmatpush.msra.mxu0 %v1440
    %1549 = vmatpush.msra.mxu0 %v1436
    %1550 = vmatpush.msra.mxu0 %v1432
    %1551 = vmatpush.msra.mxu0 %v1428
    %1552 = vmatpush.msra.mxu0 %v1424
    %1553 = vmatpush.msra.mxu0 %v1420
    %1554 = vmatpush.msra.mxu0 %v1416
    %1555 = vmatpush.msra.mxu0 %v1412
    %1556 = vmatmul.f32.gmra.mxu0 %v1275
    %v1557 = vpop.f32.mrf.mxu0
    %v1558 = vadd.f32 0.0, %v1557
    %1559 = vdwg.mxu0
    %1560 = vmatpush.msra.mxu0 %v1536
    %1561 = vmatpush.msra.mxu0 %v1532
    %1562 = vmatpush.msra.mxu0 %v1528
    %1563 = vmatpush.msra.mxu0 %v1524
    %1564 = vmatpush.msra.mxu0 %v1520
    %1565 = vmatpush.msra.mxu0 %v1516
    %1566 = vmatpush.msra.mxu0 %v1512
    %1567 = vmatpush.msra.mxu0 %v1508
    %1568 = vmatpush.msra.mxu0 %v1504
    %1569 = vmatpush.msra.mxu0 %v1500
    %1570 = vmatpush.msra.mxu0 %v1496
    %1571 = vmatpush.msra.mxu0 %v1492
    %1572 = vmatpush.msra.mxu0 %v1488
    %1573 = vmatpush.msra.mxu0 %v1484
    %1574 = vmatpush.msra.mxu0 %v1480
    %1575 = vmatpush.msra.mxu0 %v1476
    %1576 = vmatmul.f32.gmra.mxu0 %v1276
    %v1577 = vpop.f32.mrf.mxu0
    %v1578 = vadd.f32 %v1558, %v1577
    %1579 = vdwg.mxu0
    %1580 = vmatpush.msra.mxu0 %v1473
    %1581 = vmatpush.msra.mxu0 %v1469
    %1582 = vmatpush.msra.mxu0 %v1465
    %1583 = vmatpush.msra.mxu0 %v1461
    %1584 = vmatpush.msra.mxu0 %v1457
    %1585 = vmatpush.msra.mxu0 %v1453
    %1586 = vmatpush.msra.mxu0 %v1449
    %1587 = vmatpush.msra.mxu0 %v1445
    %1588 = vmatpush.msra.mxu0 %v1441
    %1589 = vmatpush.msra.mxu0 %v1437
    %1590 = vmatpush.msra.mxu0 %v1433
    %1591 = vmatpush.msra.mxu0 %v1429
    %1592 = vmatpush.msra.mxu0 %v1425
    %1593 = vmatpush.msra.mxu0 %v1421
    %1594 = vmatpush.msra.mxu0 %v1417
    %1595 = vmatpush.msra.mxu0 %v1413
    %1596 = vmatmul.f32.gmra.mxu0 %v1275
    %v1597 = vpop.f32.mrf.mxu0
    %v1598 = vadd.f32 0.0, %v1597
    %1599 = vdwg.mxu0
    %1600 = vmatpush.msra.mxu0 %v1537
    %1601 = vmatpush.msra.mxu0 %v1533
    %1602 = vmatpush.msra.mxu0 %v1529
    %1603 = vmatpush.msra.mxu0 %v1525
    %1604 = vmatpush.msra.mxu0 %v1521
    %1605 = vmatpush.msra.mxu0 %v1517
    %1606 = vmatpush.msra.mxu0 %v1513
    %1607 = vmatpush.msra.mxu0 %v1509
    %1608 = vmatpush.msra.mxu0 %v1505
    %1609 = vmatpush.msra.mxu0 %v1501
    %1610 = vmatpush.msra.mxu0 %v1497
    %1611 = vmatpush.msra.mxu0 %v1493
    %1612 = vmatpush.msra.mxu0 %v1489
    %1613 = vmatpush.msra.mxu0 %v1485
    %1614 = vmatpush.msra.mxu0 %v1481
    %1615 = vmatpush.msra.mxu0 %v1477
    %1616 = vmatmul.f32.gmra.mxu0 %v1276
    %v1617 = vpop.f32.mrf.mxu0
    %v1618 = vadd.f32 %v1598, %v1617
    %1619 = vdwg.mxu0
    %1620 = vmatpush.msra.mxu0 %v1474
    %1621 = vmatpush.msra.mxu0 %v1470
    %1622 = vmatpush.msra.mxu0 %v1466
    %1623 = vmatpush.msra.mxu0 %v1462
    %1624 = vmatpush.msra.mxu0 %v1458
    %1625 = vmatpush.msra.mxu0 %v1454
    %1626 = vmatpush.msra.mxu0 %v1450
    %1627 = vmatpush.msra.mxu0 %v1446
    %1628 = vmatpush.msra.mxu0 %v1442
    %1629 = vmatpush.msra.mxu0 %v1438
    %1630 = vmatpush.msra.mxu0 %v1434
    %1631 = vmatpush.msra.mxu0 %v1430
    %1632 = vmatpush.msra.mxu0 %v1426
    %1633 = vmatpush.msra.mxu0 %v1422
    %1634 = vmatpush.msra.mxu0 %v1418
    %1635 = vmatpush.msra.mxu0 %v1414
    %1636 = vmatmul.f32.gmra.mxu0 %v1275
    %v1637 = vpop.f32.mrf.mxu0
    %v1638 = vadd.f32 0.0, %v1637
    %1639 = vdwg.mxu0
    %1640 = vmatpush.msra.mxu0 %v1538
    %1641 = vmatpush.msra.mxu0 %v1534
    %1642 = vmatpush.msra.mxu0 %v1530
    %1643 = vmatpush.msra.mxu0 %v1526
    %1644 = vmatpush.msra.mxu0 %v1522
    %1645 = vmatpush.msra.mxu0 %v1518
    %1646 = vmatpush.msra.mxu0 %v1514
    %1647 = vmatpush.msra.mxu0 %v1510
    %1648 = vmatpush.msra.mxu0 %v1506
    %1649 = vmatpush.msra.mxu0 %v1502
    %1650 = vmatpush.msra.mxu0 %v1498
    %1651 = vmatpush.msra.mxu0 %v1494
    %1652 = vmatpush.msra.mxu0 %v1490
    %1653 = vmatpush.msra.mxu0 %v1486
    %1654 = vmatpush.msra.mxu0 %v1482
    %1655 = vmatpush.msra.mxu0 %v1478
    %1656 = vmatmul.f32.gmra.mxu0 %v1276
    %v1657 = vpop.f32.mrf.mxu0
    %v1658 = vadd.f32 %v1638, %v1657
    %1659 = vdwg.mxu0
    %1660 = vmatpush.msra.mxu0 %v1475
    %1661 = vmatpush.msra.mxu0 %v1471
    %1662 = vmatpush.msra.mxu0 %v1467
    %1663 = vmatpush.msra.mxu0 %v1463
    %1664 = vmatpush.msra.mxu0 %v1459
    %1665 = vmatpush.msra.mxu0 %v1455
    %1666 = vmatpush.msra.mxu0 %v1451
    %1667 = vmatpush.msra.mxu0 %v1447
    %1668 = vmatpush.msra.mxu0 %v1443
    %1669 = vmatpush.msra.mxu0 %v1439
    %1670 = vmatpush.msra.mxu0 %v1435
    %1671 = vmatpush.msra.mxu0 %v1431
    %1672 = vmatpush.msra.mxu0 %v1427
    %1673 = vmatpush.msra.mxu0 %v1423
    %1674 = vmatpush.msra.mxu0 %v1419
    %1675 = vmatpush.msra.mxu0 %v1415
    %1676 = vmatmul.f32.gmra.mxu0 %v1275
    %v1677 = vpop.f32.mrf.mxu0
    %v1678 = vadd.f32 0.0, %v1677
    %1679 = vdwg.mxu0
    %1680 = vmatpush.msra.mxu0 %v1539
    %1681 = vmatpush.msra.mxu0 %v1535
    %1682 = vmatpush.msra.mxu0 %v1531
    %1683 = vmatpush.msra.mxu0 %v1527
    %1684 = vmatpush.msra.mxu0 %v1523
    %1685 = vmatpush.msra.mxu0 %v1519
    %1686 = vmatpush.msra.mxu0 %v1515
    %1687 = vmatpush.msra.mxu0 %v1511
    %1688 = vmatpush.msra.mxu0 %v1507
    %1689 = vmatpush.msra.mxu0 %v1503
    %1690 = vmatpush.msra.mxu0 %v1499
    %1691 = vmatpush.msra.mxu0 %v1495
    %1692 = vmatpush.msra.mxu0 %v1491
    %1693 = vmatpush.msra.mxu0 %v1487
    %1694 = vmatpush.msra.mxu0 %v1483
    %1695 = vmatpush.msra.mxu0 %v1479
    %1696 = vmatmul.f32.gmra.mxu0 %v1276
    %v1697 = vpop.f32.mrf.mxu0
    %v1698 = vadd.f32 %v1678, %v1697
    %1699 = vdwg.mxu0
    %1700 = vmatpush.msra.mxu0 %v1343
    %1701 = vmatpush.msra.mxu0 %v1339
    %1702 = vmatpush.msra.mxu0 %v1335
    %1703 = vmatpush.msra.mxu0 %v1331
    %1704 = vmatpush.msra.mxu0 %v1327
    %1705 = vmatpush.msra.mxu0 %v1323
    %1706 = vmatpush.msra.mxu0 %v1319
    %1707 = vmatpush.msra.mxu0 %v1315
    %1708 = vmatpush.msra.mxu0 %v1311
    %1709 = vmatpush.msra.mxu0 %v1307
    %1710 = vmatpush.msra.mxu0 %v1303
    %1711 = vmatpush.msra.mxu0 %v1299
    %1712 = vmatpush.msra.mxu0 %v1295
    %1713 = vmatpush.msra.mxu0 %v1291
    %1714 = vmatpush.msra.mxu0 %v1287
    %1715 = vmatpush.msra.mxu0 %v1283
    %1716 = vmatmul.f32.gmra.mxu0 %v1273
    %v1717 = vpop.f32.mrf.mxu0
    %v1718 = vadd.f32 %v1578, %v1717
    %1719 = vdwg.mxu0
    %1720 = vmatpush.msra.mxu0 %v1407
    %1721 = vmatpush.msra.mxu0 %v1403
    %1722 = vmatpush.msra.mxu0 %v1399
    %1723 = vmatpush.msra.mxu0 %v1395
    %1724 = vmatpush.msra.mxu0 %v1391
    %1725 = vmatpush.msra.mxu0 %v1387
    %1726 = vmatpush.msra.mxu0 %v1383
    %1727 = vmatpush.msra.mxu0 %v1379
    %1728 = vmatpush.msra.mxu0 %v1375
    %1729 = vmatpush.msra.mxu0 %v1371
    %1730 = vmatpush.msra.mxu0 %v1367
    %1731 = vmatpush.msra.mxu0 %v1363
    %1732 = vmatpush.msra.mxu0 %v1359
    %1733 = vmatpush.msra.mxu0 %v1355
    %1734 = vmatpush.msra.mxu0 %v1351
    %1735 = vmatpush.msra.mxu0 %v1347
    %1736 = vmatmul.f32.gmra.mxu0 %v1274
    %v1737 = vpop.f32.mrf.mxu0
    %v1738 = vadd.f32 %v1718, %v1737
    %1739 = vdwg.mxu0
    %1740 = vmatpush.msra.mxu0 %v1344
    %1741 = vmatpush.msra.mxu0 %v1340
    %1742 = vmatpush.msra.mxu0 %v1336
    %1743 = vmatpush.msra.mxu0 %v1332
    %1744 = vmatpush.msra.mxu0 %v1328
    %1745 = vmatpush.msra.mxu0 %v1324
    %1746 = vmatpush.msra.mxu0 %v1320
    %1747 = vmatpush.msra.mxu0 %v1316
    %1748 = vmatpush.msra.mxu0 %v1312
    %1749 = vmatpush.msra.mxu0 %v1308
    %1750 = vmatpush.msra.mxu0 %v1304
    %1751 = vmatpush.msra.mxu0 %v1300
    %1752 = vmatpush.msra.mxu0 %v1296
    %1753 = vmatpush.msra.mxu0 %v1292
    %1754 = vmatpush.msra.mxu0 %v1288
    %1755 = vmatpush.msra.mxu0 %v1284
    %1756 = vmatmul.f32.gmra.mxu0 %v1273
    %v1757 = vpop.f32.mrf.mxu0
    %v1758 = vadd.f32 %v1618, %v1757
    %1759 = vdwg.mxu0
    %1760 = vmatpush.msra.mxu0 %v1408
    %1761 = vmatpush.msra.mxu0 %v1404
    %1762 = vmatpush.msra.mxu0 %v1400
    %1763 = vmatpush.msra.mxu0 %v1396
    %1764 = vmatpush.msra.mxu0 %v1392
    %1765 = vmatpush.msra.mxu0 %v1388
    %1766 = vmatpush.msra.mxu0 %v1384
    %1767 = vmatpush.msra.mxu0 %v1380
    %1768 = vmatpush.msra.mxu0 %v1376
    %1769 = vmatpush.msra.mxu0 %v1372
    %1770 = vmatpush.msra.mxu0 %v1368
    %1771 = vmatpush.msra.mxu0 %v1364
    %1772 = vmatpush.msra.mxu0 %v1360
    %1773 = vmatpush.msra.mxu0 %v1356
    %1774 = vmatpush.msra.mxu0 %v1352
    %1775 = vmatpush.msra.mxu0 %v1348
    %1776 = vmatmul.f32.gmra.mxu0 %v1274
    %v1777 = vpop.f32.mrf.mxu0
    %v1778 = vadd.f32 %v1758, %v1777
    %1779 = vdwg.mxu0
    %1780 = vmatpush.msra.mxu0 %v1345
    %1781 = vmatpush.msra.mxu0 %v1341
    %1782 = vmatpush.msra.mxu0 %v1337
    %1783 = vmatpush.msra.mxu0 %v1333
    %1784 = vmatpush.msra.mxu0 %v1329
    %1785 = vmatpush.msra.mxu0 %v1325
    %1786 = vmatpush.msra.mxu0 %v1321
    %1787 = vmatpush.msra.mxu0 %v1317
    %1788 = vmatpush.msra.mxu0 %v1313
    %1789 = vmatpush.msra.mxu0 %v1309
    %1790 = vmatpush.msra.mxu0 %v1305
    %1791 = vmatpush.msra.mxu0 %v1301
    %1792 = vmatpush.msra.mxu0 %v1297
    %1793 = vmatpush.msra.mxu0 %v1293
    %1794 = vmatpush.msra.mxu0 %v1289
    %1795 = vmatpush.msra.mxu0 %v1285
    %1796 = vmatmul.f32.gmra.mxu0 %v1273
    %v1797 = vpop.f32.mrf.mxu0
    %v1798 = vadd.f32 %v1658, %v1797
    %1799 = vdwg.mxu0
    %1800 = vmatpush.msra.mxu0 %v1409
    %1801 = vmatpush.msra.mxu0 %v1405
    %1802 = vmatpush.msra.mxu0 %v1401
    %1803 = vmatpush.msra.mxu0 %v1397
    %1804 = vmatpush.msra.mxu0 %v1393
    %1805 = vmatpush.msra.mxu0 %v1389
    %1806 = vmatpush.msra.mxu0 %v1385
    %1807 = vmatpush.msra.mxu0 %v1381
    %1808 = vmatpush.msra.mxu0 %v1377
    %1809 = vmatpush.msra.mxu0 %v1373
    %1810 = vmatpush.msra.mxu0 %v1369
    %1811 = vmatpush.msra.mxu0 %v1365
    %1812 = vmatpush.msra.mxu0 %v1361
    %1813 = vmatpush.msra.mxu0 %v1357
    %1814 = vmatpush.msra.mxu0 %v1353
    %1815 = vmatpush.msra.mxu0 %v1349
    %1816 = vmatmul.f32.gmra.mxu0 %v1274
    %v1817 = vpop.f32.mrf.mxu0
    %v1818 = vadd.f32 %v1798, %v1817
    %1819 = vdwg.mxu0
    %1820 = vmatpush.msra.mxu0 %v1346
    %1821 = vmatpush.msra.mxu0 %v1342
    %1822 = vmatpush.msra.mxu0 %v1338
    %1823 = vmatpush.msra.mxu0 %v1334
    %1824 = vmatpush.msra.mxu0 %v1330
    %1825 = vmatpush.msra.mxu0 %v1326
    %1826 = vmatpush.msra.mxu0 %v1322
    %1827 = vmatpush.msra.mxu0 %v1318
    %1828 = vmatpush.msra.mxu0 %v1314
    %1829 = vmatpush.msra.mxu0 %v1310
    %1830 = vmatpush.msra.mxu0 %v1306
    %1831 = vmatpush.msra.mxu0 %v1302
    %1832 = vmatpush.msra.mxu0 %v1298
    %1833 = vmatpush.msra.mxu0 %v1294
    %1834 = vmatpush.msra.mxu0 %v1290
    %1835 = vmatpush.msra.mxu0 %v1286
    %1836 = vmatmul.f32.gmra.mxu0 %v1273
    %v1837 = vpop.f32.mrf.mxu0
    %v1838 = vadd.f32 %v1698, %v1837
    %1839 = vdwg.mxu0
    %1840 = vmatpush.msra.mxu0 %v1410
    %1841 = vmatpush.msra.mxu0 %v1406
    %1842 = vmatpush.msra.mxu0 %v1402
    %1843 = vmatpush.msra.mxu0 %v1398
    %1844 = vmatpush.msra.mxu0 %v1394
    %1845 = vmatpush.msra.mxu0 %v1390
    %1846 = vmatpush.msra.mxu0 %v1386
    %1847 = vmatpush.msra.mxu0 %v1382
    %1848 = vmatpush.msra.mxu0 %v1378
    %1849 = vmatpush.msra.mxu0 %v1374
    %1850 = vmatpush.msra.mxu0 %v1370
    %1851 = vmatpush.msra.mxu0 %v1366
    %1852 = vmatpush.msra.mxu0 %v1362
    %1853 = vmatpush.msra.mxu0 %v1358
    %1854 = vmatpush.msra.mxu0 %v1354
    %1855 = vmatpush.msra.mxu0 %v1350
    %1856 = vmatmul.f32.gmra.mxu0 %v1274
    %v1857 = vpop.f32.mrf.mxu0
    %v1858 = vadd.f32 %v1838, %v1857
    %1859 = vdwg.mxu0
    %s1860 = scalar_lea.vmem %s5, 2048
    %v1861 = vld [vmem:[%s1860] sm:$0xff]
    %v1862 = vld [vmem:[%s1860 + $0x8] sm:$0xff]
    %v1863 = vld [vmem:[%s1860 + $0x10] sm:$0xff]
    %v1864 = vld [vmem:[%s1860 + $0x18] sm:$0xff]
    %v1865 = vld [vmem:[%s1860 + $0x20] sm:$0xff]
    %v1866 = vld [vmem:[%s1860 + $0x28] sm:$0xff]
    %v1867 = vld [vmem:[%s1860 + $0x30] sm:$0xff]
    %v1868 = vld [vmem:[%s1860 + $0x38] sm:$0xff]
    %v1869 = vld [vmem:[%s1860 + $0x40] sm:$0xff]
    %v1870 = vld [vmem:[%s1860 + $0x48] sm:$0xff]
    %v1871 = vld [vmem:[%s1860 + $0x50] sm:$0xff]
    %v1872 = vld [vmem:[%s1860 + $0x58] sm:$0xff]
    %v1873 = vld [vmem:[%s1860 + $0x60] sm:$0xff]
    %v1874 = vld [vmem:[%s1860 + $0x68] sm:$0xff]
    %v1875 = vld [vmem:[%s1860 + $0x70] sm:$0xff]
    %v1876 = vld [vmem:[%s1860 + $0x78] sm:$0xff]
    %v1877 = vld [vmem:[%s1860 + $0x80] sm:$0xff]
    %v1878 = vld [vmem:[%s1860 + $0x88] sm:$0xff]
    %v1879 = vld [vmem:[%s1860 + $0x90] sm:$0xff]
    %v1880 = vld [vmem:[%s1860 + $0x98] sm:$0xff]
    %v1881 = vld [vmem:[%s1860 + $0xa0] sm:$0xff]
    %v1882 = vld [vmem:[%s1860 + $0xa8] sm:$0xff]
    %v1883 = vld [vmem:[%s1860 + $0xb0] sm:$0xff]
    %v1884 = vld [vmem:[%s1860 + $0xb8] sm:$0xff]
    %v1885 = vld [vmem:[%s1860 + $0xc0] sm:$0xff]
    %v1886 = vld [vmem:[%s1860 + $0xc8] sm:$0xff]
    %v1887 = vld [vmem:[%s1860 + $0xd0] sm:$0xff]
    %v1888 = vld [vmem:[%s1860 + $0xd8] sm:$0xff]
    %v1889 = vld [vmem:[%s1860 + $0xe0] sm:$0xff]
    %v1890 = vld [vmem:[%s1860 + $0xe8] sm:$0xff]
    %v1891 = vld [vmem:[%s1860 + $0xf0] sm:$0xff]
    %v1892 = vld [vmem:[%s1860 + $0xf8] sm:$0xff]
    %v1893 = vld [vmem:[%s1860 + $0x100] sm:$0xff]
    %v1894 = vld [vmem:[%s1860 + $0x108] sm:$0xff]
    %v1895 = vld [vmem:[%s1860 + $0x110] sm:$0xff]
    %v1896 = vld [vmem:[%s1860 + $0x118] sm:$0xff]
    %v1897 = vld [vmem:[%s1860 + $0x120] sm:$0xff]
    %v1898 = vld [vmem:[%s1860 + $0x128] sm:$0xff]
    %v1899 = vld [vmem:[%s1860 + $0x130] sm:$0xff]
    %v1900 = vld [vmem:[%s1860 + $0x138] sm:$0xff]
    %v1901 = vld [vmem:[%s1860 + $0x140] sm:$0xff]
    %v1902 = vld [vmem:[%s1860 + $0x148] sm:$0xff]
    %v1903 = vld [vmem:[%s1860 + $0x150] sm:$0xff]
    %v1904 = vld [vmem:[%s1860 + $0x158] sm:$0xff]
    %v1905 = vld [vmem:[%s1860 + $0x160] sm:$0xff]
    %v1906 = vld [vmem:[%s1860 + $0x168] sm:$0xff]
    %v1907 = vld [vmem:[%s1860 + $0x170] sm:$0xff]
    %v1908 = vld [vmem:[%s1860 + $0x178] sm:$0xff]
    %v1909 = vld [vmem:[%s1860 + $0x180] sm:$0xff]
    %v1910 = vld [vmem:[%s1860 + $0x188] sm:$0xff]
    %v1911 = vld [vmem:[%s1860 + $0x190] sm:$0xff]
    %v1912 = vld [vmem:[%s1860 + $0x198] sm:$0xff]
    %v1913 = vld [vmem:[%s1860 + $0x1a0] sm:$0xff]
    %v1914 = vld [vmem:[%s1860 + $0x1a8] sm:$0xff]
    %v1915 = vld [vmem:[%s1860 + $0x1b0] sm:$0xff]
    %v1916 = vld [vmem:[%s1860 + $0x1b8] sm:$0xff]
    %v1917 = vld [vmem:[%s1860 + $0x1c0] sm:$0xff]
    %v1918 = vld [vmem:[%s1860 + $0x1c8] sm:$0xff]
    %v1919 = vld [vmem:[%s1860 + $0x1d0] sm:$0xff]
    %v1920 = vld [vmem:[%s1860 + $0x1d8] sm:$0xff]
    %v1921 = vld [vmem:[%s1860 + $0x1e0] sm:$0xff]
    %v1922 = vld [vmem:[%s1860 + $0x1e8] sm:$0xff]
    %v1923 = vld [vmem:[%s1860 + $0x1f0] sm:$0xff]
    %v1924 = vld [vmem:[%s1860 + $0x1f8] sm:$0xff]
    %v1925 = vld [vmem:[%s1860 + $0x200] sm:$0xff]
    %v1926 = vld [vmem:[%s1860 + $0x208] sm:$0xff]
    %v1927 = vld [vmem:[%s1860 + $0x210] sm:$0xff]
    %v1928 = vld [vmem:[%s1860 + $0x218] sm:$0xff]
    %v1929 = vld [vmem:[%s1860 + $0x220] sm:$0xff]
    %v1930 = vld [vmem:[%s1860 + $0x228] sm:$0xff]
    %v1931 = vld [vmem:[%s1860 + $0x230] sm:$0xff]
    %v1932 = vld [vmem:[%s1860 + $0x238] sm:$0xff]
    %v1933 = vld [vmem:[%s1860 + $0x240] sm:$0xff]
    %v1934 = vld [vmem:[%s1860 + $0x248] sm:$0xff]
    %v1935 = vld [vmem:[%s1860 + $0x250] sm:$0xff]
    %v1936 = vld [vmem:[%s1860 + $0x258] sm:$0xff]
    %v1937 = vld [vmem:[%s1860 + $0x260] sm:$0xff]
    %v1938 = vld [vmem:[%s1860 + $0x268] sm:$0xff]
    %v1939 = vld [vmem:[%s1860 + $0x270] sm:$0xff]
    %v1940 = vld [vmem:[%s1860 + $0x278] sm:$0xff]
    %v1941 = vld [vmem:[%s1860 + $0x280] sm:$0xff]
    %v1942 = vld [vmem:[%s1860 + $0x288] sm:$0xff]
    %v1943 = vld [vmem:[%s1860 + $0x290] sm:$0xff]
    %v1944 = vld [vmem:[%s1860 + $0x298] sm:$0xff]
    %v1945 = vld [vmem:[%s1860 + $0x2a0] sm:$0xff]
    %v1946 = vld [vmem:[%s1860 + $0x2a8] sm:$0xff]
    %v1947 = vld [vmem:[%s1860 + $0x2b0] sm:$0xff]
    %v1948 = vld [vmem:[%s1860 + $0x2b8] sm:$0xff]
    %v1949 = vld [vmem:[%s1860 + $0x2c0] sm:$0xff]
    %v1950 = vld [vmem:[%s1860 + $0x2c8] sm:$0xff]
    %v1951 = vld [vmem:[%s1860 + $0x2d0] sm:$0xff]
    %v1952 = vld [vmem:[%s1860 + $0x2d8] sm:$0xff]
    %v1953 = vld [vmem:[%s1860 + $0x2e0] sm:$0xff]
    %v1954 = vld [vmem:[%s1860 + $0x2e8] sm:$0xff]
    %v1955 = vld [vmem:[%s1860 + $0x2f0] sm:$0xff]
    %v1956 = vld [vmem:[%s1860 + $0x2f8] sm:$0xff]
    %v1957 = vld [vmem:[%s1860 + $0x300] sm:$0xff]
    %v1958 = vld [vmem:[%s1860 + $0x308] sm:$0xff]
    %v1959 = vld [vmem:[%s1860 + $0x310] sm:$0xff]
    %v1960 = vld [vmem:[%s1860 + $0x318] sm:$0xff]
    %v1961 = vld [vmem:[%s1860 + $0x320] sm:$0xff]
    %v1962 = vld [vmem:[%s1860 + $0x328] sm:$0xff]
    %v1963 = vld [vmem:[%s1860 + $0x330] sm:$0xff]
    %v1964 = vld [vmem:[%s1860 + $0x338] sm:$0xff]
    %v1965 = vld [vmem:[%s1860 + $0x340] sm:$0xff]
    %v1966 = vld [vmem:[%s1860 + $0x348] sm:$0xff]
    %v1967 = vld [vmem:[%s1860 + $0x350] sm:$0xff]
    %v1968 = vld [vmem:[%s1860 + $0x358] sm:$0xff]
    %v1969 = vld [vmem:[%s1860 + $0x360] sm:$0xff]
    %v1970 = vld [vmem:[%s1860 + $0x368] sm:$0xff]
    %v1971 = vld [vmem:[%s1860 + $0x370] sm:$0xff]
    %v1972 = vld [vmem:[%s1860 + $0x378] sm:$0xff]
    %v1973 = vld [vmem:[%s1860 + $0x380] sm:$0xff]
    %v1974 = vld [vmem:[%s1860 + $0x388] sm:$0xff]
    %v1975 = vld [vmem:[%s1860 + $0x390] sm:$0xff]
    %v1976 = vld [vmem:[%s1860 + $0x398] sm:$0xff]
    %v1977 = vld [vmem:[%s1860 + $0x3a0] sm:$0xff]
    %v1978 = vld [vmem:[%s1860 + $0x3a8] sm:$0xff]
    %v1979 = vld [vmem:[%s1860 + $0x3b0] sm:$0xff]
    %v1980 = vld [vmem:[%s1860 + $0x3b8] sm:$0xff]
    %v1981 = vld [vmem:[%s1860 + $0x3c0] sm:$0xff]
    %v1982 = vld [vmem:[%s1860 + $0x3c8] sm:$0xff]
    %v1983 = vld [vmem:[%s1860 + $0x3d0] sm:$0xff]
    %v1984 = vld [vmem:[%s1860 + $0x3d8] sm:$0xff]
    %v1985 = vld [vmem:[%s1860 + $0x3e0] sm:$0xff]
    %v1986 = vld [vmem:[%s1860 + $0x3e8] sm:$0xff]
    %v1987 = vld [vmem:[%s1860 + $0x3f0] sm:$0xff]
    %v1988 = vld [vmem:[%s1860 + $0x3f8] sm:$0xff]
    %1989 = vmatpush.msra.mxu0 %v1921
    %1990 = vmatpush.msra.mxu0 %v1917
    %1991 = vmatpush.msra.mxu0 %v1913
    %1992 = vmatpush.msra.mxu0 %v1909
    %1993 = vmatpush.msra.mxu0 %v1905
    %1994 = vmatpush.msra.mxu0 %v1901
    %1995 = vmatpush.msra.mxu0 %v1897
    %1996 = vmatpush.msra.mxu0 %v1893
    %1997 = vmatpush.msra.mxu0 %v1889
    %1998 = vmatpush.msra.mxu0 %v1885
    %1999 = vmatpush.msra.mxu0 %v1881
    %2000 = vmatpush.msra.mxu0 %v1877
    %2001 = vmatpush.msra.mxu0 %v1873
    %2002 = vmatpush.msra.mxu0 %v1869
    %2003 = vmatpush.msra.mxu0 %v1865
    %2004 = vmatpush.msra.mxu0 %v1861
    %2005 = vmatmul.f32.gmra.mxu0 %v1277
    %v2006 = vpop.f32.mrf.mxu0
    %v2007 = vadd.f32 0.0, %v2006
    %2008 = vdwg.mxu0
    %2009 = vmatpush.msra.mxu0 %v1985
    %2010 = vmatpush.msra.mxu0 %v1981
    %2011 = vmatpush.msra.mxu0 %v1977
    %2012 = vmatpush.msra.mxu0 %v1973
    %2013 = vmatpush.msra.mxu0 %v1969
    %2014 = vmatpush.msra.mxu0 %v1965
    %2015 = vmatpush.msra.mxu0 %v1961
    %2016 = vmatpush.msra.mxu0 %v1957
    %2017 = vmatpush.msra.mxu0 %v1953
    %2018 = vmatpush.msra.mxu0 %v1949
    %2019 = vmatpush.msra.mxu0 %v1945
    %2020 = vmatpush.msra.mxu0 %v1941
    %2021 = vmatpush.msra.mxu0 %v1937
    %2022 = vmatpush.msra.mxu0 %v1933
    %2023 = vmatpush.msra.mxu0 %v1929
    %2024 = vmatpush.msra.mxu0 %v1925
    %2025 = vmatmul.f32.gmra.mxu0 %v1278
    %v2026 = vpop.f32.mrf.mxu0
    %v2027 = vadd.f32 %v2007, %v2026
    %2028 = vdwg.mxu0
    %2029 = vmatpush.msra.mxu0 %v1922
    %2030 = vmatpush.msra.mxu0 %v1918
    %2031 = vmatpush.msra.mxu0 %v1914
    %2032 = vmatpush.msra.mxu0 %v1910
    %2033 = vmatpush.msra.mxu0 %v1906
    %2034 = vmatpush.msra.mxu0 %v1902
    %2035 = vmatpush.msra.mxu0 %v1898
    %2036 = vmatpush.msra.mxu0 %v1894
    %2037 = vmatpush.msra.mxu0 %v1890
    %2038 = vmatpush.msra.mxu0 %v1886
    %2039 = vmatpush.msra.mxu0 %v1882
    %2040 = vmatpush.msra.mxu0 %v1878
    %2041 = vmatpush.msra.mxu0 %v1874
    %2042 = vmatpush.msra.mxu0 %v1870
    %2043 = vmatpush.msra.mxu0 %v1866
    %2044 = vmatpush.msra.mxu0 %v1862
    %2045 = vmatmul.f32.gmra.mxu0 %v1277
    %v2046 = vpop.f32.mrf.mxu0
    %v2047 = vadd.f32 0.0, %v2046
    %2048 = vdwg.mxu0
    %2049 = vmatpush.msra.mxu0 %v1986
    %2050 = vmatpush.msra.mxu0 %v1982
    %2051 = vmatpush.msra.mxu0 %v1978
    %2052 = vmatpush.msra.mxu0 %v1974
    %2053 = vmatpush.msra.mxu0 %v1970
    %2054 = vmatpush.msra.mxu0 %v1966
    %2055 = vmatpush.msra.mxu0 %v1962
    %2056 = vmatpush.msra.mxu0 %v1958
    %2057 = vmatpush.msra.mxu0 %v1954
    %2058 = vmatpush.msra.mxu0 %v1950
    %2059 = vmatpush.msra.mxu0 %v1946
    %2060 = vmatpush.msra.mxu0 %v1942
    %2061 = vmatpush.msra.mxu0 %v1938
    %2062 = vmatpush.msra.mxu0 %v1934
    %2063 = vmatpush.msra.mxu0 %v1930
    %2064 = vmatpush.msra.mxu0 %v1926
    %2065 = vmatmul.f32.gmra.mxu0 %v1278
    %v2066 = vpop.f32.mrf.mxu0
    %v2067 = vadd.f32 %v2047, %v2066
    %2068 = vdwg.mxu0
    %2069 = vmatpush.msra.mxu0 %v1923
    %2070 = vmatpush.msra.mxu0 %v1919
    %2071 = vmatpush.msra.mxu0 %v1915
    %2072 = vmatpush.msra.mxu0 %v1911
    %2073 = vmatpush.msra.mxu0 %v1907
    %2074 = vmatpush.msra.mxu0 %v1903
    %2075 = vmatpush.msra.mxu0 %v1899
    %2076 = vmatpush.msra.mxu0 %v1895
    %2077 = vmatpush.msra.mxu0 %v1891
    %2078 = vmatpush.msra.mxu0 %v1887
    %2079 = vmatpush.msra.mxu0 %v1883
    %2080 = vmatpush.msra.mxu0 %v1879
    %2081 = vmatpush.msra.mxu0 %v1875
    %2082 = vmatpush.msra.mxu0 %v1871
    %2083 = vmatpush.msra.mxu0 %v1867
    %2084 = vmatpush.msra.mxu0 %v1863
    %2085 = vmatmul.f32.gmra.mxu0 %v1277
    %v2086 = vpop.f32.mrf.mxu0
    %v2087 = vadd.f32 0.0, %v2086
    %2088 = vdwg.mxu0
    %2089 = vmatpush.msra.mxu0 %v1987
    %2090 = vmatpush.msra.mxu0 %v1983
    %2091 = vmatpush.msra.mxu0 %v1979
    %2092 = vmatpush.msra.mxu0 %v1975
    %2093 = vmatpush.msra.mxu0 %v1971
    %2094 = vmatpush.msra.mxu0 %v1967
    %2095 = vmatpush.msra.mxu0 %v1963
    %2096 = vmatpush.msra.mxu0 %v1959
    %2097 = vmatpush.msra.mxu0 %v1955
    %2098 = vmatpush.msra.mxu0 %v1951
    %2099 = vmatpush.msra.mxu0 %v1947
    %2100 = vmatpush.msra.mxu0 %v1943
    %2101 = vmatpush.msra.mxu0 %v1939
    %2102 = vmatpush.msra.mxu0 %v1935
    %2103 = vmatpush.msra.mxu0 %v1931
    %2104 = vmatpush.msra.mxu0 %v1927
    %2105 = vmatmul.f32.gmra.mxu0 %v1278
    %v2106 = vpop.f32.mrf.mxu0
    %v2107 = vadd.f32 %v2087, %v2106
    %2108 = vdwg.mxu0
    %2109 = vmatpush.msra.mxu0 %v1924
    %2110 = vmatpush.msra.mxu0 %v1920
    %2111 = vmatpush.msra.mxu0 %v1916
    %2112 = vmatpush.msra.mxu0 %v1912
    %2113 = vmatpush.msra.mxu0 %v1908
    %2114 = vmatpush.msra.mxu0 %v1904
    %2115 = vmatpush.msra.mxu0 %v1900
    %2116 = vmatpush.msra.mxu0 %v1896
    %2117 = vmatpush.msra.mxu0 %v1892
    %2118 = vmatpush.msra.mxu0 %v1888
    %2119 = vmatpush.msra.mxu0 %v1884
    %2120 = vmatpush.msra.mxu0 %v1880
    %2121 = vmatpush.msra.mxu0 %v1876
    %2122 = vmatpush.msra.mxu0 %v1872
    %2123 = vmatpush.msra.mxu0 %v1868
    %2124 = vmatpush.msra.mxu0 %v1864
    %2125 = vmatmul.f32.gmra.mxu0 %v1277
    %v2126 = vpop.f32.mrf.mxu0
    %v2127 = vadd.f32 0.0, %v2126
    %2128 = vdwg.mxu0
    %2129 = vmatpush.msra.mxu0 %v1988
    %2130 = vmatpush.msra.mxu0 %v1984
    %2131 = vmatpush.msra.mxu0 %v1980
    %2132 = vmatpush.msra.mxu0 %v1976
    %2133 = vmatpush.msra.mxu0 %v1972
    %2134 = vmatpush.msra.mxu0 %v1968
    %2135 = vmatpush.msra.mxu0 %v1964
    %2136 = vmatpush.msra.mxu0 %v1960
    %2137 = vmatpush.msra.mxu0 %v1956
    %2138 = vmatpush.msra.mxu0 %v1952
    %2139 = vmatpush.msra.mxu0 %v1948
    %2140 = vmatpush.msra.mxu0 %v1944
    %2141 = vmatpush.msra.mxu0 %v1940
    %2142 = vmatpush.msra.mxu0 %v1936
    %2143 = vmatpush.msra.mxu0 %v1932
    %2144 = vmatpush.msra.mxu0 %v1928
    %2145 = vmatmul.f32.gmra.mxu0 %v1278
    %v2146 = vpop.f32.mrf.mxu0
    %v2147 = vadd.f32 %v2127, %v2146
    %2148 = vdwg.mxu0
    %v2149 = vadd.f32 %v1738, %v2027
    %v2150 = vadd.f32 %v1778, %v2067
    %v2151 = vadd.f32 %v1818, %v2107
    %v2152 = vadd.f32 %v1858, %v2147
    %s2153 = scalar_lea.vmem %s5, 3072
    %v2154 = vld [vmem:[%s2153] sm:$0xff]
    %v2155 = vld [vmem:[%s2153 + $0x8] sm:$0xff]
    %v2156 = vld [vmem:[%s2153 + $0x10] sm:$0xff]
    %v2157 = vld [vmem:[%s2153 + $0x18] sm:$0xff]
    %v2158 = vld [vmem:[%s2153 + $0x20] sm:$0xff]
    %v2159 = vld [vmem:[%s2153 + $0x28] sm:$0xff]
    %v2160 = vld [vmem:[%s2153 + $0x30] sm:$0xff]
    %v2161 = vld [vmem:[%s2153 + $0x38] sm:$0xff]
    %v2162 = vld [vmem:[%s2153 + $0x40] sm:$0xff]
    %v2163 = vld [vmem:[%s2153 + $0x48] sm:$0xff]
    %v2164 = vld [vmem:[%s2153 + $0x50] sm:$0xff]
    %v2165 = vld [vmem:[%s2153 + $0x58] sm:$0xff]
    %v2166 = vld [vmem:[%s2153 + $0x60] sm:$0xff]
    %v2167 = vld [vmem:[%s2153 + $0x68] sm:$0xff]
    %v2168 = vld [vmem:[%s2153 + $0x70] sm:$0xff]
    %v2169 = vld [vmem:[%s2153 + $0x78] sm:$0xff]
    %v2170 = vld [vmem:[%s2153 + $0x80] sm:$0xff]
    %v2171 = vld [vmem:[%s2153 + $0x88] sm:$0xff]
    %v2172 = vld [vmem:[%s2153 + $0x90] sm:$0xff]
    %v2173 = vld [vmem:[%s2153 + $0x98] sm:$0xff]
    %v2174 = vld [vmem:[%s2153 + $0xa0] sm:$0xff]
    %v2175 = vld [vmem:[%s2153 + $0xa8] sm:$0xff]
    %v2176 = vld [vmem:[%s2153 + $0xb0] sm:$0xff]
    %v2177 = vld [vmem:[%s2153 + $0xb8] sm:$0xff]
    %v2178 = vld [vmem:[%s2153 + $0xc0] sm:$0xff]
    %v2179 = vld [vmem:[%s2153 + $0xc8] sm:$0xff]
    %v2180 = vld [vmem:[%s2153 + $0xd0] sm:$0xff]
    %v2181 = vld [vmem:[%s2153 + $0xd8] sm:$0xff]
    %v2182 = vld [vmem:[%s2153 + $0xe0] sm:$0xff]
    %v2183 = vld [vmem:[%s2153 + $0xe8] sm:$0xff]
    %v2184 = vld [vmem:[%s2153 + $0xf0] sm:$0xff]
    %v2185 = vld [vmem:[%s2153 + $0xf8] sm:$0xff]
    %v2186 = vld [vmem:[%s2153 + $0x100] sm:$0xff]
    %v2187 = vld [vmem:[%s2153 + $0x108] sm:$0xff]
    %v2188 = vld [vmem:[%s2153 + $0x110] sm:$0xff]
    %v2189 = vld [vmem:[%s2153 + $0x118] sm:$0xff]
    %v2190 = vld [vmem:[%s2153 + $0x120] sm:$0xff]
    %v2191 = vld [vmem:[%s2153 + $0x128] sm:$0xff]
    %v2192 = vld [vmem:[%s2153 + $0x130] sm:$0xff]
    %v2193 = vld [vmem:[%s2153 + $0x138] sm:$0xff]
    %v2194 = vld [vmem:[%s2153 + $0x140] sm:$0xff]
    %v2195 = vld [vmem:[%s2153 + $0x148] sm:$0xff]
    %v2196 = vld [vmem:[%s2153 + $0x150] sm:$0xff]
    %v2197 = vld [vmem:[%s2153 + $0x158] sm:$0xff]
    %v2198 = vld [vmem:[%s2153 + $0x160] sm:$0xff]
    %v2199 = vld [vmem:[%s2153 + $0x168] sm:$0xff]
    %v2200 = vld [vmem:[%s2153 + $0x170] sm:$0xff]
    %v2201 = vld [vmem:[%s2153 + $0x178] sm:$0xff]
    %v2202 = vld [vmem:[%s2153 + $0x180] sm:$0xff]
    %v2203 = vld [vmem:[%s2153 + $0x188] sm:$0xff]
    %v2204 = vld [vmem:[%s2153 + $0x190] sm:$0xff]
    %v2205 = vld [vmem:[%s2153 + $0x198] sm:$0xff]
    %v2206 = vld [vmem:[%s2153 + $0x1a0] sm:$0xff]
    %v2207 = vld [vmem:[%s2153 + $0x1a8] sm:$0xff]
    %v2208 = vld [vmem:[%s2153 + $0x1b0] sm:$0xff]
    %v2209 = vld [vmem:[%s2153 + $0x1b8] sm:$0xff]
    %v2210 = vld [vmem:[%s2153 + $0x1c0] sm:$0xff]
    %v2211 = vld [vmem:[%s2153 + $0x1c8] sm:$0xff]
    %v2212 = vld [vmem:[%s2153 + $0x1d0] sm:$0xff]
    %v2213 = vld [vmem:[%s2153 + $0x1d8] sm:$0xff]
    %v2214 = vld [vmem:[%s2153 + $0x1e0] sm:$0xff]
    %v2215 = vld [vmem:[%s2153 + $0x1e8] sm:$0xff]
    %v2216 = vld [vmem:[%s2153 + $0x1f0] sm:$0xff]
    %v2217 = vld [vmem:[%s2153 + $0x1f8] sm:$0xff]
    %v2218 = vld [vmem:[%s2153 + $0x200] sm:$0xff]
    %v2219 = vld [vmem:[%s2153 + $0x208] sm:$0xff]
    %v2220 = vld [vmem:[%s2153 + $0x210] sm:$0xff]
    %v2221 = vld [vmem:[%s2153 + $0x218] sm:$0xff]
    %v2222 = vld [vmem:[%s2153 + $0x220] sm:$0xff]
    %v2223 = vld [vmem:[%s2153 + $0x228] sm:$0xff]
    %v2224 = vld [vmem:[%s2153 + $0x230] sm:$0xff]
    %v2225 = vld [vmem:[%s2153 + $0x238] sm:$0xff]
    %v2226 = vld [vmem:[%s2153 + $0x240] sm:$0xff]
    %v2227 = vld [vmem:[%s2153 + $0x248] sm:$0xff]
    %v2228 = vld [vmem:[%s2153 + $0x250] sm:$0xff]
    %v2229 = vld [vmem:[%s2153 + $0x258] sm:$0xff]
    %v2230 = vld [vmem:[%s2153 + $0x260] sm:$0xff]
    %v2231 = vld [vmem:[%s2153 + $0x268] sm:$0xff]
    %v2232 = vld [vmem:[%s2153 + $0x270] sm:$0xff]
    %v2233 = vld [vmem:[%s2153 + $0x278] sm:$0xff]
    %v2234 = vld [vmem:[%s2153 + $0x280] sm:$0xff]
    %v2235 = vld [vmem:[%s2153 + $0x288] sm:$0xff]
    %v2236 = vld [vmem:[%s2153 + $0x290] sm:$0xff]
    %v2237 = vld [vmem:[%s2153 + $0x298] sm:$0xff]
    %v2238 = vld [vmem:[%s2153 + $0x2a0] sm:$0xff]
    %v2239 = vld [vmem:[%s2153 + $0x2a8] sm:$0xff]
    %v2240 = vld [vmem:[%s2153 + $0x2b0] sm:$0xff]
    %v2241 = vld [vmem:[%s2153 + $0x2b8] sm:$0xff]
    %v2242 = vld [vmem:[%s2153 + $0x2c0] sm:$0xff]
    %v2243 = vld [vmem:[%s2153 + $0x2c8] sm:$0xff]
    %v2244 = vld [vmem:[%s2153 + $0x2d0] sm:$0xff]
    %v2245 = vld [vmem:[%s2153 + $0x2d8] sm:$0xff]
    %v2246 = vld [vmem:[%s2153 + $0x2e0] sm:$0xff]
    %v2247 = vld [vmem:[%s2153 + $0x2e8] sm:$0xff]
    %v2248 = vld [vmem:[%s2153 + $0x2f0] sm:$0xff]
    %v2249 = vld [vmem:[%s2153 + $0x2f8] sm:$0xff]
    %v2250 = vld [vmem:[%s2153 + $0x300] sm:$0xff]
    %v2251 = vld [vmem:[%s2153 + $0x308] sm:$0xff]
    %v2252 = vld [vmem:[%s2153 + $0x310] sm:$0xff]
    %v2253 = vld [vmem:[%s2153 + $0x318] sm:$0xff]
    %v2254 = vld [vmem:[%s2153 + $0x320] sm:$0xff]
    %v2255 = vld [vmem:[%s2153 + $0x328] sm:$0xff]
    %v2256 = vld [vmem:[%s2153 + $0x330] sm:$0xff]
    %v2257 = vld [vmem:[%s2153 + $0x338] sm:$0xff]
    %v2258 = vld [vmem:[%s2153 + $0x340] sm:$0xff]
    %v2259 = vld [vmem:[%s2153 + $0x348] sm:$0xff]
    %v2260 = vld [vmem:[%s2153 + $0x350] sm:$0xff]
    %v2261 = vld [vmem:[%s2153 + $0x358] sm:$0xff]
    %v2262 = vld [vmem:[%s2153 + $0x360] sm:$0xff]
    %v2263 = vld [vmem:[%s2153 + $0x368] sm:$0xff]
    %v2264 = vld [vmem:[%s2153 + $0x370] sm:$0xff]
    %v2265 = vld [vmem:[%s2153 + $0x378] sm:$0xff]
    %v2266 = vld [vmem:[%s2153 + $0x380] sm:$0xff]
    %v2267 = vld [vmem:[%s2153 + $0x388] sm:$0xff]
    %v2268 = vld [vmem:[%s2153 + $0x390] sm:$0xff]
    %v2269 = vld [vmem:[%s2153 + $0x398] sm:$0xff]
    %v2270 = vld [vmem:[%s2153 + $0x3a0] sm:$0xff]
    %v2271 = vld [vmem:[%s2153 + $0x3a8] sm:$0xff]
    %v2272 = vld [vmem:[%s2153 + $0x3b0] sm:$0xff]
    %v2273 = vld [vmem:[%s2153 + $0x3b8] sm:$0xff]
    %v2274 = vld [vmem:[%s2153 + $0x3c0] sm:$0xff]
    %v2275 = vld [vmem:[%s2153 + $0x3c8] sm:$0xff]
    %v2276 = vld [vmem:[%s2153 + $0x3d0] sm:$0xff]
    %v2277 = vld [vmem:[%s2153 + $0x3d8] sm:$0xff]
    %v2278 = vld [vmem:[%s2153 + $0x3e0] sm:$0xff]
    %v2279 = vld [vmem:[%s2153 + $0x3e8] sm:$0xff]
    %v2280 = vld [vmem:[%s2153 + $0x3f0] sm:$0xff]
    %v2281 = vld [vmem:[%s2153 + $0x3f8] sm:$0xff]
    %2282 = vmatpush.msra.mxu0 %v2214
    %2283 = vmatpush.msra.mxu0 %v2210
    %2284 = vmatpush.msra.mxu0 %v2206
    %2285 = vmatpush.msra.mxu0 %v2202
    %2286 = vmatpush.msra.mxu0 %v2198
    %2287 = vmatpush.msra.mxu0 %v2194
    %2288 = vmatpush.msra.mxu0 %v2190
    %2289 = vmatpush.msra.mxu0 %v2186
    %2290 = vmatpush.msra.mxu0 %v2182
    %2291 = vmatpush.msra.mxu0 %v2178
    %2292 = vmatpush.msra.mxu0 %v2174
    %2293 = vmatpush.msra.mxu0 %v2170
    %2294 = vmatpush.msra.mxu0 %v2166
    %2295 = vmatpush.msra.mxu0 %v2162
    %2296 = vmatpush.msra.mxu0 %v2158
    %2297 = vmatpush.msra.mxu0 %v2154
    %2298 = vmatmul.f32.gmra.mxu0 %v1279
    %v2299 = vpop.f32.mrf.mxu0
    %v2300 = vadd.f32 0.0, %v2299
    %2301 = vdwg.mxu0
    %2302 = vmatpush.msra.mxu0 %v2278
    %2303 = vmatpush.msra.mxu0 %v2274
    %2304 = vmatpush.msra.mxu0 %v2270
    %2305 = vmatpush.msra.mxu0 %v2266
    %2306 = vmatpush.msra.mxu0 %v2262
    %2307 = vmatpush.msra.mxu0 %v2258
    %2308 = vmatpush.msra.mxu0 %v2254
    %2309 = vmatpush.msra.mxu0 %v2250
    %2310 = vmatpush.msra.mxu0 %v2246
    %2311 = vmatpush.msra.mxu0 %v2242
    %2312 = vmatpush.msra.mxu0 %v2238
    %2313 = vmatpush.msra.mxu0 %v2234
    %2314 = vmatpush.msra.mxu0 %v2230
    %2315 = vmatpush.msra.mxu0 %v2226
    %2316 = vmatpush.msra.mxu0 %v2222
    %2317 = vmatpush.msra.mxu0 %v2218
    %2318 = vmatmul.f32.gmra.mxu0 %v1280
    %v2319 = vpop.f32.mrf.mxu0
    %v2320 = vadd.f32 %v2300, %v2319
    %2321 = vdwg.mxu0
    %2322 = vmatpush.msra.mxu0 %v2215
    %2323 = vmatpush.msra.mxu0 %v2211
    %2324 = vmatpush.msra.mxu0 %v2207
    %2325 = vmatpush.msra.mxu0 %v2203
    %2326 = vmatpush.msra.mxu0 %v2199
    %2327 = vmatpush.msra.mxu0 %v2195
    %2328 = vmatpush.msra.mxu0 %v2191
    %2329 = vmatpush.msra.mxu0 %v2187
    %2330 = vmatpush.msra.mxu0 %v2183
    %2331 = vmatpush.msra.mxu0 %v2179
    %2332 = vmatpush.msra.mxu0 %v2175
    %2333 = vmatpush.msra.mxu0 %v2171
    %2334 = vmatpush.msra.mxu0 %v2167
    %2335 = vmatpush.msra.mxu0 %v2163
    %2336 = vmatpush.msra.mxu0 %v2159
    %2337 = vmatpush.msra.mxu0 %v2155
    %2338 = vmatmul.f32.gmra.mxu0 %v1279
    %v2339 = vpop.f32.mrf.mxu0
    %v2340 = vadd.f32 0.0, %v2339
    %2341 = vdwg.mxu0
    %2342 = vmatpush.msra.mxu0 %v2279
    %2343 = vmatpush.msra.mxu0 %v2275
    %2344 = vmatpush.msra.mxu0 %v2271
    %2345 = vmatpush.msra.mxu0 %v2267
    %2346 = vmatpush.msra.mxu0 %v2263
    %2347 = vmatpush.msra.mxu0 %v2259
    %2348 = vmatpush.msra.mxu0 %v2255
    %2349 = vmatpush.msra.mxu0 %v2251
    %2350 = vmatpush.msra.mxu0 %v2247
    %2351 = vmatpush.msra.mxu0 %v2243
    %2352 = vmatpush.msra.mxu0 %v2239
    %2353 = vmatpush.msra.mxu0 %v2235
    %2354 = vmatpush.msra.mxu0 %v2231
    %2355 = vmatpush.msra.mxu0 %v2227
    %2356 = vmatpush.msra.mxu0 %v2223
    %2357 = vmatpush.msra.mxu0 %v2219
    %2358 = vmatmul.f32.gmra.mxu0 %v1280
    %v2359 = vpop.f32.mrf.mxu0
    %v2360 = vadd.f32 %v2340, %v2359
    %2361 = vdwg.mxu0
    %2362 = vmatpush.msra.mxu0 %v2216
    %2363 = vmatpush.msra.mxu0 %v2212
    %2364 = vmatpush.msra.mxu0 %v2208
    %2365 = vmatpush.msra.mxu0 %v2204
    %2366 = vmatpush.msra.mxu0 %v2200
    %2367 = vmatpush.msra.mxu0 %v2196
    %2368 = vmatpush.msra.mxu0 %v2192
    %2369 = vmatpush.msra.mxu0 %v2188
    %2370 = vmatpush.msra.mxu0 %v2184
    %2371 = vmatpush.msra.mxu0 %v2180
    %2372 = vmatpush.msra.mxu0 %v2176
    %2373 = vmatpush.msra.mxu0 %v2172
    %2374 = vmatpush.msra.mxu0 %v2168
    %2375 = vmatpush.msra.mxu0 %v2164
    %2376 = vmatpush.msra.mxu0 %v2160
    %2377 = vmatpush.msra.mxu0 %v2156
    %2378 = vmatmul.f32.gmra.mxu0 %v1279
    %v2379 = vpop.f32.mrf.mxu0
    %v2380 = vadd.f32 0.0, %v2379
    %2381 = vdwg.mxu0
    %2382 = vmatpush.msra.mxu0 %v2280
    %2383 = vmatpush.msra.mxu0 %v2276
    %2384 = vmatpush.msra.mxu0 %v2272
    %2385 = vmatpush.msra.mxu0 %v2268
    %2386 = vmatpush.msra.mxu0 %v2264
    %2387 = vmatpush.msra.mxu0 %v2260
    %2388 = vmatpush.msra.mxu0 %v2256
    %2389 = vmatpush.msra.mxu0 %v2252
    %2390 = vmatpush.msra.mxu0 %v2248
    %2391 = vmatpush.msra.mxu0 %v2244
    %2392 = vmatpush.msra.mxu0 %v2240
    %2393 = vmatpush.msra.mxu0 %v2236
    %2394 = vmatpush.msra.mxu0 %v2232
    %2395 = vmatpush.msra.mxu0 %v2228
    %2396 = vmatpush.msra.mxu0 %v2224
    %2397 = vmatpush.msra.mxu0 %v2220
    %2398 = vmatmul.f32.gmra.mxu0 %v1280
    %v2399 = vpop.f32.mrf.mxu0
    %v2400 = vadd.f32 %v2380, %v2399
    %2401 = vdwg.mxu0
    %2402 = vmatpush.msra.mxu0 %v2217
    %2403 = vmatpush.msra.mxu0 %v2213
    %2404 = vmatpush.msra.mxu0 %v2209
    %2405 = vmatpush.msra.mxu0 %v2205
    %2406 = vmatpush.msra.mxu0 %v2201
    %2407 = vmatpush.msra.mxu0 %v2197
    %2408 = vmatpush.msra.mxu0 %v2193
    %2409 = vmatpush.msra.mxu0 %v2189
    %2410 = vmatpush.msra.mxu0 %v2185
    %2411 = vmatpush.msra.mxu0 %v2181
    %2412 = vmatpush.msra.mxu0 %v2177
    %2413 = vmatpush.msra.mxu0 %v2173
    %2414 = vmatpush.msra.mxu0 %v2169
    %2415 = vmatpush.msra.mxu0 %v2165
    %2416 = vmatpush.msra.mxu0 %v2161
    %2417 = vmatpush.msra.mxu0 %v2157
    %2418 = vmatmul.f32.gmra.mxu0 %v1279
    %v2419 = vpop.f32.mrf.mxu0
    %v2420 = vadd.f32 0.0, %v2419
    %2421 = vdwg.mxu0
    %2422 = vmatpush.msra.mxu0 %v2281
    %2423 = vmatpush.msra.mxu0 %v2277
    %2424 = vmatpush.msra.mxu0 %v2273
    %2425 = vmatpush.msra.mxu0 %v2269
    %2426 = vmatpush.msra.mxu0 %v2265
    %2427 = vmatpush.msra.mxu0 %v2261
    %2428 = vmatpush.msra.mxu0 %v2257
    %2429 = vmatpush.msra.mxu0 %v2253
    %2430 = vmatpush.msra.mxu0 %v2249
    %2431 = vmatpush.msra.mxu0 %v2245
    %2432 = vmatpush.msra.mxu0 %v2241
    %2433 = vmatpush.msra.mxu0 %v2237
    %2434 = vmatpush.msra.mxu0 %v2233
    %2435 = vmatpush.msra.mxu0 %v2229
    %2436 = vmatpush.msra.mxu0 %v2225
    %2437 = vmatpush.msra.mxu0 %v2221
    %2438 = vmatmul.f32.gmra.mxu0 %v1280
    %v2439 = vpop.f32.mrf.mxu0
    %v2440 = vadd.f32 %v2420, %v2439
    %2441 = vdwg.mxu0
    %v2442 = vadd.f32 %v2149, %v2320
    %v2443 = vadd.f32 %v2150, %v2360
    %v2444 = vadd.f32 %v2151, %v2400
    %v2445 = vadd.f32 %v2152, %v2440
    %s2446 = scalar_lea.vmem %s5, 4096
    %v2447 = vld [vmem:[%s2446] sm:$0xff]
    %v2448 = vld [vmem:[%s2446 + $0x8] sm:$0xff]
    %v2449 = vld [vmem:[%s2446 + $0x10] sm:$0xff]
    %v2450 = vld [vmem:[%s2446 + $0x18] sm:$0xff]
    %v2451 = vld [vmem:[%s2446 + $0x20] sm:$0xff]
    %v2452 = vld [vmem:[%s2446 + $0x28] sm:$0xff]
    %v2453 = vld [vmem:[%s2446 + $0x30] sm:$0xff]
    %v2454 = vld [vmem:[%s2446 + $0x38] sm:$0xff]
    %v2455 = vld [vmem:[%s2446 + $0x40] sm:$0xff]
    %v2456 = vld [vmem:[%s2446 + $0x48] sm:$0xff]
    %v2457 = vld [vmem:[%s2446 + $0x50] sm:$0xff]
    %v2458 = vld [vmem:[%s2446 + $0x58] sm:$0xff]
    %v2459 = vld [vmem:[%s2446 + $0x60] sm:$0xff]
    %v2460 = vld [vmem:[%s2446 + $0x68] sm:$0xff]
    %v2461 = vld [vmem:[%s2446 + $0x70] sm:$0xff]
    %v2462 = vld [vmem:[%s2446 + $0x78] sm:$0xff]
    %v2463 = vld [vmem:[%s2446 + $0x80] sm:$0xff]
    %v2464 = vld [vmem:[%s2446 + $0x88] sm:$0xff]
    %v2465 = vld [vmem:[%s2446 + $0x90] sm:$0xff]
    %v2466 = vld [vmem:[%s2446 + $0x98] sm:$0xff]
    %v2467 = vld [vmem:[%s2446 + $0xa0] sm:$0xff]
    %v2468 = vld [vmem:[%s2446 + $0xa8] sm:$0xff]
    %v2469 = vld [vmem:[%s2446 + $0xb0] sm:$0xff]
    %v2470 = vld [vmem:[%s2446 + $0xb8] sm:$0xff]
    %v2471 = vld [vmem:[%s2446 + $0xc0] sm:$0xff]
    %v2472 = vld [vmem:[%s2446 + $0xc8] sm:$0xff]
    %v2473 = vld [vmem:[%s2446 + $0xd0] sm:$0xff]
    %v2474 = vld [vmem:[%s2446 + $0xd8] sm:$0xff]
    %v2475 = vld [vmem:[%s2446 + $0xe0] sm:$0xff]
    %v2476 = vld [vmem:[%s2446 + $0xe8] sm:$0xff]
    %v2477 = vld [vmem:[%s2446 + $0xf0] sm:$0xff]
    %v2478 = vld [vmem:[%s2446 + $0xf8] sm:$0xff]
    %v2479 = vld [vmem:[%s2446 + $0x100] sm:$0xff]
    %v2480 = vld [vmem:[%s2446 + $0x108] sm:$0xff]
    %v2481 = vld [vmem:[%s2446 + $0x110] sm:$0xff]
    %v2482 = vld [vmem:[%s2446 + $0x118] sm:$0xff]
    %v2483 = vld [vmem:[%s2446 + $0x120] sm:$0xff]
    %v2484 = vld [vmem:[%s2446 + $0x128] sm:$0xff]
    %v2485 = vld [vmem:[%s2446 + $0x130] sm:$0xff]
    %v2486 = vld [vmem:[%s2446 + $0x138] sm:$0xff]
    %v2487 = vld [vmem:[%s2446 + $0x140] sm:$0xff]
    %v2488 = vld [vmem:[%s2446 + $0x148] sm:$0xff]
    %v2489 = vld [vmem:[%s2446 + $0x150] sm:$0xff]
    %v2490 = vld [vmem:[%s2446 + $0x158] sm:$0xff]
    %v2491 = vld [vmem:[%s2446 + $0x160] sm:$0xff]
    %v2492 = vld [vmem:[%s2446 + $0x168] sm:$0xff]
    %v2493 = vld [vmem:[%s2446 + $0x170] sm:$0xff]
    %v2494 = vld [vmem:[%s2446 + $0x178] sm:$0xff]
    %v2495 = vld [vmem:[%s2446 + $0x180] sm:$0xff]
    %v2496 = vld [vmem:[%s2446 + $0x188] sm:$0xff]
    %v2497 = vld [vmem:[%s2446 + $0x190] sm:$0xff]
    %v2498 = vld [vmem:[%s2446 + $0x198] sm:$0xff]
    %v2499 = vld [vmem:[%s2446 + $0x1a0] sm:$0xff]
    %v2500 = vld [vmem:[%s2446 + $0x1a8] sm:$0xff]
    %v2501 = vld [vmem:[%s2446 + $0x1b0] sm:$0xff]
    %v2502 = vld [vmem:[%s2446 + $0x1b8] sm:$0xff]
    %v2503 = vld [vmem:[%s2446 + $0x1c0] sm:$0xff]
    %v2504 = vld [vmem:[%s2446 + $0x1c8] sm:$0xff]
    %v2505 = vld [vmem:[%s2446 + $0x1d0] sm:$0xff]
    %v2506 = vld [vmem:[%s2446 + $0x1d8] sm:$0xff]
    %v2507 = vld [vmem:[%s2446 + $0x1e0] sm:$0xff]
    %v2508 = vld [vmem:[%s2446 + $0x1e8] sm:$0xff]
    %v2509 = vld [vmem:[%s2446 + $0x1f0] sm:$0xff]
    %v2510 = vld [vmem:[%s2446 + $0x1f8] sm:$0xff]
    %v2511 = vld [vmem:[%s2446 + $0x200] sm:$0xff]
    %v2512 = vld [vmem:[%s2446 + $0x208] sm:$0xff]
    %v2513 = vld [vmem:[%s2446 + $0x210] sm:$0xff]
    %v2514 = vld [vmem:[%s2446 + $0x218] sm:$0xff]
    %v2515 = vld [vmem:[%s2446 + $0x220] sm:$0xff]
    %v2516 = vld [vmem:[%s2446 + $0x228] sm:$0xff]
    %v2517 = vld [vmem:[%s2446 + $0x230] sm:$0xff]
    %v2518 = vld [vmem:[%s2446 + $0x238] sm:$0xff]
    %v2519 = vld [vmem:[%s2446 + $0x240] sm:$0xff]
    %v2520 = vld [vmem:[%s2446 + $0x248] sm:$0xff]
    %v2521 = vld [vmem:[%s2446 + $0x250] sm:$0xff]
    %v2522 = vld [vmem:[%s2446 + $0x258] sm:$0xff]
    %v2523 = vld [vmem:[%s2446 + $0x260] sm:$0xff]
    %v2524 = vld [vmem:[%s2446 + $0x268] sm:$0xff]
    %v2525 = vld [vmem:[%s2446 + $0x270] sm:$0xff]
    %v2526 = vld [vmem:[%s2446 + $0x278] sm:$0xff]
    %v2527 = vld [vmem:[%s2446 + $0x280] sm:$0xff]
    %v2528 = vld [vmem:[%s2446 + $0x288] sm:$0xff]
    %v2529 = vld [vmem:[%s2446 + $0x290] sm:$0xff]
    %v2530 = vld [vmem:[%s2446 + $0x298] sm:$0xff]
    %v2531 = vld [vmem:[%s2446 + $0x2a0] sm:$0xff]
    %v2532 = vld [vmem:[%s2446 + $0x2a8] sm:$0xff]
    %v2533 = vld [vmem:[%s2446 + $0x2b0] sm:$0xff]
    %v2534 = vld [vmem:[%s2446 + $0x2b8] sm:$0xff]
    %v2535 = vld [vmem:[%s2446 + $0x2c0] sm:$0xff]
    %v2536 = vld [vmem:[%s2446 + $0x2c8] sm:$0xff]
    %v2537 = vld [vmem:[%s2446 + $0x2d0] sm:$0xff]
    %v2538 = vld [vmem:[%s2446 + $0x2d8] sm:$0xff]
    %v2539 = vld [vmem:[%s2446 + $0x2e0] sm:$0xff]
    %v2540 = vld [vmem:[%s2446 + $0x2e8] sm:$0xff]
    %v2541 = vld [vmem:[%s2446 + $0x2f0] sm:$0xff]
    %v2542 = vld [vmem:[%s2446 + $0x2f8] sm:$0xff]
    %v2543 = vld [vmem:[%s2446 + $0x300] sm:$0xff]
    %v2544 = vld [vmem:[%s2446 + $0x308] sm:$0xff]
    %v2545 = vld [vmem:[%s2446 + $0x310] sm:$0xff]
    %v2546 = vld [vmem:[%s2446 + $0x318] sm:$0xff]
    %v2547 = vld [vmem:[%s2446 + $0x320] sm:$0xff]
    %v2548 = vld [vmem:[%s2446 + $0x328] sm:$0xff]
    %v2549 = vld [vmem:[%s2446 + $0x330] sm:$0xff]
    %v2550 = vld [vmem:[%s2446 + $0x338] sm:$0xff]
    %v2551 = vld [vmem:[%s2446 + $0x340] sm:$0xff]
    %v2552 = vld [vmem:[%s2446 + $0x348] sm:$0xff]
    %v2553 = vld [vmem:[%s2446 + $0x350] sm:$0xff]
    %v2554 = vld [vmem:[%s2446 + $0x358] sm:$0xff]
    %v2555 = vld [vmem:[%s2446 + $0x360] sm:$0xff]
    %v2556 = vld [vmem:[%s2446 + $0x368] sm:$0xff]
    %v2557 = vld [vmem:[%s2446 + $0x370] sm:$0xff]
    %v2558 = vld [vmem:[%s2446 + $0x378] sm:$0xff]
    %v2559 = vld [vmem:[%s2446 + $0x380] sm:$0xff]
    %v2560 = vld [vmem:[%s2446 + $0x388] sm:$0xff]
    %v2561 = vld [vmem:[%s2446 + $0x390] sm:$0xff]
    %v2562 = vld [vmem:[%s2446 + $0x398] sm:$0xff]
    %v2563 = vld [vmem:[%s2446 + $0x3a0] sm:$0xff]
    %v2564 = vld [vmem:[%s2446 + $0x3a8] sm:$0xff]
    %v2565 = vld [vmem:[%s2446 + $0x3b0] sm:$0xff]
    %v2566 = vld [vmem:[%s2446 + $0x3b8] sm:$0xff]
    %v2567 = vld [vmem:[%s2446 + $0x3c0] sm:$0xff]
    %v2568 = vld [vmem:[%s2446 + $0x3c8] sm:$0xff]
    %v2569 = vld [vmem:[%s2446 + $0x3d0] sm:$0xff]
    %v2570 = vld [vmem:[%s2446 + $0x3d8] sm:$0xff]
    %v2571 = vld [vmem:[%s2446 + $0x3e0] sm:$0xff]
    %v2572 = vld [vmem:[%s2446 + $0x3e8] sm:$0xff]
    %v2573 = vld [vmem:[%s2446 + $0x3f0] sm:$0xff]
    %v2574 = vld [vmem:[%s2446 + $0x3f8] sm:$0xff]
    %2575 = vmatpush.msra.mxu0 %v2507
    %2576 = vmatpush.msra.mxu0 %v2503
    %2577 = vmatpush.msra.mxu0 %v2499
    %2578 = vmatpush.msra.mxu0 %v2495
    %2579 = vmatpush.msra.mxu0 %v2491
    %2580 = vmatpush.msra.mxu0 %v2487
    %2581 = vmatpush.msra.mxu0 %v2483
    %2582 = vmatpush.msra.mxu0 %v2479
    %2583 = vmatpush.msra.mxu0 %v2475
    %2584 = vmatpush.msra.mxu0 %v2471
    %2585 = vmatpush.msra.mxu0 %v2467
    %2586 = vmatpush.msra.mxu0 %v2463
    %2587 = vmatpush.msra.mxu0 %v2459
    %2588 = vmatpush.msra.mxu0 %v2455
    %2589 = vmatpush.msra.mxu0 %v2451
    %2590 = vmatpush.msra.mxu0 %v2447
    %2591 = vmatmul.f32.gmra.mxu0 %v1281
    %v2592 = vpop.f32.mrf.mxu0
    %v2593 = vadd.f32 0.0, %v2592
    %2594 = vdwg.mxu0
    %2595 = vmatpush.msra.mxu0 %v2571
    %2596 = vmatpush.msra.mxu0 %v2567
    %2597 = vmatpush.msra.mxu0 %v2563
    %2598 = vmatpush.msra.mxu0 %v2559
    %2599 = vmatpush.msra.mxu0 %v2555
    %2600 = vmatpush.msra.mxu0 %v2551
    %2601 = vmatpush.msra.mxu0 %v2547
    %2602 = vmatpush.msra.mxu0 %v2543
    %2603 = vmatpush.msra.mxu0 %v2539
    %2604 = vmatpush.msra.mxu0 %v2535
    %2605 = vmatpush.msra.mxu0 %v2531
    %2606 = vmatpush.msra.mxu0 %v2527
    %2607 = vmatpush.msra.mxu0 %v2523
    %2608 = vmatpush.msra.mxu0 %v2519
    %2609 = vmatpush.msra.mxu0 %v2515
    %2610 = vmatpush.msra.mxu0 %v2511
    %2611 = vmatmul.f32.gmra.mxu0 %v1282
    %v2612 = vpop.f32.mrf.mxu0
    %v2613 = vadd.f32 %v2593, %v2612
    %2614 = vdwg.mxu0
    %2615 = vmatpush.msra.mxu0 %v2508
    %2616 = vmatpush.msra.mxu0 %v2504
    %2617 = vmatpush.msra.mxu0 %v2500
    %2618 = vmatpush.msra.mxu0 %v2496
    %2619 = vmatpush.msra.mxu0 %v2492
    %2620 = vmatpush.msra.mxu0 %v2488
    %2621 = vmatpush.msra.mxu0 %v2484
    %2622 = vmatpush.msra.mxu0 %v2480
    %2623 = vmatpush.msra.mxu0 %v2476
    %2624 = vmatpush.msra.mxu0 %v2472
    %2625 = vmatpush.msra.mxu0 %v2468
    %2626 = vmatpush.msra.mxu0 %v2464
    %2627 = vmatpush.msra.mxu0 %v2460
    %2628 = vmatpush.msra.mxu0 %v2456
    %2629 = vmatpush.msra.mxu0 %v2452
    %2630 = vmatpush.msra.mxu0 %v2448
    %2631 = vmatmul.f32.gmra.mxu0 %v1281
    %v2632 = vpop.f32.mrf.mxu0
    %v2633 = vadd.f32 0.0, %v2632
    %2634 = vdwg.mxu0
    %2635 = vmatpush.msra.mxu0 %v2572
    %2636 = vmatpush.msra.mxu0 %v2568
    %2637 = vmatpush.msra.mxu0 %v2564
    %2638 = vmatpush.msra.mxu0 %v2560
    %2639 = vmatpush.msra.mxu0 %v2556
    %2640 = vmatpush.msra.mxu0 %v2552
    %2641 = vmatpush.msra.mxu0 %v2548
    %2642 = vmatpush.msra.mxu0 %v2544
    %2643 = vmatpush.msra.mxu0 %v2540
    %2644 = vmatpush.msra.mxu0 %v2536
    %2645 = vmatpush.msra.mxu0 %v2532
    %2646 = vmatpush.msra.mxu0 %v2528
    %2647 = vmatpush.msra.mxu0 %v2524
    %2648 = vmatpush.msra.mxu0 %v2520
    %2649 = vmatpush.msra.mxu0 %v2516
    %2650 = vmatpush.msra.mxu0 %v2512
    %2651 = vmatmul.f32.gmra.mxu0 %v1282
    %v2652 = vpop.f32.mrf.mxu0
    %v2653 = vadd.f32 %v2633, %v2652
    %2654 = vdwg.mxu0
    %2655 = vmatpush.msra.mxu0 %v2509
    %2656 = vmatpush.msra.mxu0 %v2505
    %2657 = vmatpush.msra.mxu0 %v2501
    %2658 = vmatpush.msra.mxu0 %v2497
    %2659 = vmatpush.msra.mxu0 %v2493
    %2660 = vmatpush.msra.mxu0 %v2489
    %2661 = vmatpush.msra.mxu0 %v2485
    %2662 = vmatpush.msra.mxu0 %v2481
    %2663 = vmatpush.msra.mxu0 %v2477
    %2664 = vmatpush.msra.mxu0 %v2473
    %2665 = vmatpush.msra.mxu0 %v2469
    %2666 = vmatpush.msra.mxu0 %v2465
    %2667 = vmatpush.msra.mxu0 %v2461
    %2668 = vmatpush.msra.mxu0 %v2457
    %2669 = vmatpush.msra.mxu0 %v2453
    %2670 = vmatpush.msra.mxu0 %v2449
    %2671 = vmatmul.f32.gmra.mxu0 %v1281
    %v2672 = vpop.f32.mrf.mxu0
    %v2673 = vadd.f32 0.0, %v2672
    %2674 = vdwg.mxu0
    %2675 = vmatpush.msra.mxu0 %v2573
    %2676 = vmatpush.msra.mxu0 %v2569
    %2677 = vmatpush.msra.mxu0 %v2565
    %2678 = vmatpush.msra.mxu0 %v2561
    %2679 = vmatpush.msra.mxu0 %v2557
    %2680 = vmatpush.msra.mxu0 %v2553
    %2681 = vmatpush.msra.mxu0 %v2549
    %2682 = vmatpush.msra.mxu0 %v2545
    %2683 = vmatpush.msra.mxu0 %v2541
    %2684 = vmatpush.msra.mxu0 %v2537
    %2685 = vmatpush.msra.mxu0 %v2533
    %2686 = vmatpush.msra.mxu0 %v2529
    %2687 = vmatpush.msra.mxu0 %v2525
    %2688 = vmatpush.msra.mxu0 %v2521
    %2689 = vmatpush.msra.mxu0 %v2517
    %2690 = vmatpush.msra.mxu0 %v2513
    %2691 = vmatmul.f32.gmra.mxu0 %v1282
    %v2692 = vpop.f32.mrf.mxu0
    %v2693 = vadd.f32 %v2673, %v2692
    %2694 = vdwg.mxu0
    %2695 = vmatpush.msra.mxu0 %v2510
    %2696 = vmatpush.msra.mxu0 %v2506
    %2697 = vmatpush.msra.mxu0 %v2502
    %2698 = vmatpush.msra.mxu0 %v2498
    %2699 = vmatpush.msra.mxu0 %v2494
    %2700 = vmatpush.msra.mxu0 %v2490
    %2701 = vmatpush.msra.mxu0 %v2486
    %2702 = vmatpush.msra.mxu0 %v2482
    %2703 = vmatpush.msra.mxu0 %v2478
    %2704 = vmatpush.msra.mxu0 %v2474
    %2705 = vmatpush.msra.mxu0 %v2470
    %2706 = vmatpush.msra.mxu0 %v2466
    %2707 = vmatpush.msra.mxu0 %v2462
    %2708 = vmatpush.msra.mxu0 %v2458
    %2709 = vmatpush.msra.mxu0 %v2454
    %2710 = vmatpush.msra.mxu0 %v2450
    %2711 = vmatmul.f32.gmra.mxu0 %v1281
    %v2712 = vpop.f32.mrf.mxu0
    %v2713 = vadd.f32 0.0, %v2712
    %2714 = vdwg.mxu0
    %2715 = vmatpush.msra.mxu0 %v2574
    %2716 = vmatpush.msra.mxu0 %v2570
    %2717 = vmatpush.msra.mxu0 %v2566
    %2718 = vmatpush.msra.mxu0 %v2562
    %2719 = vmatpush.msra.mxu0 %v2558
    %2720 = vmatpush.msra.mxu0 %v2554
    %2721 = vmatpush.msra.mxu0 %v2550
    %2722 = vmatpush.msra.mxu0 %v2546
    %2723 = vmatpush.msra.mxu0 %v2542
    %2724 = vmatpush.msra.mxu0 %v2538
    %2725 = vmatpush.msra.mxu0 %v2534
    %2726 = vmatpush.msra.mxu0 %v2530
    %2727 = vmatpush.msra.mxu0 %v2526
    %2728 = vmatpush.msra.mxu0 %v2522
    %2729 = vmatpush.msra.mxu0 %v2518
    %2730 = vmatpush.msra.mxu0 %v2514
    %2731 = vmatmul.f32.gmra.mxu0 %v1282
    %v2732 = vpop.f32.mrf.mxu0
    %v2733 = vadd.f32 %v2713, %v2732
    %2734 = vdwg.mxu0
    %v2735 = vadd.f32 %v2442, %v2613
    %v2736 = vadd.f32 %v2443, %v2653
    %v2737 = vadd.f32 %v2444, %v2693
    %v2738 = vadd.f32 %v2445, %v2733
    %v2739 = vld [vmem:[%s6] sm:$0xf]
    %v2741 = vperm.slane %v2739, 0
    %v2742 = vperm.slane %v2739, 1
    %v2743 = vperm.slane %v2739, 2
    %v2744 = vperm.slane %v2739, 3
    %v2749 = vadd.f32 %v2735, %v2741
    %v2750 = vadd.f32 %v2736, %v2742
    %v2751 = vadd.f32 %v2737, %v2743
    %v2752 = vadd.f32 %v2738, %v2744
    %v2753 = vld [vmem:[%s7] sm:$0xff]
    %v2754 = vld [vmem:[%s7 + $0x8] sm:$0xff]
    %v2755 = vld [vmem:[%s7 + $0x10] sm:$0xff]
    %v2756 = vld [vmem:[%s7 + $0x18] sm:$0xff]
    %v2757 = vld [vmem:[%s7 + $0x20] sm:$0xff]
    %v2758 = vld [vmem:[%s7 + $0x28] sm:$0xff]
    %v2759 = vld [vmem:[%s7 + $0x30] sm:$0xff]
    %v2760 = vld [vmem:[%s7 + $0x38] sm:$0xff]
    %v2761 = vld [vmem:[%s7 + $0x40] sm:$0xff]
    %v2762 = vld [vmem:[%s7 + $0x48] sm:$0xff]
    %v2763 = vld [vmem:[%s7 + $0x50] sm:$0xff]
    %v2764 = vld [vmem:[%s7 + $0x58] sm:$0xff]
    %v2765 = vld [vmem:[%s7 + $0x60] sm:$0xff]
    %v2766 = vld [vmem:[%s7 + $0x68] sm:$0xff]
    %v2767 = vld [vmem:[%s7 + $0x70] sm:$0xff]
    %v2768 = vld [vmem:[%s7 + $0x78] sm:$0xff]
    %v2769 = vld [vmem:[%s7 + $0x80] sm:$0xff]
    %v2770 = vld [vmem:[%s7 + $0x88] sm:$0xff]
    %v2771 = vld [vmem:[%s7 + $0x90] sm:$0xff]
    %v2772 = vld [vmem:[%s7 + $0x98] sm:$0xff]
    %v2773 = vld [vmem:[%s7 + $0xa0] sm:$0xff]
    %v2774 = vld [vmem:[%s7 + $0xa8] sm:$0xff]
    %v2775 = vld [vmem:[%s7 + $0xb0] sm:$0xff]
    %v2776 = vld [vmem:[%s7 + $0xb8] sm:$0xff]
    %v2777 = vld [vmem:[%s7 + $0xc0] sm:$0xff]
    %v2778 = vld [vmem:[%s7 + $0xc8] sm:$0xff]
    %v2779 = vld [vmem:[%s7 + $0xd0] sm:$0xff]
    %v2780 = vld [vmem:[%s7 + $0xd8] sm:$0xff]
    %v2781 = vld [vmem:[%s7 + $0xe0] sm:$0xff]
    %v2782 = vld [vmem:[%s7 + $0xe8] sm:$0xff]
    %v2783 = vld [vmem:[%s7 + $0xf0] sm:$0xff]
    %v2784 = vld [vmem:[%s7 + $0xf8] sm:$0xff]
    %v2785 = vld [vmem:[%s7 + $0x100] sm:$0xff]
    %v2786 = vld [vmem:[%s7 + $0x108] sm:$0xff]
    %v2787 = vld [vmem:[%s7 + $0x110] sm:$0xff]
    %v2788 = vld [vmem:[%s7 + $0x118] sm:$0xff]
    %v2789 = vld [vmem:[%s7 + $0x120] sm:$0xff]
    %v2790 = vld [vmem:[%s7 + $0x128] sm:$0xff]
    %v2791 = vld [vmem:[%s7 + $0x130] sm:$0xff]
    %v2792 = vld [vmem:[%s7 + $0x138] sm:$0xff]
    %v2793 = vld [vmem:[%s7 + $0x140] sm:$0xff]
    %v2794 = vld [vmem:[%s7 + $0x148] sm:$0xff]
    %v2795 = vld [vmem:[%s7 + $0x150] sm:$0xff]
    %v2796 = vld [vmem:[%s7 + $0x158] sm:$0xff]
    %v2797 = vld [vmem:[%s7 + $0x160] sm:$0xff]
    %v2798 = vld [vmem:[%s7 + $0x168] sm:$0xff]
    %v2799 = vld [vmem:[%s7 + $0x170] sm:$0xff]
    %v2800 = vld [vmem:[%s7 + $0x178] sm:$0xff]
    %v2801 = vld [vmem:[%s7 + $0x180] sm:$0xff]
    %v2802 = vld [vmem:[%s7 + $0x188] sm:$0xff]
    %v2803 = vld [vmem:[%s7 + $0x190] sm:$0xff]
    %v2804 = vld [vmem:[%s7 + $0x198] sm:$0xff]
    %v2805 = vld [vmem:[%s7 + $0x1a0] sm:$0xff]
    %v2806 = vld [vmem:[%s7 + $0x1a8] sm:$0xff]
    %v2807 = vld [vmem:[%s7 + $0x1b0] sm:$0xff]
    %v2808 = vld [vmem:[%s7 + $0x1b8] sm:$0xff]
    %v2809 = vld [vmem:[%s7 + $0x1c0] sm:$0xff]
    %v2810 = vld [vmem:[%s7 + $0x1c8] sm:$0xff]
    %v2811 = vld [vmem:[%s7 + $0x1d0] sm:$0xff]
    %v2812 = vld [vmem:[%s7 + $0x1d8] sm:$0xff]
    %v2813 = vld [vmem:[%s7 + $0x1e0] sm:$0xff]
    %v2814 = vld [vmem:[%s7 + $0x1e8] sm:$0xff]
    %v2815 = vld [vmem:[%s7 + $0x1f0] sm:$0xff]
    %v2816 = vld [vmem:[%s7 + $0x1f8] sm:$0xff]
    %v2817 = vld [vmem:[%s8] sm:$0x1]
    %v2819 = vperm.slane %v2817, 0
    %2821 = vmatpush.msra.mxu0 %v2768
    %2822 = vmatpush.msra.mxu0 %v2767
    %2823 = vmatpush.msra.mxu0 %v2766
    %2824 = vmatpush.msra.mxu0 %v2765
    %2825 = vmatpush.msra.mxu0 %v2764
    %2826 = vmatpush.msra.mxu0 %v2763
    %2827 = vmatpush.msra.mxu0 %v2762
    %2828 = vmatpush.msra.mxu0 %v2761
    %2829 = vmatpush.msra.mxu0 %v2760
    %2830 = vmatpush.msra.mxu0 %v2759
    %2831 = vmatpush.msra.mxu0 %v2758
    %2832 = vmatpush.msra.mxu0 %v2757
    %2833 = vmatpush.msra.mxu0 %v2756
    %2834 = vmatpush.msra.mxu0 %v2755
    %2835 = vmatpush.msra.mxu0 %v2754
    %2836 = vmatpush.msra.mxu0 %v2753
    %2837 = vmatmul.f32.gmra.mxu0 %v2749
    %v2838 = vpop.f32.mrf.mxu0
    %v2839 = vadd.f32 %v2819, %v2838
    %2840 = vdwg.mxu0
    %2841 = vmatpush.msra.mxu0 %v2784
    %2842 = vmatpush.msra.mxu0 %v2783
    %2843 = vmatpush.msra.mxu0 %v2782
    %2844 = vmatpush.msra.mxu0 %v2781
    %2845 = vmatpush.msra.mxu0 %v2780
    %2846 = vmatpush.msra.mxu0 %v2779
    %2847 = vmatpush.msra.mxu0 %v2778
    %2848 = vmatpush.msra.mxu0 %v2777
    %2849 = vmatpush.msra.mxu0 %v2776
    %2850 = vmatpush.msra.mxu0 %v2775
    %2851 = vmatpush.msra.mxu0 %v2774
    %2852 = vmatpush.msra.mxu0 %v2773
    %2853 = vmatpush.msra.mxu0 %v2772
    %2854 = vmatpush.msra.mxu0 %v2771
    %2855 = vmatpush.msra.mxu0 %v2770
    %2856 = vmatpush.msra.mxu0 %v2769
    %2857 = vmatmul.f32.gmra.mxu0 %v2750
    %v2858 = vpop.f32.mrf.mxu0
    %v2859 = vadd.f32 %v2839, %v2858
    %2860 = vdwg.mxu0
    %2861 = vmatpush.msra.mxu0 %v2800
    %2862 = vmatpush.msra.mxu0 %v2799
    %2863 = vmatpush.msra.mxu0 %v2798
    %2864 = vmatpush.msra.mxu0 %v2797
    %2865 = vmatpush.msra.mxu0 %v2796
    %2866 = vmatpush.msra.mxu0 %v2795
    %2867 = vmatpush.msra.mxu0 %v2794
    %2868 = vmatpush.msra.mxu0 %v2793
    %2869 = vmatpush.msra.mxu0 %v2792
    %2870 = vmatpush.msra.mxu0 %v2791
    %2871 = vmatpush.msra.mxu0 %v2790
    %2872 = vmatpush.msra.mxu0 %v2789
    %2873 = vmatpush.msra.mxu0 %v2788
    %2874 = vmatpush.msra.mxu0 %v2787
    %2875 = vmatpush.msra.mxu0 %v2786
    %2876 = vmatpush.msra.mxu0 %v2785
    %2877 = vmatmul.f32.gmra.mxu0 %v2751
    %v2878 = vpop.f32.mrf.mxu0
    %v2879 = vadd.f32 %v2859, %v2878
    %2880 = vdwg.mxu0
    %2881 = vmatpush.msra.mxu0 %v2816
    %2882 = vmatpush.msra.mxu0 %v2815
    %2883 = vmatpush.msra.mxu0 %v2814
    %2884 = vmatpush.msra.mxu0 %v2813
    %2885 = vmatpush.msra.mxu0 %v2812
    %2886 = vmatpush.msra.mxu0 %v2811
    %2887 = vmatpush.msra.mxu0 %v2810
    %2888 = vmatpush.msra.mxu0 %v2809
    %2889 = vmatpush.msra.mxu0 %v2808
    %2890 = vmatpush.msra.mxu0 %v2807
    %2891 = vmatpush.msra.mxu0 %v2806
    %2892 = vmatpush.msra.mxu0 %v2805
    %2893 = vmatpush.msra.mxu0 %v2804
    %2894 = vmatpush.msra.mxu0 %v2803
    %2895 = vmatpush.msra.mxu0 %v2802
    %2896 = vmatpush.msra.mxu0 %v2801
    %2897 = vmatmul.f32.gmra.mxu0 %v2752
    %v2898 = vpop.f32.mrf.mxu0
    %v2899 = vadd.f32 %v2879, %v2898
    %2900 = vdwg.mxu0
    %2901 = vst [vmem:[%s9] sm:$0xff] %v2899
    // Predicated region
    $region42: #{plainnet_forward.1} parent=1 // pred_check
      _
    $region43: #{plainnet_forward.1} parent=1 // pred_check_branch
      %2903 = sbr.rel (0) target = $region45
    $region44: #{plainnet_forward.1} parent=1 // pred_region
      _
    $region45: #{plainnet_forward.1} parent=1 // pred_fallthru
      _
    // Predicated region
    $region46: #{plainnet_forward.1} parent=1 // pred_check
      _
    $region47: #{plainnet_forward.1} parent=1 // pred_check_branch
      %2905 = sbr.rel (0) target = $region49
    $region48: #{plainnet_forward.1} parent=1 // pred_region
      _
    $region49: #{plainnet_forward.1} parent=1 // pred_fallthru
      _
    %2906 = vsyncpa [#allocation3], 1

</llo_original>
